<compile_context>
chip_gen: v6e
topology: v6e:2x2x1
jax: 0.10.0
libtpu: 0.0.40
codegen_flags: <defaults>
</compile_context>

<pallas_src>
import numpy as np
import jax
import jax.numpy as jnp
from jax import lax
from jax.experimental import pallas as pl
from jax.experimental.pallas import tpu as pltpu

_LANE_PAD = 128   # zero lane padding around the flattened B*H*W axis (> max tap shift)
_N_PAD = 128      # classifier output padded to one full lane tile


def _round8(n):
    return ((n + 7) // 8) * 8


# ------------------------------- fused kernel ---------------------------------

def _make_fused_kernel(n_layers, B, H, W, K, pad, lane_pad):
    HW = H * W
    BHW = B * HW

    def kernel(*refs):
        x_ref = refs[0]
        mask_ref = refs[1]
        layer_refs = [(refs[2 + 2 * i], refs[3 + 2 * i]) for i in range(n_layers)]
        wc_ref = refs[2 + 2 * n_layers]
        bc_ref = refs[3 + 2 * n_layers]
        o_ref = refs[4 + 2 * n_layers]
        sc = refs[5 + 2 * n_layers:]
        xpads = [sc[2 * i] for i in range(n_layers)]
        cols = [sc[2 * i + 1] for i in range(n_layers)]
        flat_ref = sc[2 * n_layers]

        cur = x_ref[...]                                       # [CinP0, B*HW] bf16
        for li, (w_ref, b_ref) in enumerate(layer_refs):
            xp, col = xpads[li], cols[li]
            cinp = xp.shape[0]
            rows = cur.shape[0]
            # Stage this layer's input into a lane-zero-padded scratch so every conv
            # tap is a plain static lane-offset read (implicit zero padding).
            xp[:, :lane_pad] = jnp.zeros((cinp, lane_pad), jnp.bfloat16)
            xp[:, lane_pad + BHW:] = jnp.zeros((cinp, lane_pad), jnp.bfloat16)
            xp[:rows, lane_pad:lane_pad + BHW] = cur
            if cinp > rows:                                    # zero channel padding
                xp[rows:, lane_pad:lane_pad + BHW] = jnp.zeros(
                    (cinp - rows, BHW), jnp.bfloat16)
            # im2col: one masked shifted copy per tap, then ONE MXU matmul per layer.
            for kh in range(K):
                for kw in range(K):
                    t = kh * K + kw
                    s = (kh - pad) * W + (kw - pad)
                    src = xp[:, lane_pad + s:lane_pad + s + BHW]
                    if kh == pad and kw == pad:                # center tap: mask == 1
                        col[t * cinp:(t + 1) * cinp, :] = src
                    else:                                      # precomputed edge mask
                        col[t * cinp:(t + 1) * cinp, :] = src * mask_ref[t:t + 1, :]
            acc = b_ref[...] + jnp.dot(w_ref[...], col[...],
                                       preferred_element_type=jnp.float32)
            cur = acc.astype(jnp.bfloat16)                     # [Cout, B*HW]

        # NCHW flatten (c-major) into [B, C_last*HW], then ONE classifier matmul.
        c_last = cur.shape[0]
        for b in range(B):
            for c in range(c_last):
                flat_ref[b:b + 1, c * HW:(c + 1) * HW] = cur[c:c + 1, b * HW:(b + 1) * HW]
        o_ref[...] = bc_ref[...] + jnp.dot(flat_ref[...], wc_ref[...],
                                           preferred_element_type=jnp.float32)

    return kernel


# -------------------- host-side precomputed constants / maps -------------------

def _tap_masks(B, H, W, K, pad):
    """[K*K, B*HW] bf16 0/1 validity mask per conv tap (static; built with numpy)."""
    HW = H * W
    hh = np.arange(HW) // W
    ww = np.arange(HW) % W
    m = np.zeros((K * K, HW), np.float32)
    for kh in range(K):
        for kw in range(K):
            dh, dw = kh - pad, kw - pad
            m[kh * K + kw] = ((hh + dh >= 0) & (hh + dh < H) &
                              (ww + dw >= 0) & (ww + dw < W)).astype(np.float32)
    return jnp.asarray(np.tile(m, (1, B)), jnp.bfloat16)


def _bias_noise_map(p, noise, B, H, W, pad):
    """Additive per-pixel map for one CustomConvWithExtra layer: main-conv bias plus the
    extra convs applied to the spatially broadcast noise vector.  [Cout, B*HW] f32."""
    w_extra = p["w_extra"]                                     # [Cout, K, K, F]
    Cout, K, _, F = w_extra.shape
    HW = H * W
    bias = (p["b_main"] + p["b_extra"]).astype(jnp.float32)    # [Cout]
    if noise is None:                                          # torch default: zero extras
        return jnp.broadcast_to(bias[:, None], (Cout, B * HW))
    e_tap = jnp.einsum("bcf,cijf->bcij",
                       noise.reshape(B, Cout, F).astype(jnp.float32),
                       w_extra.astype(jnp.float32))
    k = np.arange(K)[:, None]
    vh = ((np.arange(H)[None, :] + k - pad >= 0) &
          (np.arange(H)[None, :] + k - pad < H)).astype(np.float32)   # [K, H]
    vw = ((np.arange(W)[None, :] + k - pad >= 0) &
          (np.arange(W)[None, :] + k - pad < W)).astype(np.float32)   # [K, W]
    valid = vh[:, None, :, None] * vw[None, :, None, :]               # [K, K, H, W]
    emap = jnp.einsum("bcij,ijhw->bchw", e_tap, jnp.asarray(valid))
    emap = emap + bias[None, :, None, None]                           # [B, Cout, H, W]
    return jnp.transpose(emap, (1, 0, 2, 3)).reshape(Cout, B * HW).astype(jnp.float32)


# --------------------------------- forward ------------------------------------

def noise_efficientnet_forward(params, inputs_nchw, layer_noise=None, *, padding=1):
    """inputs_nchw: [B, C, H, W] (PyTorch layout).  Returns [B, num_classes] f32."""
    convs = params["convs"]
    n_layers = len(convs)
    B, C0, H, W = inputs_nchw.shape
    HW = H * W
    BHW = B * HW
    K = convs[0]["w_main"].shape[0]
    kk = K * K
    num_classes = params["b_cls"].shape[0]
    assert padding * W + padding < _LANE_PAD
    # TODO(synk): only stride-1 'same' convolutions are implemented (the synthetic
    # backbone uses stride 1 everywhere); strided layers would need different indexing.

    if layer_noise is None:
        layer_noise = [None] * n_layers

    cinp0 = convs[0]["w_main_k"].shape[1] // kk
    # image → [C0, B*HW] (lane = b*HW + h*W + w), channel-pad to 8 sublanes, bf16
    x = jnp.transpose(inputs_nchw, (1, 0, 2, 3)).reshape(C0, BHW)
    x = jnp.pad(x, ((0, cinp0 - C0), (0, 0))).astype(jnp.bfloat16)

    ins = [x, _tap_masks(B, H, W, K, padding)]
    in_specs = [pl.BlockSpec((cinp0, BHW), lambda i: (0, 0)),
                pl.BlockSpec((kk, BHW), lambda i: (0, 0))]
    scratch = []
    cin = C0
    for p, noise in zip(convs, layer_noise):
        cout = p["b_main"].shape[0]
        wk = p["w_main_k"]                                     # [Cout, K*K*CinP] bf16
        cinp = wk.shape[1] // kk
        ins.append(wk)
        in_specs.append(pl.BlockSpec(wk.shape, lambda i: (0, 0)))
        ins.append(_bias_noise_map(p, noise, B, H, W, padding))    # [Cout, B*HW] f32
        in_specs.append(pl.BlockSpec((cout, BHW), lambda i: (0, 0)))
        scratch.append(pltpu.VMEM((cinp, _LANE_PAD + BHW + _LANE_PAD), jnp.bfloat16))
        scratch.append(pltpu.VMEM((kk * cinp, BHW), jnp.bfloat16))
        cin = cout
    c_last = cin
    ins.append(params["w_cls_k"])                              # [C_last*HW, 128] bf16
    in_specs.append(pl.BlockSpec((c_last * HW, _N_PAD), lambda i: (0, 0)))
    ins.append(params["b_cls_k"])                              # [1, 128] f32
    in_specs.append(pl.BlockSpec((1, _N_PAD), lambda i: (0, 0)))
    scratch.append(pltpu.VMEM((B, c_last * HW), jnp.bfloat16))

    out = pl.pallas_call(
        _make_fused_kernel(n_layers, B, H, W, K, padding, _LANE_PAD),
        out_shape=jax.ShapeDtypeStruct((B, _N_PAD), jnp.float32),
        grid=(1,),
        in_specs=in_specs,
        out_specs=pl.BlockSpec((B, _N_PAD), lambda i: (0, 0)),
        scratch_shapes=scratch,
        compiler_params=pltpu.CompilerParams(dimension_semantics=("arbitrary",)),
    )(*ins)
    return out[:, :num_classes]


# ----------------------------- params / reference ------------------------------

def init_noise_efficientnet(key, forward_embedding_size=3, num_classes=100,
                            in_channels=3, spatial=16, conv_channels=(8, 16),
                            kernel_size=3, padding=1):
    assert num_classes <= _N_PAD
    F = forward_embedding_size
    K = kernel_size
    params = {"convs": []}
    cin = in_channels
    for li, cout in enumerate(conv_channels):
        k1, k2, k3, k4 = jax.random.split(jax.random.fold_in(key, li), 4)
        w_main = 0.1 * jax.random.normal(k1, (K, K, cin, cout), jnp.float32)
        b_main = 0.1 * jax.random.normal(k2, (cout,), jnp.float32)
        w_extra = 0.1 * jax.random.normal(k3, (cout, K, K, F), jnp.float32)
        b_extra = 0.1 * jax.random.normal(k4, (cout,), jnp.float32)
        cinp = _round8(cin)
        # dense im2col weight [Cout, K*K*CinP] (channel axis zero-padded to 8), bf16
        wk = jnp.transpose(w_main, (3, 0, 1, 2))               # [Cout, K, K, Cin]
        wk = jnp.pad(wk, ((0, 0), (0, 0), (0, 0), (0, cinp - cin)))
        wk = wk.reshape(cout, K * K * cinp).astype(jnp.bfloat16)
        params["convs"].append(dict(w_main=w_main, b_main=b_main,
                                    w_extra=w_extra, b_extra=b_extra, w_main_k=wk))
        cin = cout
    d_flat = conv_channels[-1] * spatial * spatial
    kc1, kc2 = jax.random.split(jax.random.fold_in(key, 1000))
    w_cls = 0.02 * jax.random.normal(kc1, (d_flat, num_classes), jnp.float32)
    b_cls = 0.02 * jax.random.normal(kc2, (num_classes,), jnp.float32)
    params["w_cls"] = w_cls
    params["b_cls"] = b_cls
    # flat classifier weight: rows are already in NCHW flatten order (c*HW + hw);
    # class axis zero-padded to one full 128-lane tile; bf16.
    params["w_cls_k"] = jnp.pad(
        w_cls, ((0, 0), (0, _N_PAD - num_classes))).astype(jnp.bfloat16)
    params["b_cls_k"] = jnp.pad(
        b_cls, (0, _N_PAD - num_classes)).reshape(1, _N_PAD).astype(jnp.float32)
    return params


def reference_forward(params, inputs_nchw, layer_noise=None, *, padding=1):
    """Pure-JAX f32 reimplementation of the PyTorch forward (for checking the kernel)."""
    convs = params["convs"]
    if layer_noise is None:
        layer_noise = [None] * len(convs)
    x = inputs_nchw
    for p, noise in zip(convs, layer_noise):
        B, _, H, W = x.shape
        w_oihw = jnp.transpose(p["w_main"], (3, 2, 0, 1))
        main = lax.conv_general_dilated(
            x, w_oihw, (1, 1), [(padding, padding), (padding, padding)],
            dimension_numbers=("NCHW", "OIHW", "NCHW"))
        main = main + p["b_main"][None, :, None, None]
        Cout, K, _, F = p["w_extra"].shape
        if noise is None:
            noise = jnp.zeros((B, Cout * F), jnp.float32)
        extra_outs = []
        for c in range(Cout):
            e = noise[:, c * F:(c + 1) * F]
            e_img = jnp.broadcast_to(e[:, :, None, None], (B, F, H, W))
            we = jnp.transpose(p["w_extra"][c], (2, 0, 1))[None]        # [1, F, K, K]
            eo = lax.conv_general_dilated(
                e_img, we, (1, 1), [(padding, padding), (padding, padding)],
                dimension_numbers=("NCHW", "OIHW", "NCHW"))
            extra_outs.append(eo[:, 0] + p["b_extra"][c])
        x = main + jnp.stack(extra_outs, axis=1)
    flat = x.reshape(x.shape[0], -1)                                    # NCHW flatten
    return flat @ params["w_cls"] + params["b_cls"]


if __name__ == "__main__":
    key = jax.random.PRNGKey(0)
    pkey, xkey, nkey = jax.random.split(key, 3)
    params = init_noise_efficientnet(pkey)
    x = jax.random.normal(xkey, (2, 3, 16, 16), jnp.float32)            # [B, C, H, W]

    fwd = jax.jit(noise_efficientnet_forward)

    # default path (layer_noise=None -> zero extra inputs)
    out = jax.block_until_ready(fwd(params, x, None))
    assert out.shape == (2, 100) and out.dtype == jnp.float32
    ref = reference_forward(params, x, None)
    err = float(jnp.max(jnp.abs(out - ref)))
    assert err < 0.1, f"mismatch vs reference (layer_noise=None): {err}"

    # noisy path (exercises the extra-conv contribution)
    noise = [0.1 * jax.random.normal(jax.random.fold_in(nkey, i), (2, c * 3), jnp.float32)
             for i, c in enumerate((8, 16))]
    out2 = jax.block_until_ready(fwd(params, x, noise))
    ref2 = reference_forward(params, x, noise)
    err2 = float(jnp.max(jnp.abs(out2 - ref2)))
    assert err2 < 0.1, f"mismatch vs reference (with layer_noise): {err2}"

    print("KERNEL_OK")
</pallas_src>

<mosaic_0001>
module attributes {stable_mosaic.version = 11 : i64} {
  func.func @kernel(%arg0: i32, %arg1: memref<8x512xbf16, #tpu.memory_space<vmem>>, %arg2: memref<9x512xbf16, #tpu.memory_space<vmem>>, %arg3: memref<8x72xbf16, #tpu.memory_space<vmem>>, %arg4: memref<8x512xf32, #tpu.memory_space<vmem>>, %arg5: memref<16x72xbf16, #tpu.memory_space<vmem>>, %arg6: memref<16x512xf32, #tpu.memory_space<vmem>>, %arg7: memref<4096x128xbf16, #tpu.memory_space<vmem>>, %arg8: memref<1x128xf32, #tpu.memory_space<vmem>>, %arg9: memref<2x128xf32, #tpu.memory_space<vmem>>, %arg10: memref<8x768xbf16, #tpu.memory_space<vmem>>, %arg11: memref<72x512xbf16, #tpu.memory_space<vmem>>, %arg12: memref<8x768xbf16, #tpu.memory_space<vmem>>, %arg13: memref<72x512xbf16, #tpu.memory_space<vmem>>, %arg14: memref<2x4096xbf16, #tpu.memory_space<vmem>>) attributes {dimension_semantics = [#tpu.dimension_semantics<arbitrary>], iteration_bounds = array<i64: 1>, scalar_prefetch = 0 : i64, scratch_operands = 5 : i64, tpu.core_type = #tpu.core_type<tc>, window_params = [{pipeline_mode = #tpu.pipeline_mode<synchronous>, transform_indices = @transform_0, window_bounds = array<i64: 8, 512>}, {pipeline_mode = #tpu.pipeline_mode<synchronous>, transform_indices = @transform_1, window_bounds = array<i64: 9, 512>}, {pipeline_mode = #tpu.pipeline_mode<synchronous>, transform_indices = @transform_2, window_bounds = array<i64: 8, 72>}, {pipeline_mode = #tpu.pipeline_mode<synchronous>, transform_indices = @transform_3, window_bounds = array<i64: 8, 512>}, {pipeline_mode = #tpu.pipeline_mode<synchronous>, transform_indices = @transform_4, window_bounds = array<i64: 16, 72>}, {pipeline_mode = #tpu.pipeline_mode<synchronous>, transform_indices = @transform_5, window_bounds = array<i64: 16, 512>}, {pipeline_mode = #tpu.pipeline_mode<synchronous>, transform_indices = @transform_6, window_bounds = array<i64: 4096, 128>}, {pipeline_mode = #tpu.pipeline_mode<synchronous>, transform_indices = @transform_7, window_bounds = array<i64: 1, 128>}, {pipeline_mode = #tpu.pipeline_mode<synchronous>, transform_indices = @transform_8, window_bounds = array<i64: 2, 128>}]} {
    %c0 = arith.constant 0 : index
    %c0_0 = arith.constant 0 : index
    %0 = vector.load %arg1[%c0, %c0_0] : memref<8x512xbf16, #tpu.memory_space<vmem>>, vector<8x512xbf16>
    %cst = arith.constant 0.000000e+00 : bf16
    %1 = vector.broadcast %cst : bf16 to vector<8x128xbf16>
    %c0_1 = arith.constant 0 : index
    %c0_2 = arith.constant 0 : index
    %2 = vector.load %arg10[%c0_1, %c0_2] : memref<8x768xbf16, #tpu.memory_space<vmem>>, vector<8x128xbf16>
    tpu.vector_store %arg10[%c0_1, %c0_2], %1 {strides = array<i32>} : memref<8x768xbf16, #tpu.memory_space<vmem>>, vector<8x128xbf16>,
    %cst_3 = arith.constant 0.000000e+00 : bf16
    %3 = vector.broadcast %cst_3 : bf16 to vector<8x128xbf16>
    %c0_4 = arith.constant 0 : index
    %c640 = arith.constant 640 : index
    %4 = vector.load %arg10[%c0_4, %c640] : memref<8x768xbf16, #tpu.memory_space<vmem>>, vector<8x128xbf16>
    tpu.vector_store %arg10[%c0_4, %c640], %3 {strides = array<i32>} : memref<8x768xbf16, #tpu.memory_space<vmem>>, vector<8x128xbf16>,
    %c0_5 = arith.constant 0 : index
    %c128 = arith.constant 128 : index
    %5 = vector.load %arg10[%c0_5, %c128] : memref<8x768xbf16, #tpu.memory_space<vmem>>, vector<8x512xbf16>
    tpu.vector_store %arg10[%c0_5, %c128], %0 {strides = array<i32>} : memref<8x768xbf16, #tpu.memory_space<vmem>>, vector<8x512xbf16>,
    %c0_6 = arith.constant 0 : index
    %c111 = arith.constant 111 : index
    %6 = vector.load %arg10[%c0_6, %c111] : memref<8x768xbf16, #tpu.memory_space<vmem>>, vector<8x512xbf16>
    %c0_7 = arith.constant 0 : index
    %c0_8 = arith.constant 0 : index
    %7 = vector.load %arg2[%c0_7, %c0_8] : memref<9x512xbf16, #tpu.memory_space<vmem>>, vector<1x512xbf16>
    %8 = vector.broadcast %7 : vector<1x512xbf16> to vector<8x512xbf16>
    %9 = arith.mulf %6, %8 : vector<8x512xbf16>
    %c0_9 = arith.constant 0 : index
    %c0_10 = arith.constant 0 : index
    %10 = vector.load %arg11[%c0_9, %c0_10] : memref<72x512xbf16, #tpu.memory_space<vmem>>, vector<8x512xbf16>
    tpu.vector_store %arg11[%c0_9, %c0_10], %9 {strides = array<i32>} : memref<72x512xbf16, #tpu.memory_space<vmem>>, vector<8x512xbf16>,
    %c0_11 = arith.constant 0 : index
    %c112 = arith.constant 112 : index
    %11 = vector.load %arg10[%c0_11, %c112] : memref<8x768xbf16, #tpu.memory_space<vmem>>, vector<8x512xbf16>
    %c1 = arith.constant 1 : index
    %c0_12 = arith.constant 0 : index
    %12 = vector.load %arg2[%c1, %c0_12] : memref<9x512xbf16, #tpu.memory_space<vmem>>, vector<1x512xbf16>
    %13 = vector.broadcast %12 : vector<1x512xbf16> to vector<8x512xbf16>
    %14 = arith.mulf %11, %13 : vector<8x512xbf16>
    %c8 = arith.constant 8 : index
    %c0_13 = arith.constant 0 : index
    %15 = vector.load %arg11[%c8, %c0_13] : memref<72x512xbf16, #tpu.memory_space<vmem>>, vector<8x512xbf16>
    tpu.vector_store %arg11[%c8, %c0_13], %14 {strides = array<i32>} : memref<72x512xbf16, #tpu.memory_space<vmem>>, vector<8x512xbf16>,
    %c0_14 = arith.constant 0 : index
    %c113 = arith.constant 113 : index
    %16 = vector.load %arg10[%c0_14, %c113] : memref<8x768xbf16, #tpu.memory_space<vmem>>, vector<8x512xbf16>
    %c2 = arith.constant 2 : index
    %c0_15 = arith.constant 0 : index
    %17 = vector.load %arg2[%c2, %c0_15] : memref<9x512xbf16, #tpu.memory_space<vmem>>, vector<1x512xbf16>
    %18 = vector.broadcast %17 : vector<1x512xbf16> to vector<8x512xbf16>
    %19 = arith.mulf %16, %18 : vector<8x512xbf16>
    %c16 = arith.constant 16 : index
    %c0_16 = arith.constant 0 : index
    %20 = vector.load %arg11[%c16, %c0_16] : memref<72x512xbf16, #tpu.memory_space<vmem>>, vector<8x512xbf16>
    tpu.vector_store %arg11[%c16, %c0_16], %19 {strides = array<i32>} : memref<72x512xbf16, #tpu.memory_space<vmem>>, vector<8x512xbf16>,
    %c0_17 = arith.constant 0 : index
    %c127 = arith.constant 127 : index
    %21 = vector.load %arg10[%c0_17, %c127] : memref<8x768xbf16, #tpu.memory_space<vmem>>, vector<8x512xbf16>
    %c3 = arith.constant 3 : index
    %c0_18 = arith.constant 0 : index
    %22 = vector.load %arg2[%c3, %c0_18] : memref<9x512xbf16, #tpu.memory_space<vmem>>, vector<1x512xbf16>
    %23 = vector.broadcast %22 : vector<1x512xbf16> to vector<8x512xbf16>
    %24 = arith.mulf %21, %23 : vector<8x512xbf16>
    %c24 = arith.constant 24 : index
    %c0_19 = arith.constant 0 : index
    %25 = vector.load %arg11[%c24, %c0_19] : memref<72x512xbf16, #tpu.memory_space<vmem>>, vector<8x512xbf16>
    tpu.vector_store %arg11[%c24, %c0_19], %24 {strides = array<i32>} : memref<72x512xbf16, #tpu.memory_space<vmem>>, vector<8x512xbf16>,
    %c0_20 = arith.constant 0 : index
    %c128_21 = arith.constant 128 : index
    %26 = vector.load %arg10[%c0_20, %c128_21] : memref<8x768xbf16, #tpu.memory_space<vmem>>, vector<8x512xbf16>
    %c32 = arith.constant 32 : index
    %c0_22 = arith.constant 0 : index
    %27 = vector.load %arg11[%c32, %c0_22] : memref<72x512xbf16, #tpu.memory_space<vmem>>, vector<8x512xbf16>
    tpu.vector_store %arg11[%c32, %c0_22], %26 {strides = array<i32>} : memref<72x512xbf16, #tpu.memory_space<vmem>>, vector<8x512xbf16>,
    %c0_23 = arith.constant 0 : index
    %c129 = arith.constant 129 : index
    %28 = vector.load %arg10[%c0_23, %c129] : memref<8x768xbf16, #tpu.memory_space<vmem>>, vector<8x512xbf16>
    %c5 = arith.constant 5 : index
    %c0_24 = arith.constant 0 : index
    %29 = vector.load %arg2[%c5, %c0_24] : memref<9x512xbf16, #tpu.memory_space<vmem>>, vector<1x512xbf16>
    %30 = vector.broadcast %29 : vector<1x512xbf16> to vector<8x512xbf16>
    %31 = arith.mulf %28, %30 : vector<8x512xbf16>
    %c40 = arith.constant 40 : index
    %c0_25 = arith.constant 0 : index
    %32 = vector.load %arg11[%c40, %c0_25] : memref<72x512xbf16, #tpu.memory_space<vmem>>, vector<8x512xbf16>
    tpu.vector_store %arg11[%c40, %c0_25], %31 {strides = array<i32>} : memref<72x512xbf16, #tpu.memory_space<vmem>>, vector<8x512xbf16>,
    %c0_26 = arith.constant 0 : index
    %c143 = arith.constant 143 : index
    %33 = vector.load %arg10[%c0_26, %c143] : memref<8x768xbf16, #tpu.memory_space<vmem>>, vector<8x512xbf16>
    %c6 = arith.constant 6 : index
    %c0_27 = arith.constant 0 : index
    %34 = vector.load %arg2[%c6, %c0_27] : memref<9x512xbf16, #tpu.memory_space<vmem>>, vector<1x512xbf16>
    %35 = vector.broadcast %34 : vector<1x512xbf16> to vector<8x512xbf16>
    %36 = arith.mulf %33, %35 : vector<8x512xbf16>
    %c48 = arith.constant 48 : index
    %c0_28 = arith.constant 0 : index
    %37 = vector.load %arg11[%c48, %c0_28] : memref<72x512xbf16, #tpu.memory_space<vmem>>, vector<8x512xbf16>
    tpu.vector_store %arg11[%c48, %c0_28], %36 {strides = array<i32>} : memref<72x512xbf16, #tpu.memory_space<vmem>>, vector<8x512xbf16>,
    %c0_29 = arith.constant 0 : index
    %c144 = arith.constant 144 : index
    %38 = vector.load %arg10[%c0_29, %c144] : memref<8x768xbf16, #tpu.memory_space<vmem>>, vector<8x512xbf16>
    %c7 = arith.constant 7 : index
    %c0_30 = arith.constant 0 : index
    %39 = vector.load %arg2[%c7, %c0_30] : memref<9x512xbf16, #tpu.memory_space<vmem>>, vector<1x512xbf16>
    %40 = vector.broadcast %39 : vector<1x512xbf16> to vector<8x512xbf16>
    %41 = arith.mulf %38, %40 : vector<8x512xbf16>
    %c56 = arith.constant 56 : index
    %c0_31 = arith.constant 0 : index
    %42 = vector.load %arg11[%c56, %c0_31] : memref<72x512xbf16, #tpu.memory_space<vmem>>, vector<8x512xbf16>
    tpu.vector_store %arg11[%c56, %c0_31], %41 {strides = array<i32>} : memref<72x512xbf16, #tpu.memory_space<vmem>>, vector<8x512xbf16>,
    %c0_32 = arith.constant 0 : index
    %c145 = arith.constant 145 : index
    %43 = vector.load %arg10[%c0_32, %c145] : memref<8x768xbf16, #tpu.memory_space<vmem>>, vector<8x512xbf16>
    %c8_33 = arith.constant 8 : index
    %c0_34 = arith.constant 0 : index
    %44 = vector.load %arg2[%c8_33, %c0_34] : memref<9x512xbf16, #tpu.memory_space<vmem>>, vector<1x512xbf16>
    %45 = vector.broadcast %44 : vector<1x512xbf16> to vector<8x512xbf16>
    %46 = arith.mulf %43, %45 : vector<8x512xbf16>
    %c64 = arith.constant 64 : index
    %c0_35 = arith.constant 0 : index
    %47 = vector.load %arg11[%c64, %c0_35] : memref<72x512xbf16, #tpu.memory_space<vmem>>, vector<8x512xbf16>
    tpu.vector_store %arg11[%c64, %c0_35], %46 {strides = array<i32>} : memref<72x512xbf16, #tpu.memory_space<vmem>>, vector<8x512xbf16>,
    %c0_36 = arith.constant 0 : index
    %c0_37 = arith.constant 0 : index
    %48 = vector.load %arg4[%c0_36, %c0_37] : memref<8x512xf32, #tpu.memory_space<vmem>>, vector<8x512xf32>
    %c0_38 = arith.constant 0 : index
    %c0_39 = arith.constant 0 : index
    %49 = vector.load %arg3[%c0_38, %c0_39] : memref<8x72xbf16, #tpu.memory_space<vmem>>, vector<8x72xbf16>
    %c0_40 = arith.constant 0 : index
    %c0_41 = arith.constant 0 : index
    %50 = vector.load %arg11[%c0_40, %c0_41] : memref<72x512xbf16, #tpu.memory_space<vmem>>, vector<72x512xbf16>
    %cst_42 = arith.constant dense<0.000000e+00> : vector<8x512xf32>
    %51 = tpu.matmul %49, %50, %cst_42 {dimension_numbers = #tpu.dot_dimension_numbers<[1], [0], [0], [1], [0, 0, 1, 1], [], []>} : vector<8x72xbf16>, vector<72x512xbf16>, vector<8x512xf32> -> vector<8x512xf32>
    %52 = arith.addf %48, %51 : vector<8x512xf32>
    %53 = arith.truncf %52 : vector<8x512xf32> to vector<8x512xbf16>
    %cst_43 = arith.constant 0.000000e+00 : bf16
    %54 = vector.broadcast %cst_43 : bf16 to vector<8x128xbf16>
    %c0_44 = arith.constant 0 : index
    %c0_45 = arith.constant 0 : index
    %55 = vector.load %arg12[%c0_44, %c0_45] : memref<8x768xbf16, #tpu.memory_space<vmem>>, vector<8x128xbf16>
    tpu.vector_store %arg12[%c0_44, %c0_45], %54 {strides = array<i32>} : memref<8x768xbf16, #tpu.memory_space<vmem>>, vector<8x128xbf16>,
    %cst_46 = arith.constant 0.000000e+00 : bf16
    %56 = vector.broadcast %cst_46 : bf16 to vector<8x128xbf16>
    %c0_47 = arith.constant 0 : index
    %c640_48 = arith.constant 640 : index
    %57 = vector.load %arg12[%c0_47, %c640_48] : memref<8x768xbf16, #tpu.memory_space<vmem>>, vector<8x128xbf16>
    tpu.vector_store %arg12[%c0_47, %c640_48], %56 {strides = array<i32>} : memref<8x768xbf16, #tpu.memory_space<vmem>>, vector<8x128xbf16>,
    %c0_49 = arith.constant 0 : index
    %c128_50 = arith.constant 128 : index
    %58 = vector.load %arg12[%c0_49, %c128_50] : memref<8x768xbf16, #tpu.memory_space<vmem>>, vector<8x512xbf16>
    tpu.vector_store %arg12[%c0_49, %c128_50], %53 {strides = array<i32>} : memref<8x768xbf16, #tpu.memory_space<vmem>>, vector<8x512xbf16>,
    %c0_51 = arith.constant 0 : index
    %c111_52 = arith.constant 111 : index
    %59 = vector.load %arg12[%c0_51, %c111_52] : memref<8x768xbf16, #tpu.memory_space<vmem>>, vector<8x512xbf16>
    %c0_53 = arith.constant 0 : index
    %c0_54 = arith.constant 0 : index
    %60 = vector.load %arg2[%c0_53, %c0_54] : memref<9x512xbf16, #tpu.memory_space<vmem>>, vector<1x512xbf16>
    %61 = vector.broadcast %60 : vector<1x512xbf16> to vector<8x512xbf16>
    %62 = arith.mulf %59, %61 : vector<8x512xbf16>
    %c0_55 = arith.constant 0 : index
    %c0_56 = arith.constant 0 : index
    %63 = vector.load %arg13[%c0_55, %c0_56] : memref<72x512xbf16, #tpu.memory_space<vmem>>, vector<8x512xbf16>
    tpu.vector_store %arg13[%c0_55, %c0_56], %62 {strides = array<i32>} : memref<72x512xbf16, #tpu.memory_space<vmem>>, vector<8x512xbf16>,
    %c0_57 = arith.constant 0 : index
    %c112_58 = arith.constant 112 : index
    %64 = vector.load %arg12[%c0_57, %c112_58] : memref<8x768xbf16, #tpu.memory_space<vmem>>, vector<8x512xbf16>
    %c1_59 = arith.constant 1 : index
    %c0_60 = arith.constant 0 : index
    %65 = vector.load %arg2[%c1_59, %c0_60] : memref<9x512xbf16, #tpu.memory_space<vmem>>, vector<1x512xbf16>
    %66 = vector.broadcast %65 : vector<1x512xbf16> to vector<8x512xbf16>
    %67 = arith.mulf %64, %66 : vector<8x512xbf16>
    %c8_61 = arith.constant 8 : index
    %c0_62 = arith.constant 0 : index
    %68 = vector.load %arg13[%c8_61, %c0_62] : memref<72x512xbf16, #tpu.memory_space<vmem>>, vector<8x512xbf16>
    tpu.vector_store %arg13[%c8_61, %c0_62], %67 {strides = array<i32>} : memref<72x512xbf16, #tpu.memory_space<vmem>>, vector<8x512xbf16>,
    %c0_63 = arith.constant 0 : index
    %c113_64 = arith.constant 113 : index
    %69 = vector.load %arg12[%c0_63, %c113_64] : memref<8x768xbf16, #tpu.memory_space<vmem>>, vector<8x512xbf16>
    %c2_65 = arith.constant 2 : index
    %c0_66 = arith.constant 0 : index
    %70 = vector.load %arg2[%c2_65, %c0_66] : memref<9x512xbf16, #tpu.memory_space<vmem>>, vector<1x512xbf16>
    %71 = vector.broadcast %70 : vector<1x512xbf16> to vector<8x512xbf16>
    %72 = arith.mulf %69, %71 : vector<8x512xbf16>
    %c16_67 = arith.constant 16 : index
    %c0_68 = arith.constant 0 : index
    %73 = vector.load %arg13[%c16_67, %c0_68] : memref<72x512xbf16, #tpu.memory_space<vmem>>, vector<8x512xbf16>
    tpu.vector_store %arg13[%c16_67, %c0_68], %72 {strides = array<i32>} : memref<72x512xbf16, #tpu.memory_space<vmem>>, vector<8x512xbf16>,
    %c0_69 = arith.constant 0 : index
    %c127_70 = arith.constant 127 : index
    %74 = vector.load %arg12[%c0_69, %c127_70] : memref<8x768xbf16, #tpu.memory_space<vmem>>, vector<8x512xbf16>
    %c3_71 = arith.constant 3 : index
    %c0_72 = arith.constant 0 : index
    %75 = vector.load %arg2[%c3_71, %c0_72] : memref<9x512xbf16, #tpu.memory_space<vmem>>, vector<1x512xbf16>
    %76 = vector.broadcast %75 : vector<1x512xbf16> to vector<8x512xbf16>
    %77 = arith.mulf %74, %76 : vector<8x512xbf16>
    %c24_73 = arith.constant 24 : index
    %c0_74 = arith.constant 0 : index
    %78 = vector.load %arg13[%c24_73, %c0_74] : memref<72x512xbf16, #tpu.memory_space<vmem>>, vector<8x512xbf16>
    tpu.vector_store %arg13[%c24_73, %c0_74], %77 {strides = array<i32>} : memref<72x512xbf16, #tpu.memory_space<vmem>>, vector<8x512xbf16>,
    %c0_75 = arith.constant 0 : index
    %c128_76 = arith.constant 128 : index
    %79 = vector.load %arg12[%c0_75, %c128_76] : memref<8x768xbf16, #tpu.memory_space<vmem>>, vector<8x512xbf16>
    %c32_77 = arith.constant 32 : index
    %c0_78 = arith.constant 0 : index
    %80 = vector.load %arg13[%c32_77, %c0_78] : memref<72x512xbf16, #tpu.memory_space<vmem>>, vector<8x512xbf16>
    tpu.vector_store %arg13[%c32_77, %c0_78], %79 {strides = array<i32>} : memref<72x512xbf16, #tpu.memory_space<vmem>>, vector<8x512xbf16>,
    %c0_79 = arith.constant 0 : index
    %c129_80 = arith.constant 129 : index
    %81 = vector.load %arg12[%c0_79, %c129_80] : memref<8x768xbf16, #tpu.memory_space<vmem>>, vector<8x512xbf16>
    %c5_81 = arith.constant 5 : index
    %c0_82 = arith.constant 0 : index
    %82 = vector.load %arg2[%c5_81, %c0_82] : memref<9x512xbf16, #tpu.memory_space<vmem>>, vector<1x512xbf16>
    %83 = vector.broadcast %82 : vector<1x512xbf16> to vector<8x512xbf16>
    %84 = arith.mulf %81, %83 : vector<8x512xbf16>
    %c40_83 = arith.constant 40 : index
    %c0_84 = arith.constant 0 : index
    %85 = vector.load %arg13[%c40_83, %c0_84] : memref<72x512xbf16, #tpu.memory_space<vmem>>, vector<8x512xbf16>
    tpu.vector_store %arg13[%c40_83, %c0_84], %84 {strides = array<i32>} : memref<72x512xbf16, #tpu.memory_space<vmem>>, vector<8x512xbf16>,
    %c0_85 = arith.constant 0 : index
    %c143_86 = arith.constant 143 : index
    %86 = vector.load %arg12[%c0_85, %c143_86] : memref<8x768xbf16, #tpu.memory_space<vmem>>, vector<8x512xbf16>
    %c6_87 = arith.constant 6 : index
    %c0_88 = arith.constant 0 : index
    %87 = vector.load %arg2[%c6_87, %c0_88] : memref<9x512xbf16, #tpu.memory_space<vmem>>, vector<1x512xbf16>
    %88 = vector.broadcast %87 : vector<1x512xbf16> to vector<8x512xbf16>
    %89 = arith.mulf %86, %88 : vector<8x512xbf16>
    %c48_89 = arith.constant 48 : index
    %c0_90 = arith.constant 0 : index
    %90 = vector.load %arg13[%c48_89, %c0_90] : memref<72x512xbf16, #tpu.memory_space<vmem>>, vector<8x512xbf16>
    tpu.vector_store %arg13[%c48_89, %c0_90], %89 {strides = array<i32>} : memref<72x512xbf16, #tpu.memory_space<vmem>>, vector<8x512xbf16>,
    %c0_91 = arith.constant 0 : index
    %c144_92 = arith.constant 144 : index
    %91 = vector.load %arg12[%c0_91, %c144_92] : memref<8x768xbf16, #tpu.memory_space<vmem>>, vector<8x512xbf16>
    %c7_93 = arith.constant 7 : index
    %c0_94 = arith.constant 0 : index
    %92 = vector.load %arg2[%c7_93, %c0_94] : memref<9x512xbf16, #tpu.memory_space<vmem>>, vector<1x512xbf16>
    %93 = vector.broadcast %92 : vector<1x512xbf16> to vector<8x512xbf16>
    %94 = arith.mulf %91, %93 : vector<8x512xbf16>
    %c56_95 = arith.constant 56 : index
    %c0_96 = arith.constant 0 : index
    %95 = vector.load %arg13[%c56_95, %c0_96] : memref<72x512xbf16, #tpu.memory_space<vmem>>, vector<8x512xbf16>
    tpu.vector_store %arg13[%c56_95, %c0_96], %94 {strides = array<i32>} : memref<72x512xbf16, #tpu.memory_space<vmem>>, vector<8x512xbf16>,
    %c0_97 = arith.constant 0 : index
    %c145_98 = arith.constant 145 : index
    %96 = vector.load %arg12[%c0_97, %c145_98] : memref<8x768xbf16, #tpu.memory_space<vmem>>, vector<8x512xbf16>
    %c8_99 = arith.constant 8 : index
    %c0_100 = arith.constant 0 : index
    %97 = vector.load %arg2[%c8_99, %c0_100] : memref<9x512xbf16, #tpu.memory_space<vmem>>, vector<1x512xbf16>
    %98 = vector.broadcast %97 : vector<1x512xbf16> to vector<8x512xbf16>
    %99 = arith.mulf %96, %98 : vector<8x512xbf16>
    %c64_101 = arith.constant 64 : index
    %c0_102 = arith.constant 0 : index
    %100 = vector.load %arg13[%c64_101, %c0_102] : memref<72x512xbf16, #tpu.memory_space<vmem>>, vector<8x512xbf16>
    tpu.vector_store %arg13[%c64_101, %c0_102], %99 {strides = array<i32>} : memref<72x512xbf16, #tpu.memory_space<vmem>>, vector<8x512xbf16>,
    %c0_103 = arith.constant 0 : index
    %c0_104 = arith.constant 0 : index
    %101 = vector.load %arg6[%c0_103, %c0_104] : memref<16x512xf32, #tpu.memory_space<vmem>>, vector<16x512xf32>
    %c0_105 = arith.constant 0 : index
    %c0_106 = arith.constant 0 : index
    %102 = vector.load %arg5[%c0_105, %c0_106] : memref<16x72xbf16, #tpu.memory_space<vmem>>, vector<16x72xbf16>
    %c0_107 = arith.constant 0 : index
    %c0_108 = arith.constant 0 : index
    %103 = vector.load %arg13[%c0_107, %c0_108] : memref<72x512xbf16, #tpu.memory_space<vmem>>, vector<72x512xbf16>
    %cst_109 = arith.constant dense<0.000000e+00> : vector<16x512xf32>
    %104 = tpu.matmul %102, %103, %cst_109 {dimension_numbers = #tpu.dot_dimension_numbers<[1], [0], [0], [1], [0, 0, 1, 1], [], []>} : vector<16x72xbf16>, vector<72x512xbf16>, vector<16x512xf32> -> vector<16x512xf32>
    %105 = arith.addf %101, %104 : vector<16x512xf32>
    %106 = arith.truncf %105 : vector<16x512xf32> to vector<16x512xbf16>
    %107 = vector.extract_strided_slice %106 {offsets = [0, 0], sizes = [1, 256], strides = [1, 1]} : vector<16x512xbf16> to vector<1x256xbf16>
    %c0_110 = arith.constant 0 : index
    %c0_111 = arith.constant 0 : index
    %108 = vector.load %arg14[%c0_110, %c0_111] : memref<2x4096xbf16, #tpu.memory_space<vmem>>, vector<1x256xbf16>
    tpu.vector_store %arg14[%c0_110, %c0_111], %107 {strides = array<i32>} : memref<2x4096xbf16, #tpu.memory_space<vmem>>, vector<1x256xbf16>,
    %109 = vector.extract_strided_slice %106 {offsets = [1, 0], sizes = [1, 256], strides = [1, 1]} : vector<16x512xbf16> to vector<1x256xbf16>
    %c0_112 = arith.constant 0 : index
    %c256 = arith.constant 256 : index
    %110 = vector.load %arg14[%c0_112, %c256] : memref<2x4096xbf16, #tpu.memory_space<vmem>>, vector<1x256xbf16>
    tpu.vector_store %arg14[%c0_112, %c256], %109 {strides = array<i32>} : memref<2x4096xbf16, #tpu.memory_space<vmem>>, vector<1x256xbf16>,
    %111 = vector.extract_strided_slice %106 {offsets = [2, 0], sizes = [1, 256], strides = [1, 1]} : vector<16x512xbf16> to vector<1x256xbf16>
    %c0_113 = arith.constant 0 : index
    %c512 = arith.constant 512 : index
    %112 = vector.load %arg14[%c0_113, %c512] : memref<2x4096xbf16, #tpu.memory_space<vmem>>, vector<1x256xbf16>
    tpu.vector_store %arg14[%c0_113, %c512], %111 {strides = array<i32>} : memref<2x4096xbf16, #tpu.memory_space<vmem>>, vector<1x256xbf16>,
    %113 = vector.extract_strided_slice %106 {offsets = [3, 0], sizes = [1, 256], strides = [1, 1]} : vector<16x512xbf16> to vector<1x256xbf16>
    %c0_114 = arith.constant 0 : index
    %c768 = arith.constant 768 : index
    %114 = vector.load %arg14[%c0_114, %c768] : memref<2x4096xbf16, #tpu.memory_space<vmem>>, vector<1x256xbf16>
    tpu.vector_store %arg14[%c0_114, %c768], %113 {strides = array<i32>} : memref<2x4096xbf16, #tpu.memory_space<vmem>>, vector<1x256xbf16>,
    %115 = vector.extract_strided_slice %106 {offsets = [4, 0], sizes = [1, 256], strides = [1, 1]} : vector<16x512xbf16> to vector<1x256xbf16>
    %c0_115 = arith.constant 0 : index
    %c1024 = arith.constant 1024 : index
    %116 = vector.load %arg14[%c0_115, %c1024] : memref<2x4096xbf16, #tpu.memory_space<vmem>>, vector<1x256xbf16>
    tpu.vector_store %arg14[%c0_115, %c1024], %115 {strides = array<i32>} : memref<2x4096xbf16, #tpu.memory_space<vmem>>, vector<1x256xbf16>,
    %117 = vector.extract_strided_slice %106 {offsets = [5, 0], sizes = [1, 256], strides = [1, 1]} : vector<16x512xbf16> to vector<1x256xbf16>
    %c0_116 = arith.constant 0 : index
    %c1280 = arith.constant 1280 : index
    %118 = vector.load %arg14[%c0_116, %c1280] : memref<2x4096xbf16, #tpu.memory_space<vmem>>, vector<1x256xbf16>
    tpu.vector_store %arg14[%c0_116, %c1280], %117 {strides = array<i32>} : memref<2x4096xbf16, #tpu.memory_space<vmem>>, vector<1x256xbf16>,
    %119 = vector.extract_strided_slice %106 {offsets = [6, 0], sizes = [1, 256], strides = [1, 1]} : vector<16x512xbf16> to vector<1x256xbf16>
    %c0_117 = arith.constant 0 : index
    %c1536 = arith.constant 1536 : index
    %120 = vector.load %arg14[%c0_117, %c1536] : memref<2x4096xbf16, #tpu.memory_space<vmem>>, vector<1x256xbf16>
    tpu.vector_store %arg14[%c0_117, %c1536], %119 {strides = array<i32>} : memref<2x4096xbf16, #tpu.memory_space<vmem>>, vector<1x256xbf16>,
    %121 = vector.extract_strided_slice %106 {offsets = [7, 0], sizes = [1, 256], strides = [1, 1]} : vector<16x512xbf16> to vector<1x256xbf16>
    %c0_118 = arith.constant 0 : index
    %c1792 = arith.constant 1792 : index
    %122 = vector.load %arg14[%c0_118, %c1792] : memref<2x4096xbf16, #tpu.memory_space<vmem>>, vector<1x256xbf16>
    tpu.vector_store %arg14[%c0_118, %c1792], %121 {strides = array<i32>} : memref<2x4096xbf16, #tpu.memory_space<vmem>>, vector<1x256xbf16>,
    %123 = vector.extract_strided_slice %106 {offsets = [8, 0], sizes = [1, 256], strides = [1, 1]} : vector<16x512xbf16> to vector<1x256xbf16>
    %c0_119 = arith.constant 0 : index
    %c2048 = arith.constant 2048 : index
    %124 = vector.load %arg14[%c0_119, %c2048] : memref<2x4096xbf16, #tpu.memory_space<vmem>>, vector<1x256xbf16>
    tpu.vector_store %arg14[%c0_119, %c2048], %123 {strides = array<i32>} : memref<2x4096xbf16, #tpu.memory_space<vmem>>, vector<1x256xbf16>,
    %125 = vector.extract_strided_slice %106 {offsets = [9, 0], sizes = [1, 256], strides = [1, 1]} : vector<16x512xbf16> to vector<1x256xbf16>
    %c0_120 = arith.constant 0 : index
    %c2304 = arith.constant 2304 : index
    %126 = vector.load %arg14[%c0_120, %c2304] : memref<2x4096xbf16, #tpu.memory_space<vmem>>, vector<1x256xbf16>
    tpu.vector_store %arg14[%c0_120, %c2304], %125 {strides = array<i32>} : memref<2x4096xbf16, #tpu.memory_space<vmem>>, vector<1x256xbf16>,
    %127 = vector.extract_strided_slice %106 {offsets = [10, 0], sizes = [1, 256], strides = [1, 1]} : vector<16x512xbf16> to vector<1x256xbf16>
    %c0_121 = arith.constant 0 : index
    %c2560 = arith.constant 2560 : index
    %128 = vector.load %arg14[%c0_121, %c2560] : memref<2x4096xbf16, #tpu.memory_space<vmem>>, vector<1x256xbf16>
    tpu.vector_store %arg14[%c0_121, %c2560], %127 {strides = array<i32>} : memref<2x4096xbf16, #tpu.memory_space<vmem>>, vector<1x256xbf16>,
    %129 = vector.extract_strided_slice %106 {offsets = [11, 0], sizes = [1, 256], strides = [1, 1]} : vector<16x512xbf16> to vector<1x256xbf16>
    %c0_122 = arith.constant 0 : index
    %c2816 = arith.constant 2816 : index
    %130 = vector.load %arg14[%c0_122, %c2816] : memref<2x4096xbf16, #tpu.memory_space<vmem>>, vector<1x256xbf16>
    tpu.vector_store %arg14[%c0_122, %c2816], %129 {strides = array<i32>} : memref<2x4096xbf16, #tpu.memory_space<vmem>>, vector<1x256xbf16>,
    %131 = vector.extract_strided_slice %106 {offsets = [12, 0], sizes = [1, 256], strides = [1, 1]} : vector<16x512xbf16> to vector<1x256xbf16>
    %c0_123 = arith.constant 0 : index
    %c3072 = arith.constant 3072 : index
    %132 = vector.load %arg14[%c0_123, %c3072] : memref<2x4096xbf16, #tpu.memory_space<vmem>>, vector<1x256xbf16>
    tpu.vector_store %arg14[%c0_123, %c3072], %131 {strides = array<i32>} : memref<2x4096xbf16, #tpu.memory_space<vmem>>, vector<1x256xbf16>,
    %133 = vector.extract_strided_slice %106 {offsets = [13, 0], sizes = [1, 256], strides = [1, 1]} : vector<16x512xbf16> to vector<1x256xbf16>
    %c0_124 = arith.constant 0 : index
    %c3328 = arith.constant 3328 : index
    %134 = vector.load %arg14[%c0_124, %c3328] : memref<2x4096xbf16, #tpu.memory_space<vmem>>, vector<1x256xbf16>
    tpu.vector_store %arg14[%c0_124, %c3328], %133 {strides = array<i32>} : memref<2x4096xbf16, #tpu.memory_space<vmem>>, vector<1x256xbf16>,
    %135 = vector.extract_strided_slice %106 {offsets = [14, 0], sizes = [1, 256], strides = [1, 1]} : vector<16x512xbf16> to vector<1x256xbf16>
    %c0_125 = arith.constant 0 : index
    %c3584 = arith.constant 3584 : index
    %136 = vector.load %arg14[%c0_125, %c3584] : memref<2x4096xbf16, #tpu.memory_space<vmem>>, vector<1x256xbf16>
    tpu.vector_store %arg14[%c0_125, %c3584], %135 {strides = array<i32>} : memref<2x4096xbf16, #tpu.memory_space<vmem>>, vector<1x256xbf16>,
    %137 = vector.extract_strided_slice %106 {offsets = [15, 0], sizes = [1, 256], strides = [1, 1]} : vector<16x512xbf16> to vector<1x256xbf16>
    %c0_126 = arith.constant 0 : index
    %c3840 = arith.constant 3840 : index
    %138 = vector.load %arg14[%c0_126, %c3840] : memref<2x4096xbf16, #tpu.memory_space<vmem>>, vector<1x256xbf16>
    tpu.vector_store %arg14[%c0_126, %c3840], %137 {strides = array<i32>} : memref<2x4096xbf16, #tpu.memory_space<vmem>>, vector<1x256xbf16>,
    %139 = vector.extract_strided_slice %106 {offsets = [0, 256], sizes = [1, 256], strides = [1, 1]} : vector<16x512xbf16> to vector<1x256xbf16>
    %c1_127 = arith.constant 1 : index
    %c0_128 = arith.constant 0 : index
    %140 = vector.load %arg14[%c1_127, %c0_128] : memref<2x4096xbf16, #tpu.memory_space<vmem>>, vector<1x256xbf16>
    tpu.vector_store %arg14[%c1_127, %c0_128], %139 {strides = array<i32>} : memref<2x4096xbf16, #tpu.memory_space<vmem>>, vector<1x256xbf16>,
    %141 = vector.extract_strided_slice %106 {offsets = [1, 256], sizes = [1, 256], strides = [1, 1]} : vector<16x512xbf16> to vector<1x256xbf16>
    %c1_129 = arith.constant 1 : index
    %c256_130 = arith.constant 256 : index
    %142 = vector.load %arg14[%c1_129, %c256_130] : memref<2x4096xbf16, #tpu.memory_space<vmem>>, vector<1x256xbf16>
    tpu.vector_store %arg14[%c1_129, %c256_130], %141 {strides = array<i32>} : memref<2x4096xbf16, #tpu.memory_space<vmem>>, vector<1x256xbf16>,
    %143 = vector.extract_strided_slice %106 {offsets = [2, 256], sizes = [1, 256], strides = [1, 1]} : vector<16x512xbf16> to vector<1x256xbf16>
    %c1_131 = arith.constant 1 : index
    %c512_132 = arith.constant 512 : index
    %144 = vector.load %arg14[%c1_131, %c512_132] : memref<2x4096xbf16, #tpu.memory_space<vmem>>, vector<1x256xbf16>
    tpu.vector_store %arg14[%c1_131, %c512_132], %143 {strides = array<i32>} : memref<2x4096xbf16, #tpu.memory_space<vmem>>, vector<1x256xbf16>,
    %145 = vector.extract_strided_slice %106 {offsets = [3, 256], sizes = [1, 256], strides = [1, 1]} : vector<16x512xbf16> to vector<1x256xbf16>
    %c1_133 = arith.constant 1 : index
    %c768_134 = arith.constant 768 : index
    %146 = vector.load %arg14[%c1_133, %c768_134] : memref<2x4096xbf16, #tpu.memory_space<vmem>>, vector<1x256xbf16>
    tpu.vector_store %arg14[%c1_133, %c768_134], %145 {strides = array<i32>} : memref<2x4096xbf16, #tpu.memory_space<vmem>>, vector<1x256xbf16>,
    %147 = vector.extract_strided_slice %106 {offsets = [4, 256], sizes = [1, 256], strides = [1, 1]} : vector<16x512xbf16> to vector<1x256xbf16>
    %c1_135 = arith.constant 1 : index
    %c1024_136 = arith.constant 1024 : index
    %148 = vector.load %arg14[%c1_135, %c1024_136] : memref<2x4096xbf16, #tpu.memory_space<vmem>>, vector<1x256xbf16>
    tpu.vector_store %arg14[%c1_135, %c1024_136], %147 {strides = array<i32>} : memref<2x4096xbf16, #tpu.memory_space<vmem>>, vector<1x256xbf16>,
    %149 = vector.extract_strided_slice %106 {offsets = [5, 256], sizes = [1, 256], strides = [1, 1]} : vector<16x512xbf16> to vector<1x256xbf16>
    %c1_137 = arith.constant 1 : index
    %c1280_138 = arith.constant 1280 : index
    %150 = vector.load %arg14[%c1_137, %c1280_138] : memref<2x4096xbf16, #tpu.memory_space<vmem>>, vector<1x256xbf16>
    tpu.vector_store %arg14[%c1_137, %c1280_138], %149 {strides = array<i32>} : memref<2x4096xbf16, #tpu.memory_space<vmem>>, vector<1x256xbf16>,
    %151 = vector.extract_strided_slice %106 {offsets = [6, 256], sizes = [1, 256], strides = [1, 1]} : vector<16x512xbf16> to vector<1x256xbf16>
    %c1_139 = arith.constant 1 : index
    %c1536_140 = arith.constant 1536 : index
    %152 = vector.load %arg14[%c1_139, %c1536_140] : memref<2x4096xbf16, #tpu.memory_space<vmem>>, vector<1x256xbf16>
    tpu.vector_store %arg14[%c1_139, %c1536_140], %151 {strides = array<i32>} : memref<2x4096xbf16, #tpu.memory_space<vmem>>, vector<1x256xbf16>,
    %153 = vector.extract_strided_slice %106 {offsets = [7, 256], sizes = [1, 256], strides = [1, 1]} : vector<16x512xbf16> to vector<1x256xbf16>
    %c1_141 = arith.constant 1 : index
    %c1792_142 = arith.constant 1792 : index
    %154 = vector.load %arg14[%c1_141, %c1792_142] : memref<2x4096xbf16, #tpu.memory_space<vmem>>, vector<1x256xbf16>
    tpu.vector_store %arg14[%c1_141, %c1792_142], %153 {strides = array<i32>} : memref<2x4096xbf16, #tpu.memory_space<vmem>>, vector<1x256xbf16>,
    %155 = vector.extract_strided_slice %106 {offsets = [8, 256], sizes = [1, 256], strides = [1, 1]} : vector<16x512xbf16> to vector<1x256xbf16>
    %c1_143 = arith.constant 1 : index
    %c2048_144 = arith.constant 2048 : index
    %156 = vector.load %arg14[%c1_143, %c2048_144] : memref<2x4096xbf16, #tpu.memory_space<vmem>>, vector<1x256xbf16>
    tpu.vector_store %arg14[%c1_143, %c2048_144], %155 {strides = array<i32>} : memref<2x4096xbf16, #tpu.memory_space<vmem>>, vector<1x256xbf16>,
    %157 = vector.extract_strided_slice %106 {offsets = [9, 256], sizes = [1, 256], strides = [1, 1]} : vector<16x512xbf16> to vector<1x256xbf16>
    %c1_145 = arith.constant 1 : index
    %c2304_146 = arith.constant 2304 : index
    %158 = vector.load %arg14[%c1_145, %c2304_146] : memref<2x4096xbf16, #tpu.memory_space<vmem>>, vector<1x256xbf16>
    tpu.vector_store %arg14[%c1_145, %c2304_146], %157 {strides = array<i32>} : memref<2x4096xbf16, #tpu.memory_space<vmem>>, vector<1x256xbf16>,
    %159 = vector.extract_strided_slice %106 {offsets = [10, 256], sizes = [1, 256], strides = [1, 1]} : vector<16x512xbf16> to vector<1x256xbf16>
    %c1_147 = arith.constant 1 : index
    %c2560_148 = arith.constant 2560 : index
    %160 = vector.load %arg14[%c1_147, %c2560_148] : memref<2x4096xbf16, #tpu.memory_space<vmem>>, vector<1x256xbf16>
    tpu.vector_store %arg14[%c1_147, %c2560_148], %159 {strides = array<i32>} : memref<2x4096xbf16, #tpu.memory_space<vmem>>, vector<1x256xbf16>,
    %161 = vector.extract_strided_slice %106 {offsets = [11, 256], sizes = [1, 256], strides = [1, 1]} : vector<16x512xbf16> to vector<1x256xbf16>
    %c1_149 = arith.constant 1 : index
    %c2816_150 = arith.constant 2816 : index
    %162 = vector.load %arg14[%c1_149, %c2816_150] : memref<2x4096xbf16, #tpu.memory_space<vmem>>, vector<1x256xbf16>
    tpu.vector_store %arg14[%c1_149, %c2816_150], %161 {strides = array<i32>} : memref<2x4096xbf16, #tpu.memory_space<vmem>>, vector<1x256xbf16>,
    %163 = vector.extract_strided_slice %106 {offsets = [12, 256], sizes = [1, 256], strides = [1, 1]} : vector<16x512xbf16> to vector<1x256xbf16>
    %c1_151 = arith.constant 1 : index
    %c3072_152 = arith.constant 3072 : index
    %164 = vector.load %arg14[%c1_151, %c3072_152] : memref<2x4096xbf16, #tpu.memory_space<vmem>>, vector<1x256xbf16>
    tpu.vector_store %arg14[%c1_151, %c3072_152], %163 {strides = array<i32>} : memref<2x4096xbf16, #tpu.memory_space<vmem>>, vector<1x256xbf16>,
    %165 = vector.extract_strided_slice %106 {offsets = [13, 256], sizes = [1, 256], strides = [1, 1]} : vector<16x512xbf16> to vector<1x256xbf16>
    %c1_153 = arith.constant 1 : index
    %c3328_154 = arith.constant 3328 : index
    %166 = vector.load %arg14[%c1_153, %c3328_154] : memref<2x4096xbf16, #tpu.memory_space<vmem>>, vector<1x256xbf16>
    tpu.vector_store %arg14[%c1_153, %c3328_154], %165 {strides = array<i32>} : memref<2x4096xbf16, #tpu.memory_space<vmem>>, vector<1x256xbf16>,
    %167 = vector.extract_strided_slice %106 {offsets = [14, 256], sizes = [1, 256], strides = [1, 1]} : vector<16x512xbf16> to vector<1x256xbf16>
    %c1_155 = arith.constant 1 : index
    %c3584_156 = arith.constant 3584 : index
    %168 = vector.load %arg14[%c1_155, %c3584_156] : memref<2x4096xbf16, #tpu.memory_space<vmem>>, vector<1x256xbf16>
    tpu.vector_store %arg14[%c1_155, %c3584_156], %167 {strides = array<i32>} : memref<2x4096xbf16, #tpu.memory_space<vmem>>, vector<1x256xbf16>,
    %169 = vector.extract_strided_slice %106 {offsets = [15, 256], sizes = [1, 256], strides = [1, 1]} : vector<16x512xbf16> to vector<1x256xbf16>
    %c1_157 = arith.constant 1 : index
    %c3840_158 = arith.constant 3840 : index
    %170 = vector.load %arg14[%c1_157, %c3840_158] : memref<2x4096xbf16, #tpu.memory_space<vmem>>, vector<1x256xbf16>
    tpu.vector_store %arg14[%c1_157, %c3840_158], %169 {strides = array<i32>} : memref<2x4096xbf16, #tpu.memory_space<vmem>>, vector<1x256xbf16>,
    %c0_159 = arith.constant 0 : index
    %c0_160 = arith.constant 0 : index
    %171 = vector.load %arg8[%c0_159, %c0_160] : memref<1x128xf32, #tpu.memory_space<vmem>>, vector<1x128xf32>
    %c0_161 = arith.constant 0 : index
    %c0_162 = arith.constant 0 : index
    %172 = vector.load %arg14[%c0_161, %c0_162] : memref<2x4096xbf16, #tpu.memory_space<vmem>>, vector<2x4096xbf16>
    %c0_163 = arith.constant 0 : index
    %c0_164 = arith.constant 0 : index
    %173 = vector.load %arg7[%c0_163, %c0_164] : memref<4096x128xbf16, #tpu.memory_space<vmem>>, vector<4096x128xbf16>
    %cst_165 = arith.constant dense<0.000000e+00> : vector<2x128xf32>
    %174 = tpu.matmul %172, %173, %cst_165 {dimension_numbers = #tpu.dot_dimension_numbers<[1], [0], [0], [1], [0, 0, 1, 1], [], []>} : vector<2x4096xbf16>, vector<4096x128xbf16>, vector<2x128xf32> -> vector<2x128xf32>
    %175 = vector.broadcast %171 : vector<1x128xf32> to vector<2x128xf32>
    %176 = arith.addf %175, %174 : vector<2x128xf32>
    %c0_166 = arith.constant 0 : index
    %c0_167 = arith.constant 0 : index
    %177 = vector.load %arg9[%c0_166, %c0_167] : memref<2x128xf32, #tpu.memory_space<vmem>>, vector<2x128xf32>
    tpu.vector_store %arg9[%c0_166, %c0_167], %176 {strides = array<i32>} : memref<2x128xf32, #tpu.memory_space<vmem>>, vector<2x128xf32>,
    return
  }
  func.func @transform_0(%arg0: i32) -> (i32, i32) {
    %c0_i32 = arith.constant 0 : i32
    %c0_i32_0 = arith.constant 0 : i32
    %c0_i32_1 = arith.constant 0 : i32
    return %c0_i32, %c0_i32_0 : i32, i32
  }
  func.func @transform_1(%arg0: i32) -> (i32, i32) {
    %c0_i32 = arith.constant 0 : i32
    %c0_i32_0 = arith.constant 0 : i32
    %c0_i32_1 = arith.constant 0 : i32
    return %c0_i32, %c0_i32_0 : i32, i32
  }
  func.func @transform_2(%arg0: i32) -> (i32, i32) {
    %c0_i32 = arith.constant 0 : i32
    %c0_i32_0 = arith.constant 0 : i32
    %c0_i32_1 = arith.constant 0 : i32
    return %c0_i32, %c0_i32_0 : i32, i32
  }
  func.func @transform_3(%arg0: i32) -> (i32, i32) {
    %c0_i32 = arith.constant 0 : i32
    %c0_i32_0 = arith.constant 0 : i32
    %c0_i32_1 = arith.constant 0 : i32
    return %c0_i32, %c0_i32_0 : i32, i32
  }
  func.func @transform_4(%arg0: i32) -> (i32, i32) {
    %c0_i32 = arith.constant 0 : i32
    %c0_i32_0 = arith.constant 0 : i32
    %c0_i32_1 = arith.constant 0 : i32
    return %c0_i32, %c0_i32_0 : i32, i32
  }
  func.func @transform_5(%arg0: i32) -> (i32, i32) {
    %c0_i32 = arith.constant 0 : i32
    %c0_i32_0 = arith.constant 0 : i32
    %c0_i32_1 = arith.constant 0 : i32
    return %c0_i32, %c0_i32_0 : i32, i32
  }
  func.func @transform_6(%arg0: i32) -> (i32, i32) {
    %c0_i32 = arith.constant 0 : i32
    %c0_i32_0 = arith.constant 0 : i32
    %c0_i32_1 = arith.constant 0 : i32
    return %c0_i32, %c0_i32_0 : i32, i32
  }
  func.func @transform_7(%arg0: i32) -> (i32, i32) {
    %c0_i32 = arith.constant 0 : i32
    %c0_i32_0 = arith.constant 0 : i32
    %c0_i32_1 = arith.constant 0 : i32
    return %c0_i32, %c0_i32_0 : i32, i32
  }
  func.func @transform_8(%arg0: i32) -> (i32, i32) {
    %c0_i32 = arith.constant 0 : i32
    %c0_i32_0 = arith.constant 0 : i32
    %c0_i32_1 = arith.constant 0 : i32
    return %c0_i32, %c0_i32_0 : i32, i32
  }
}

</mosaic_0001>

<llo_original>
// kernel: noise_efficientnet_forward.1
$region0: #{noise_efficientnet_forward.1}
  #allocation0 [shape = 'u32[]', space=smem, size = 0x4, offset = 0x4, fixed_abs, tag = 'smem constant byte address 0x4 - core index']
  #allocation1 [shape = 'u32[144,128]{1,0:T(1,128)}', space=vmem, size = 0x12000, scoped, tag = 'internal scratch']
  #allocation2 [shape = 'bf16[8,768]{1,0:T(8,128)(2,1)}', space=vmem, size = 0x3000, scoped, tag = 'scratch operand']
  #allocation3 [shape = 'bf16[72,512]{1,0:T(8,128)(2,1)}', space=vmem, size = 0x12000, scoped, tag = 'scratch operand']
  #allocation4 [shape = 'bf16[8,768]{1,0:T(8,128)(2,1)}', space=vmem, size = 0x3000, scoped, tag = 'scratch operand']
  #allocation5 [shape = 'bf16[72,512]{1,0:T(8,128)(2,1)}', space=vmem, size = 0x12000, scoped, tag = 'scratch operand']
  #allocation6 [shape = 'bf16[2,4096]{1,0:T(2,128)(2,1)}', space=vmem, size = 0x4000, scoped, tag = 'scratch operand']
  %s0 = inlined_call_operand.vmem [shape: bf16[8,512], index: 0, kind: input, shape index: {}]
  %s1 = inlined_call_operand.vmem [shape: bf16[9,512], index: 1, kind: input, shape index: {}]
  %s2 = inlined_call_operand.vmem [shape: bf16[8,72], index: 2, kind: input, shape index: {}]
  %s3 = inlined_call_operand.vmem [shape: f32[8,512], index: 3, kind: input, shape index: {}]
  %s4 = inlined_call_operand.vmem [shape: bf16[16,72], index: 4, kind: input, shape index: {}]
  %s5 = inlined_call_operand.vmem [shape: f32[16,512], index: 5, kind: input, shape index: {}]
  %s6 = inlined_call_operand.hbm [shape: bf16[4096,128], index: 6, kind: input, shape index: {}]
  %s7 = inlined_call_operand.vmem [shape: f32[1,128], index: 7, kind: input, shape index: {}]
  %s8 = inlined_call_operand.hbm [shape: f32[2,128], index: 8, kind: output, shape index: {}]
  %s9 = sld [smem:[#allocation0]]
  $region46: #{noise_efficientnet_forward.1} parent=0
    _
  %s11 = ssub.s32 1, %s9
  %s12 = scalar_select 0, %s11, %s9
  $region1: #{noise_efficientnet_forward.1} parent=0
    #allocation7 [shape = 'u8[1048576]{0}', space=vmem, size = 0x100000, scoped, tag = 'input window, operand 6, single buffered']
    #allocation8 [shape = 's32[1]{0}', space=sflag, size = 0x4, scoped, tag = 'scoped memory for noise_efficientnet_forward.1']
    #allocation9 [shape = 's32[1]{0}', space=sflag, size = 0x4, scoped, tag = 'scoped memory for noise_efficientnet_forward.1']
    #allocation10 [shape = 'u8[1024]{0}', space=vmem, size = 0x400, scoped, tag = 'output window, operand 0, single buffered']
    %13 = vsyncpa [#allocation8], 0
    %14 = vsyncpa [#allocation9], 0
    // Predicated region
    $region2: #{noise_efficientnet_forward.1} parent=1 // pred_check
      _
    $region3: #{noise_efficientnet_forward.1} parent=1 // pred_check_branch
      %16 = sbr.rel (0) target = $region5
    $region4: #{noise_efficientnet_forward.1} parent=1 // pred_region
      _
    $region5: #{noise_efficientnet_forward.1} parent=1 // pred_fallthru
      _
    // Predicated region
    $region6: #{noise_efficientnet_forward.1} parent=1 // pred_check
      _
    $region7: #{noise_efficientnet_forward.1} parent=1 // pred_check_branch
      %18 = sbr.rel (0) target = $region9
    $region8: #{noise_efficientnet_forward.1} parent=1 // pred_region
      _
    $region9: #{noise_efficientnet_forward.1} parent=1 // pred_fallthru
      _
    // Predicated region
    $region10: #{noise_efficientnet_forward.1} parent=1 // pred_check
      _
    $region11: #{noise_efficientnet_forward.1} parent=1 // pred_check_branch
      %20 = sbr.rel (0) target = $region13
    $region12: #{noise_efficientnet_forward.1} parent=1 // pred_region
      _
    $region13: #{noise_efficientnet_forward.1} parent=1 // pred_fallthru
      _
    // Predicated region
    $region14: #{noise_efficientnet_forward.1} parent=1 // pred_check
      _
    $region15: #{noise_efficientnet_forward.1} parent=1 // pred_check_branch
      %22 = sbr.rel (0) target = $region17
    $region16: #{noise_efficientnet_forward.1} parent=1 // pred_region
      _
    $region17: #{noise_efficientnet_forward.1} parent=1 // pred_fallthru
      _
    // Predicated region
    $region18: #{noise_efficientnet_forward.1} parent=1 // pred_check
      _
    $region19: #{noise_efficientnet_forward.1} parent=1 // pred_check_branch
      %24 = sbr.rel (0) target = $region21
    $region20: #{noise_efficientnet_forward.1} parent=1 // pred_region
      _
    $region21: #{noise_efficientnet_forward.1} parent=1 // pred_fallthru
      _
    // Predicated region
    $region22: #{noise_efficientnet_forward.1} parent=1 // pred_check
      _
    $region23: #{noise_efficientnet_forward.1} parent=1 // pred_check_branch
      %26 = sbr.rel (0) target = $region25
    $region24: #{noise_efficientnet_forward.1} parent=1 // pred_region
      _
    $region25: #{noise_efficientnet_forward.1} parent=1 // pred_fallthru
      _
    // Predicated region
    $region26: #{noise_efficientnet_forward.1} parent=1 // pred_check
      _
    $region27: #{noise_efficientnet_forward.1} parent=1 // pred_check_branch
      %28 = sbr.rel (0) target = $region29
    $region28: #{noise_efficientnet_forward.1} parent=1 // pred_region
      %s30 = ssub.s32 32768, 32768
      %31 = vsyncadd [#allocation8], %s30
      %s32 = sshll.u32 [#allocation7], 4
      %s33 = int_to_ptr.vmem [resolvable:$true] %s32
      %38 = dma.hbm_to_vmem [thread:$0]  %s6, 32768, %s33, [#allocation8], 64, 64, 4
    $region29: #{noise_efficientnet_forward.1} parent=1 // pred_fallthru
      _
    // Predicated region
    $region30: #{noise_efficientnet_forward.1} parent=1 // pred_check
      _
    $region31: #{noise_efficientnet_forward.1} parent=1 // pred_check_branch
      %40 = sbr.rel (0) target = $region33
    $region32: #{noise_efficientnet_forward.1} parent=1 // pred_region
      _
    $region33: #{noise_efficientnet_forward.1} parent=1 // pred_fallthru
      _
    // Predicated region
    $region34: #{noise_efficientnet_forward.1} parent=1 // pred_check
      _
    $region35: #{noise_efficientnet_forward.1} parent=1 // pred_check_branch
      %42 = sbr.rel (0) target = $region37
    $region36: #{noise_efficientnet_forward.1} parent=1 // pred_region
      %43 = dma.done [#allocation8], 32768
    $region37: #{noise_efficientnet_forward.1} parent=1 // pred_fallthru
      _
    %v45 = vld [vmem:[%s0] sm:$0xff]
    %v46 = vld [vmem:[%s0 + $0x8] sm:$0xff]
    %47 = vst [vmem:[#allocation2] sm:$0xf] 0
    %48 = vst [vmem:[#allocation2 + $0x14] sm:$0xf] 0
    %49 = vst [vmem:[#allocation2 + $0x4] sm:$0xff] %v45
    %50 = vst [vmem:[#allocation2 + $0xc] sm:$0xff] %v46
    %v51 = vld [vmem:[#allocation2] sm:$0xff]
    %v52 = vld [vmem:[#allocation2 + $0x8] sm:$0xff]
    %v53 = vld [vmem:[#allocation2 + $0x10] sm:$0xf]
    %v54 = vld [vmem:[%s1] sm:$0x11]
    %v55 = vld [vmem:[%s1 + $0x8] sm:$0x11]
    %v58 = vunpack.c.l.b16 %v54
    %v59 = vunpack.c.h.b16 %v54
    %v60 = vunpack.c.l.b16 %v55
    %v61 = vunpack.c.h.b16 %v55
    %v62 = vpack.c.b16 %v58, %v58
    %v63 = vpack.c.b16 %v59, %v59
    %v64 = vpack.c.b16 %v60, %v60
    %v65 = vpack.c.b16 %v61, %v61
    %v67 = vpack.i.b16 %v62, %v62
    %v69 = vlaneseq
    %v70 = vshrl.u32 %v69, 7
    %v71 = vsub.s32 0, %v70
    %v72 = vrot.slane %v67, %v71
    %v74 = vpack.i.b16 %v63, %v63
    %v76 = vlaneseq
    %v77 = vshrl.u32 %v76, 7
    %v78 = vsub.s32 0, %v77
    %v79 = vrot.slane %v74, %v78
    %v81 = vpack.i.b16 %v64, %v64
    %v83 = vlaneseq
    %v84 = vshrl.u32 %v83, 7
    %v85 = vsub.s32 0, %v84
    %v86 = vrot.slane %v81, %v85
    %v88 = vpack.i.b16 %v65, %v65
    %v90 = vlaneseq
    %v91 = vshrl.u32 %v90, 7
    %v92 = vsub.s32 0, %v91
    %v93 = vrot.slane %v88, %v92
    %v98 = vunpack.c.l.b16 %v72
    %v99 = vunpack.c.l.b16 %v79
    %v100 = vunpack.c.l.b16 %v86
    %v101 = vunpack.c.l.b16 %v93
    %v102 = vpack.c.b16 %v99, %v98
    %v103 = vpack.c.b16 %v101, %v100
    %104 = vrot.lane.b32.xlu0 %v102, 111
    %v105 = vpop.permute.xlu0 %104
    %106 = vrot.lane.b32.xlu0 %v103, 111
    %v107 = vpop.permute.xlu0 %106
    %v108 = vrot.slane %v105, 4
    %v109 = vrot.slane %v107, 4
    %vm110 = vcmask 908288
    %v111 = vsel %vm110, %v108, %v105
    %vm112 = vcmask 1043456
    %v113 = vsel %vm112, %v108, %v109
    %v114 = vsel %vm110, %v113, %v107
    %v118 = vmul.bf16 %v51, %v111
    %v119 = vmul.bf16 %v52, %v114
    %v120 = vmul.bf16 %v53, %v109
    %124 = vrot.lane.b32.xlu0 %v118, 17
    %v125 = vpop.permute.xlu0 %124
    %126 = vrot.lane.b32.xlu0 %v119, 17
    %v127 = vpop.permute.xlu0 %126
    %128 = vrot.lane.b32.xlu0 %v120, 17
    %v129 = vpop.permute.xlu0 %128
    %v130 = vrot.slane %v125, 4
    %v131 = vrot.slane %v127, 4
    %v132 = vrot.slane %v129, 4
    %v133 = vsel %vm112, %v130, %v131
    %vm134 = vcmask 138240
    %v135 = vsel %vm134, %v125, %v133
    %v136 = vsel %vm112, %v131, %v132
    %v137 = vsel %vm134, %v127, %v136
    %140 = vst [vmem:[#allocation3] sm:$0xff] %v135
    %141 = vst [vmem:[#allocation3 + $0x8] sm:$0xff] %v137
    %v142 = vld [vmem:[#allocation2] sm:$0xff]
    %v143 = vld [vmem:[#allocation2 + $0x8] sm:$0xff]
    %v144 = vld [vmem:[#allocation2 + $0x10] sm:$0xf]
    %v145 = vld [vmem:[%s1] sm:$0x11]
    %v146 = vld [vmem:[%s1 + $0x8] sm:$0x11]
    %v149 = vunpack.c.l.b16 %v145
    %v150 = vunpack.c.h.b16 %v145
    %v151 = vunpack.c.l.b16 %v146
    %v152 = vunpack.c.h.b16 %v146
    %v153 = vpack.c.b16 %v149, %v149
    %v154 = vpack.c.b16 %v150, %v150
    %v155 = vpack.c.b16 %v151, %v151
    %v156 = vpack.c.b16 %v152, %v152
    %v158 = vshrl.u32 %v153, 16
    %v159 = vpack.i.b16 %v158, %v158
    %v161 = vlaneseq
    %v162 = vshrl.u32 %v161, 7
    %v163 = vsub.s32 0, %v162
    %v164 = vrot.slane %v159, %v163
    %v166 = vshrl.u32 %v154, 16
    %v167 = vpack.i.b16 %v166, %v166
    %v169 = vlaneseq
    %v170 = vshrl.u32 %v169, 7
    %v171 = vsub.s32 0, %v170
    %v172 = vrot.slane %v167, %v171
    %v174 = vshrl.u32 %v155, 16
    %v175 = vpack.i.b16 %v174, %v174
    %v177 = vlaneseq
    %v178 = vshrl.u32 %v177, 7
    %v179 = vsub.s32 0, %v178
    %v180 = vrot.slane %v175, %v179
    %v182 = vshrl.u32 %v156, 16
    %v183 = vpack.i.b16 %v182, %v182
    %v185 = vlaneseq
    %v186 = vshrl.u32 %v185, 7
    %v187 = vsub.s32 0, %v186
    %v188 = vrot.slane %v183, %v187
    %v193 = vunpack.c.l.b16 %v164
    %v194 = vunpack.c.l.b16 %v172
    %v195 = vunpack.c.l.b16 %v180
    %v196 = vunpack.c.l.b16 %v188
    %v197 = vpack.c.b16 %v194, %v193
    %v198 = vpack.c.b16 %v196, %v195
    %199 = vrot.lane.b32.xlu0 %v197, 112
    %v200 = vpop.permute.xlu0 %199
    %201 = vrot.lane.b32.xlu0 %v198, 112
    %v202 = vpop.permute.xlu0 %201
    %v203 = vrot.slane %v200, 4
    %v204 = vrot.slane %v202, 4
    %vm205 = vcmask 916480
    %v206 = vsel %vm205, %v203, %v200
    %v207 = vsel %vm112, %v203, %v204
    %v208 = vsel %vm205, %v207, %v202
    %v212 = vmul.bf16 %v142, %v206
    %v213 = vmul.bf16 %v143, %v208
    %v214 = vmul.bf16 %v144, %v204
    %218 = vrot.lane.b32.xlu0 %v212, 16
    %v219 = vpop.permute.xlu0 %218
    %220 = vrot.lane.b32.xlu0 %v213, 16
    %v221 = vpop.permute.xlu0 %220
    %222 = vrot.lane.b32.xlu0 %v214, 16
    %v223 = vpop.permute.xlu0 %222
    %v224 = vrot.slane %v219, 4
    %v225 = vrot.slane %v221, 4
    %v226 = vrot.slane %v223, 4
    %v227 = vsel %vm112, %v224, %v225
    %vm228 = vcmask 130048
    %v229 = vsel %vm228, %v219, %v227
    %v230 = vsel %vm112, %v225, %v226
    %v231 = vsel %vm228, %v221, %v230
    %234 = vst [vmem:[#allocation3 + $0x10] sm:$0xff] %v229
    %235 = vst [vmem:[#allocation3 + $0x18] sm:$0xff] %v231
    %v236 = vld [vmem:[#allocation2] sm:$0xff]
    %v237 = vld [vmem:[#allocation2 + $0x8] sm:$0xff]
    %v238 = vld [vmem:[#allocation2 + $0x10] sm:$0xf]
    %v239 = vld [vmem:[%s1] sm:$0x22]
    %v240 = vld [vmem:[%s1 + $0x8] sm:$0x22]
    %v243 = vunpack.c.l.b16 %v239
    %v244 = vunpack.c.h.b16 %v239
    %v245 = vunpack.c.l.b16 %v240
    %v246 = vunpack.c.h.b16 %v240
    %v247 = vpack.c.b16 %v243, %v243
    %v248 = vpack.c.b16 %v244, %v244
    %v249 = vpack.c.b16 %v245, %v245
    %v250 = vpack.c.b16 %v246, %v246
    %v252 = vpack.i.b16 %v247, %v247
    %v254 = vlaneseq
    %v255 = vshrl.u32 %v254, 7
    %v256 = vsub.s32 1, %v255
    %v257 = vrot.slane %v252, %v256
    %v259 = vpack.i.b16 %v248, %v248
    %v261 = vlaneseq
    %v262 = vshrl.u32 %v261, 7
    %v263 = vsub.s32 1, %v262
    %v264 = vrot.slane %v259, %v263
    %v266 = vpack.i.b16 %v249, %v249
    %v268 = vlaneseq
    %v269 = vshrl.u32 %v268, 7
    %v270 = vsub.s32 1, %v269
    %v271 = vrot.slane %v266, %v270
    %v273 = vpack.i.b16 %v250, %v250
    %v275 = vlaneseq
    %v276 = vshrl.u32 %v275, 7
    %v277 = vsub.s32 1, %v276
    %v278 = vrot.slane %v273, %v277
    %v283 = vunpack.c.l.b16 %v257
    %v284 = vunpack.c.l.b16 %v264
    %v285 = vunpack.c.l.b16 %v271
    %v286 = vunpack.c.l.b16 %v278
    %v287 = vpack.c.b16 %v284, %v283
    %v288 = vpack.c.b16 %v286, %v285
    %289 = vrot.lane.b32.xlu0 %v287, 113
    %v290 = vpop.permute.xlu0 %289
    %291 = vrot.lane.b32.xlu0 %v288, 113
    %v292 = vpop.permute.xlu0 %291
    %v293 = vrot.slane %v290, 4
    %v294 = vrot.slane %v292, 4
    %vm295 = vcmask 924672
    %v296 = vsel %vm295, %v293, %v290
    %v297 = vsel %vm112, %v293, %v294
    %v298 = vsel %vm295, %v297, %v292
    %v302 = vmul.bf16 %v236, %v296
    %v303 = vmul.bf16 %v237, %v298
    %v304 = vmul.bf16 %v238, %v294
    %308 = vrot.lane.b32.xlu0 %v302, 15
    %v309 = vpop.permute.xlu0 %308
    %310 = vrot.lane.b32.xlu0 %v303, 15
    %v311 = vpop.permute.xlu0 %310
    %312 = vrot.lane.b32.xlu0 %v304, 15
    %v313 = vpop.permute.xlu0 %312
    %v314 = vrot.slane %v309, 4
    %v315 = vrot.slane %v311, 4
    %v316 = vrot.slane %v313, 4
    %v317 = vsel %vm112, %v314, %v315
    %vm318 = vcmask 121856
    %v319 = vsel %vm318, %v309, %v317
    %v320 = vsel %vm112, %v315, %v316
    %v321 = vsel %vm318, %v311, %v320
    %324 = vst [vmem:[#allocation3 + $0x20] sm:$0xff] %v319
    %325 = vst [vmem:[#allocation3 + $0x28] sm:$0xff] %v321
    %v326 = vld [vmem:[#allocation2] sm:$0xff]
    %v327 = vld [vmem:[#allocation2 + $0x8] sm:$0xff]
    %v328 = vld [vmem:[#allocation2 + $0x10] sm:$0xf]
    %v329 = vld [vmem:[%s1] sm:$0x22]
    %v330 = vld [vmem:[%s1 + $0x8] sm:$0x22]
    %v333 = vunpack.c.l.b16 %v329
    %v334 = vunpack.c.h.b16 %v329
    %v335 = vunpack.c.l.b16 %v330
    %v336 = vunpack.c.h.b16 %v330
    %v337 = vpack.c.b16 %v333, %v333
    %v338 = vpack.c.b16 %v334, %v334
    %v339 = vpack.c.b16 %v335, %v335
    %v340 = vpack.c.b16 %v336, %v336
    %v342 = vshrl.u32 %v337, 16
    %v343 = vpack.i.b16 %v342, %v342
    %v345 = vlaneseq
    %v346 = vshrl.u32 %v345, 7
    %v347 = vsub.s32 1, %v346
    %v348 = vrot.slane %v343, %v347
    %v350 = vshrl.u32 %v338, 16
    %v351 = vpack.i.b16 %v350, %v350
    %v353 = vlaneseq
    %v354 = vshrl.u32 %v353, 7
    %v355 = vsub.s32 1, %v354
    %v356 = vrot.slane %v351, %v355
    %v358 = vshrl.u32 %v339, 16
    %v359 = vpack.i.b16 %v358, %v358
    %v361 = vlaneseq
    %v362 = vshrl.u32 %v361, 7
    %v363 = vsub.s32 1, %v362
    %v364 = vrot.slane %v359, %v363
    %v366 = vshrl.u32 %v340, 16
    %v367 = vpack.i.b16 %v366, %v366
    %v369 = vlaneseq
    %v370 = vshrl.u32 %v369, 7
    %v371 = vsub.s32 1, %v370
    %v372 = vrot.slane %v367, %v371
    %v377 = vunpack.c.l.b16 %v348
    %v378 = vunpack.c.l.b16 %v356
    %v379 = vunpack.c.l.b16 %v364
    %v380 = vunpack.c.l.b16 %v372
    %v381 = vpack.c.b16 %v378, %v377
    %v382 = vpack.c.b16 %v380, %v379
    %383 = vrot.lane.b32.xlu0 %v381, 127
    %v384 = vpop.permute.xlu0 %383
    %385 = vrot.lane.b32.xlu0 %v382, 127
    %v386 = vpop.permute.xlu0 %385
    %v387 = vrot.slane %v384, 4
    %v388 = vrot.slane %v386, 4
    %vm389 = vcmask 1039360
    %v390 = vsel %vm389, %v387, %v384
    %v391 = vsel %vm112, %v387, %v388
    %v392 = vsel %vm389, %v391, %v386
    %v396 = vmul.bf16 %v326, %v390
    %v397 = vmul.bf16 %v327, %v392
    %v398 = vmul.bf16 %v328, %v388
    %402 = vrot.lane.b32.xlu0 %v396, 1
    %v403 = vpop.permute.xlu0 %402
    %404 = vrot.lane.b32.xlu0 %v397, 1
    %v405 = vpop.permute.xlu0 %404
    %406 = vrot.lane.b32.xlu0 %v398, 1
    %v407 = vpop.permute.xlu0 %406
    %v408 = vrot.slane %v403, 4
    %v409 = vrot.slane %v405, 4
    %v410 = vrot.slane %v407, 4
    %v411 = vsel %vm112, %v408, %v409
    %vm412 = vcmask 7168
    %v413 = vsel %vm412, %v403, %v411
    %v414 = vsel %vm112, %v409, %v410
    %v415 = vsel %vm412, %v405, %v414
    %418 = vst [vmem:[#allocation3 + $0x30] sm:$0xff] %v413
    %419 = vst [vmem:[#allocation3 + $0x38] sm:$0xff] %v415
    %v420 = vld [vmem:[#allocation2 + $0x4] sm:$0xff]
    %v421 = vld [vmem:[#allocation2 + $0xc] sm:$0xff]
    %422 = vst [vmem:[#allocation3 + $0x40] sm:$0xff] %v420
    %423 = vst [vmem:[#allocation3 + $0x48] sm:$0xff] %v421
    %v424 = vld [vmem:[#allocation2 + $0x4] sm:$0xff]
    %v425 = vld [vmem:[#allocation2 + $0xc] sm:$0xff]
    %v426 = vld [vmem:[#allocation2 + $0x14] sm:$0xf]
    %v427 = vld [vmem:[%s1] sm:$0x44]
    %v428 = vld [vmem:[%s1 + $0x8] sm:$0x44]
    %v431 = vunpack.c.l.b16 %v427
    %v432 = vunpack.c.h.b16 %v427
    %v433 = vunpack.c.l.b16 %v428
    %v434 = vunpack.c.h.b16 %v428
    %v435 = vpack.c.b16 %v431, %v431
    %v436 = vpack.c.b16 %v432, %v432
    %v437 = vpack.c.b16 %v433, %v433
    %v438 = vpack.c.b16 %v434, %v434
    %v440 = vshrl.u32 %v435, 16
    %v441 = vpack.i.b16 %v440, %v440
    %v443 = vlaneseq
    %v444 = vshrl.u32 %v443, 7
    %v445 = vsub.s32 2, %v444
    %v446 = vrot.slane %v441, %v445
    %v448 = vshrl.u32 %v436, 16
    %v449 = vpack.i.b16 %v448, %v448
    %v451 = vlaneseq
    %v452 = vshrl.u32 %v451, 7
    %v453 = vsub.s32 2, %v452
    %v454 = vrot.slane %v449, %v453
    %v456 = vshrl.u32 %v437, 16
    %v457 = vpack.i.b16 %v456, %v456
    %v459 = vlaneseq
    %v460 = vshrl.u32 %v459, 7
    %v461 = vsub.s32 2, %v460
    %v462 = vrot.slane %v457, %v461
    %v464 = vshrl.u32 %v438, 16
    %v465 = vpack.i.b16 %v464, %v464
    %v467 = vlaneseq
    %v468 = vshrl.u32 %v467, 7
    %v469 = vsub.s32 2, %v468
    %v470 = vrot.slane %v465, %v469
    %v475 = vunpack.c.l.b16 %v446
    %v476 = vunpack.c.l.b16 %v454
    %v477 = vunpack.c.l.b16 %v462
    %v478 = vunpack.c.l.b16 %v470
    %v479 = vpack.c.b16 %v476, %v475
    %v480 = vpack.c.b16 %v478, %v477
    %481 = vrot.lane.b32.xlu0 %v479, 1
    %v482 = vpop.permute.xlu0 %481
    %483 = vrot.lane.b32.xlu0 %v480, 1
    %v484 = vpop.permute.xlu0 %483
    %v485 = vrot.slane %v482, 4
    %v486 = vrot.slane %v484, 4
    %v487 = vsel %vm412, %v485, %v482
    %v488 = vsel %vm112, %v485, %v486
    %v489 = vsel %vm412, %v488, %v484
    %v493 = vmul.bf16 %v424, %v487
    %v494 = vmul.bf16 %v425, %v489
    %v495 = vmul.bf16 %v426, %v486
    %499 = vrot.lane.b32.xlu0 %v493, 127
    %v500 = vpop.permute.xlu0 %499
    %501 = vrot.lane.b32.xlu0 %v494, 127
    %v502 = vpop.permute.xlu0 %501
    %503 = vrot.lane.b32.xlu0 %v495, 127
    %v504 = vpop.permute.xlu0 %503
    %v505 = vrot.slane %v500, 4
    %v506 = vrot.slane %v502, 4
    %v507 = vrot.slane %v504, 4
    %v508 = vsel %vm112, %v505, %v506
    %v509 = vsel %vm389, %v500, %v508
    %v510 = vsel %vm112, %v506, %v507
    %v511 = vsel %vm389, %v502, %v510
    %514 = vst [vmem:[#allocation3 + $0x50] sm:$0xff] %v509
    %515 = vst [vmem:[#allocation3 + $0x58] sm:$0xff] %v511
    %v516 = vld [vmem:[#allocation2 + $0x4] sm:$0xff]
    %v517 = vld [vmem:[#allocation2 + $0xc] sm:$0xff]
    %v518 = vld [vmem:[#allocation2 + $0x14] sm:$0xf]
    %v519 = vld [vmem:[%s1] sm:$0x88]
    %v520 = vld [vmem:[%s1 + $0x8] sm:$0x88]
    %v523 = vunpack.c.l.b16 %v519
    %v524 = vunpack.c.h.b16 %v519
    %v525 = vunpack.c.l.b16 %v520
    %v526 = vunpack.c.h.b16 %v520
    %v527 = vpack.c.b16 %v523, %v523
    %v528 = vpack.c.b16 %v524, %v524
    %v529 = vpack.c.b16 %v525, %v525
    %v530 = vpack.c.b16 %v526, %v526
    %v532 = vpack.i.b16 %v527, %v527
    %v534 = vlaneseq
    %v535 = vshrl.u32 %v534, 7
    %v536 = vsub.s32 3, %v535
    %v537 = vrot.slane %v532, %v536
    %v539 = vpack.i.b16 %v528, %v528
    %v541 = vlaneseq
    %v542 = vshrl.u32 %v541, 7
    %v543 = vsub.s32 3, %v542
    %v544 = vrot.slane %v539, %v543
    %v546 = vpack.i.b16 %v529, %v529
    %v548 = vlaneseq
    %v549 = vshrl.u32 %v548, 7
    %v550 = vsub.s32 3, %v549
    %v551 = vrot.slane %v546, %v550
    %v553 = vpack.i.b16 %v530, %v530
    %v555 = vlaneseq
    %v556 = vshrl.u32 %v555, 7
    %v557 = vsub.s32 3, %v556
    %v558 = vrot.slane %v553, %v557
    %v563 = vunpack.c.l.b16 %v537
    %v564 = vunpack.c.l.b16 %v544
    %v565 = vunpack.c.l.b16 %v551
    %v566 = vunpack.c.l.b16 %v558
    %v567 = vpack.c.b16 %v564, %v563
    %v568 = vpack.c.b16 %v566, %v565
    %569 = vrot.lane.b32.xlu0 %v567, 15
    %v570 = vpop.permute.xlu0 %569
    %571 = vrot.lane.b32.xlu0 %v568, 15
    %v572 = vpop.permute.xlu0 %571
    %v573 = vrot.slane %v570, 4
    %v574 = vrot.slane %v572, 4
    %v575 = vsel %vm318, %v573, %v570
    %v576 = vsel %vm112, %v573, %v574
    %v577 = vsel %vm318, %v576, %v572
    %v581 = vmul.bf16 %v516, %v575
    %v582 = vmul.bf16 %v517, %v577
    %v583 = vmul.bf16 %v518, %v574
    %587 = vrot.lane.b32.xlu0 %v581, 113
    %v588 = vpop.permute.xlu0 %587
    %589 = vrot.lane.b32.xlu0 %v582, 113
    %v590 = vpop.permute.xlu0 %589
    %591 = vrot.lane.b32.xlu0 %v583, 113
    %v592 = vpop.permute.xlu0 %591
    %v593 = vrot.slane %v588, 4
    %v594 = vrot.slane %v590, 4
    %v595 = vrot.slane %v592, 4
    %v596 = vsel %vm112, %v593, %v594
    %v597 = vsel %vm295, %v588, %v596
    %v598 = vsel %vm112, %v594, %v595
    %v599 = vsel %vm295, %v590, %v598
    %602 = vst [vmem:[#allocation3 + $0x60] sm:$0xff] %v597
    %603 = vst [vmem:[#allocation3 + $0x68] sm:$0xff] %v599
    %v604 = vld [vmem:[#allocation2 + $0x4] sm:$0xff]
    %v605 = vld [vmem:[#allocation2 + $0xc] sm:$0xff]
    %v606 = vld [vmem:[#allocation2 + $0x14] sm:$0xf]
    %v607 = vld [vmem:[%s1] sm:$0x88]
    %v608 = vld [vmem:[%s1 + $0x8] sm:$0x88]
    %v611 = vunpack.c.l.b16 %v607
    %v612 = vunpack.c.h.b16 %v607
    %v613 = vunpack.c.l.b16 %v608
    %v614 = vunpack.c.h.b16 %v608
    %v615 = vpack.c.b16 %v611, %v611
    %v616 = vpack.c.b16 %v612, %v612
    %v617 = vpack.c.b16 %v613, %v613
    %v618 = vpack.c.b16 %v614, %v614
    %v620 = vshrl.u32 %v615, 16
    %v621 = vpack.i.b16 %v620, %v620
    %v623 = vlaneseq
    %v624 = vshrl.u32 %v623, 7
    %v625 = vsub.s32 3, %v624
    %v626 = vrot.slane %v621, %v625
    %v628 = vshrl.u32 %v616, 16
    %v629 = vpack.i.b16 %v628, %v628
    %v631 = vlaneseq
    %v632 = vshrl.u32 %v631, 7
    %v633 = vsub.s32 3, %v632
    %v634 = vrot.slane %v629, %v633
    %v636 = vshrl.u32 %v617, 16
    %v637 = vpack.i.b16 %v636, %v636
    %v639 = vlaneseq
    %v640 = vshrl.u32 %v639, 7
    %v641 = vsub.s32 3, %v640
    %v642 = vrot.slane %v637, %v641
    %v644 = vshrl.u32 %v618, 16
    %v645 = vpack.i.b16 %v644, %v644
    %v647 = vlaneseq
    %v648 = vshrl.u32 %v647, 7
    %v649 = vsub.s32 3, %v648
    %v650 = vrot.slane %v645, %v649
    %v655 = vunpack.c.l.b16 %v626
    %v656 = vunpack.c.l.b16 %v634
    %v657 = vunpack.c.l.b16 %v642
    %v658 = vunpack.c.l.b16 %v650
    %v659 = vpack.c.b16 %v656, %v655
    %v660 = vpack.c.b16 %v658, %v657
    %661 = vrot.lane.b32.xlu0 %v659, 16
    %v662 = vpop.permute.xlu0 %661
    %663 = vrot.lane.b32.xlu0 %v660, 16
    %v664 = vpop.permute.xlu0 %663
    %v665 = vrot.slane %v662, 4
    %v666 = vrot.slane %v664, 4
    %v667 = vsel %vm228, %v665, %v662
    %v668 = vsel %vm112, %v665, %v666
    %v669 = vsel %vm228, %v668, %v664
    %v673 = vmul.bf16 %v604, %v667
    %v674 = vmul.bf16 %v605, %v669
    %v675 = vmul.bf16 %v606, %v666
    %679 = vrot.lane.b32.xlu0 %v673, 112
    %v680 = vpop.permute.xlu0 %679
    %681 = vrot.lane.b32.xlu0 %v674, 112
    %v682 = vpop.permute.xlu0 %681
    %683 = vrot.lane.b32.xlu0 %v675, 112
    %v684 = vpop.permute.xlu0 %683
    %v685 = vrot.slane %v680, 4
    %v686 = vrot.slane %v682, 4
    %v687 = vrot.slane %v684, 4
    %v688 = vsel %vm112, %v685, %v686
    %v689 = vsel %vm205, %v680, %v688
    %v690 = vsel %vm112, %v686, %v687
    %v691 = vsel %vm205, %v682, %v690
    %694 = vst [vmem:[#allocation3 + $0x70] sm:$0xff] %v689
    %695 = vst [vmem:[#allocation3 + $0x78] sm:$0xff] %v691
    %v696 = vld [vmem:[#allocation2 + $0x4] sm:$0xff]
    %v697 = vld [vmem:[#allocation2 + $0xc] sm:$0xff]
    %v698 = vld [vmem:[#allocation2 + $0x14] sm:$0xf]
    %v699 = vld [vmem:[%s1 + $0x10] sm:$0x11]
    %v700 = vld [vmem:[%s1 + $0x18] sm:$0x11]
    %v703 = vunpack.c.l.b16 %v699
    %v704 = vunpack.c.h.b16 %v699
    %v705 = vunpack.c.l.b16 %v700
    %v706 = vunpack.c.h.b16 %v700
    %v707 = vpack.c.b16 %v703, %v703
    %v708 = vpack.c.b16 %v704, %v704
    %v709 = vpack.c.b16 %v705, %v705
    %v710 = vpack.c.b16 %v706, %v706
    %v712 = vpack.i.b16 %v707, %v707
    %v714 = vlaneseq
    %v715 = vshrl.u32 %v714, 7
    %v716 = vsub.s32 0, %v715
    %v717 = vrot.slane %v712, %v716
    %v719 = vpack.i.b16 %v708, %v708
    %v721 = vlaneseq
    %v722 = vshrl.u32 %v721, 7
    %v723 = vsub.s32 0, %v722
    %v724 = vrot.slane %v719, %v723
    %v726 = vpack.i.b16 %v709, %v709
    %v728 = vlaneseq
    %v729 = vshrl.u32 %v728, 7
    %v730 = vsub.s32 0, %v729
    %v731 = vrot.slane %v726, %v730
    %v733 = vpack.i.b16 %v710, %v710
    %v735 = vlaneseq
    %v736 = vshrl.u32 %v735, 7
    %v737 = vsub.s32 0, %v736
    %v738 = vrot.slane %v733, %v737
    %v743 = vunpack.c.l.b16 %v717
    %v744 = vunpack.c.l.b16 %v724
    %v745 = vunpack.c.l.b16 %v731
    %v746 = vunpack.c.l.b16 %v738
    %v747 = vpack.c.b16 %v744, %v743
    %v748 = vpack.c.b16 %v746, %v745
    %749 = vrot.lane.b32.xlu0 %v747, 17
    %v750 = vpop.permute.xlu0 %749
    %751 = vrot.lane.b32.xlu0 %v748, 17
    %v752 = vpop.permute.xlu0 %751
    %v753 = vrot.slane %v750, 4
    %v754 = vrot.slane %v752, 4
    %v755 = vsel %vm134, %v753, %v750
    %v756 = vsel %vm112, %v753, %v754
    %v757 = vsel %vm134, %v756, %v752
    %v761 = vmul.bf16 %v696, %v755
    %v762 = vmul.bf16 %v697, %v757
    %v763 = vmul.bf16 %v698, %v754
    %767 = vrot.lane.b32.xlu0 %v761, 111
    %v768 = vpop.permute.xlu0 %767
    %769 = vrot.lane.b32.xlu0 %v762, 111
    %v770 = vpop.permute.xlu0 %769
    %771 = vrot.lane.b32.xlu0 %v763, 111
    %v772 = vpop.permute.xlu0 %771
    %v773 = vrot.slane %v768, 4
    %v774 = vrot.slane %v770, 4
    %v775 = vrot.slane %v772, 4
    %v776 = vsel %vm112, %v773, %v774
    %v777 = vsel %vm110, %v768, %v776
    %v778 = vsel %vm112, %v774, %v775
    %v779 = vsel %vm110, %v770, %v778
    %782 = vst [vmem:[#allocation3 + $0x80] sm:$0xff] %v777
    %783 = vst [vmem:[#allocation3 + $0x88] sm:$0xff] %v779
    %v784 = vld [vmem:[%s3] sm:$0xff]
    %v785 = vld [vmem:[%s3 + $0x8] sm:$0xff]
    %v786 = vld [vmem:[%s3 + $0x10] sm:$0xff]
    %v787 = vld [vmem:[%s3 + $0x18] sm:$0xff]
    %v788 = vld [vmem:[%s2] sm:$0xf]
    %v789 = vld [vmem:[#allocation3] sm:$0xff]
    %v790 = vld [vmem:[#allocation3 + $0x8] sm:$0xff]
    %v791 = vld [vmem:[#allocation3 + $0x10] sm:$0xff]
    %v792 = vld [vmem:[#allocation3 + $0x18] sm:$0xff]
    %v793 = vld [vmem:[#allocation3 + $0x20] sm:$0xff]
    %v794 = vld [vmem:[#allocation3 + $0x28] sm:$0xff]
    %v795 = vld [vmem:[#allocation3 + $0x30] sm:$0xff]
    %v796 = vld [vmem:[#allocation3 + $0x38] sm:$0xff]
    %v797 = vld [vmem:[#allocation3 + $0x40] sm:$0xff]
    %v798 = vld [vmem:[#allocation3 + $0x48] sm:$0xff]
    %v799 = vld [vmem:[#allocation3 + $0x50] sm:$0xff]
    %v800 = vld [vmem:[#allocation3 + $0x58] sm:$0xff]
    %v801 = vld [vmem:[#allocation3 + $0x60] sm:$0xff]
    %v802 = vld [vmem:[#allocation3 + $0x68] sm:$0xff]
    %v803 = vld [vmem:[#allocation3 + $0x70] sm:$0xff]
    %v804 = vld [vmem:[#allocation3 + $0x78] sm:$0xff]
    %v805 = vld [vmem:[#allocation3 + $0x80] sm:$0xff]
    %v806 = vld [vmem:[#allocation3 + $0x88] sm:$0xff]
    %v825 = vunpack.c.l.b16 %v789
    %v826 = vunpack.c.h.b16 %v789
    %v827 = vunpack.c.l.b16 %v790
    %v828 = vunpack.c.h.b16 %v790
    %v829 = vunpack.c.l.b16 %v791
    %v830 = vunpack.c.h.b16 %v791
    %v831 = vunpack.c.l.b16 %v792
    %v832 = vunpack.c.h.b16 %v792
    %v833 = vunpack.c.l.b16 %v793
    %v834 = vunpack.c.h.b16 %v793
    %v835 = vunpack.c.l.b16 %v794
    %v836 = vunpack.c.h.b16 %v794
    %v837 = vunpack.c.l.b16 %v795
    %v838 = vunpack.c.h.b16 %v795
    %v839 = vunpack.c.l.b16 %v796
    %v840 = vunpack.c.h.b16 %v796
    %v841 = vunpack.c.l.b16 %v797
    %v842 = vunpack.c.h.b16 %v797
    %v843 = vunpack.c.l.b16 %v798
    %v844 = vunpack.c.h.b16 %v798
    %v845 = vunpack.c.l.b16 %v799
    %v846 = vunpack.c.h.b16 %v799
    %v847 = vunpack.c.l.b16 %v800
    %v848 = vunpack.c.h.b16 %v800
    %v849 = vunpack.c.l.b16 %v801
    %v850 = vunpack.c.h.b16 %v801
    %v851 = vunpack.c.l.b16 %v802
    %v852 = vunpack.c.h.b16 %v802
    %v853 = vunpack.c.l.b16 %v803
    %v854 = vunpack.c.h.b16 %v803
    %v855 = vunpack.c.l.b16 %v804
    %v856 = vunpack.c.h.b16 %v804
    %v857 = vunpack.c.l.b16 %v805
    %v858 = vunpack.c.h.b16 %v805
    %v859 = vunpack.c.l.b16 %v806
    %v860 = vunpack.c.h.b16 %v806
    %v861 = vpack.c.b16 %v829, %v825
    %v862 = vpack.c.b16 %v830, %v826
    %v863 = vpack.c.b16 %v831, %v827
    %v864 = vpack.c.b16 %v832, %v828
    %v865 = vpack.c.b16 %v837, %v833
    %v866 = vpack.c.b16 %v838, %v834
    %v867 = vpack.c.b16 %v839, %v835
    %v868 = vpack.c.b16 %v840, %v836
    %v869 = vpack.c.b16 %v845, %v841
    %v870 = vpack.c.b16 %v846, %v842
    %v871 = vpack.c.b16 %v847, %v843
    %v872 = vpack.c.b16 %v848, %v844
    %v873 = vpack.c.b16 %v853, %v849
    %v874 = vpack.c.b16 %v854, %v850
    %v875 = vpack.c.b16 %v855, %v851
    %v876 = vpack.c.b16 %v856, %v852
    %v877 = vpack.c.b16 %v857, %v857
    %v878 = vpack.c.b16 %v858, %v858
    %v879 = vpack.c.b16 %v859, %v859
    %v880 = vpack.c.b16 %v860, %v860
    %vm897 = vcmask 588800
    %v899 = vsel %vm897, %v788, 0
    %vm901 = vcmask 1043456
    %v903 = vsel %vm901, %v877, 0
    %v906 = vsel %vm901, %v878, 0
    %v909 = vsel %vm901, %v879, 0
    %v912 = vsel %vm901, %v880, 0
    %914 = vmatprep.subr.bf16.mxu0 0
    %915 = vmatpush1.bf16.msra.mxu0 0
    %916 = vmatprep.subr.bf16.mxu0 0
    %917 = vmatpush1.bf16.msra.mxu0 0
    %918 = vmatprep.subr.bf16.mxu0 0
    %919 = vmatpush1.bf16.msra.mxu0 0
    %920 = vmatprep.subr.bf16.mxu0 %v906
    %921 = vmatpush1.bf16.msra.mxu0 %v903
    %922 = vmatprep.subr.bf16.mxu0 %v874
    %923 = vmatpush1.bf16.msra.mxu0 %v873
    %924 = vmatprep.subr.bf16.mxu0 %v870
    %925 = vmatpush1.bf16.msra.mxu0 %v869
    %926 = vmatprep.subr.bf16.mxu0 %v866
    %927 = vmatpush1.bf16.msra.mxu0 %v865
    %928 = vmatprep.subr.bf16.mxu0 %v862
    %929 = vmatpush1.bf16.msra.mxu0 %v861
    %930 = vmatprep.subr.bf16.mxu0 0
    %931 = vmatpush2.bf16.msra.mxu0 0
    %932 = vmatprep.subr.bf16.mxu0 0
    %933 = vmatpush2.bf16.msra.mxu0 0
    %934 = vmatprep.subr.bf16.mxu0 0
    %935 = vmatpush2.bf16.msra.mxu0 0
    %936 = vmatprep.subr.bf16.mxu0 0
    %937 = vmatpush2.bf16.msra.mxu0 0
    %938 = vmatprep.subr.bf16.mxu0 0
    %939 = vmatpush2.bf16.msra.mxu0 0
    %940 = vmatprep.subr.bf16.mxu0 0
    %941 = vmatpush2.bf16.msra.mxu0 0
    %942 = vmatprep.subr.bf16.mxu0 0
    %943 = vmatpush2.bf16.msra.mxu0 0
    %944 = vmatprep.subr.bf16.mxu0 0
    %945 = vmatpush2.bf16.msra.mxu0 0
    %946 = vmatprep.mubr.bf16.mxu0 0
    %947 = vmatmul.mubr.bf16.gmra.mxu0 %v899
    %v948 = vpop.f32.mrf.mxu0
    %v949 = vadd.f32 0.0, %v948
    %v950 = vpop.f32.mrf.mxu0
    %v951 = vadd.f32 0.0, %v950
    %v952 = vpop.f32.mrf.mxu0
    %v953 = vpop.f32.mrf.mxu0
    %954 = vdwg.mxu0
    %955 = vmatprep.subr.bf16.mxu0 0
    %956 = vmatpush1.bf16.msra.mxu0 0
    %957 = vmatprep.subr.bf16.mxu0 0
    %958 = vmatpush1.bf16.msra.mxu0 0
    %959 = vmatprep.subr.bf16.mxu0 0
    %960 = vmatpush1.bf16.msra.mxu0 0
    %961 = vmatprep.subr.bf16.mxu0 %v912
    %962 = vmatpush1.bf16.msra.mxu0 %v909
    %963 = vmatprep.subr.bf16.mxu0 %v876
    %964 = vmatpush1.bf16.msra.mxu0 %v875
    %965 = vmatprep.subr.bf16.mxu0 %v872
    %966 = vmatpush1.bf16.msra.mxu0 %v871
    %967 = vmatprep.subr.bf16.mxu0 %v868
    %968 = vmatpush1.bf16.msra.mxu0 %v867
    %969 = vmatprep.subr.bf16.mxu0 %v864
    %970 = vmatpush1.bf16.msra.mxu0 %v863
    %971 = vmatprep.subr.bf16.mxu0 0
    %972 = vmatpush2.bf16.msra.mxu0 0
    %973 = vmatprep.subr.bf16.mxu0 0
    %974 = vmatpush2.bf16.msra.mxu0 0
    %975 = vmatprep.subr.bf16.mxu0 0
    %976 = vmatpush2.bf16.msra.mxu0 0
    %977 = vmatprep.subr.bf16.mxu0 0
    %978 = vmatpush2.bf16.msra.mxu0 0
    %979 = vmatprep.subr.bf16.mxu0 0
    %980 = vmatpush2.bf16.msra.mxu0 0
    %981 = vmatprep.subr.bf16.mxu0 0
    %982 = vmatpush2.bf16.msra.mxu0 0
    %983 = vmatprep.subr.bf16.mxu0 0
    %984 = vmatpush2.bf16.msra.mxu0 0
    %985 = vmatprep.subr.bf16.mxu0 0
    %986 = vmatpush2.bf16.msra.mxu0 0
    %987 = vmatprep.mubr.bf16.mxu0 0
    %988 = vmatmul.mubr.bf16.gmra.mxu0 %v899
    %v989 = vpop.f32.mrf.mxu0
    %v990 = vadd.f32 0.0, %v989
    %v991 = vpop.f32.mrf.mxu0
    %v992 = vadd.f32 0.0, %v991
    %v993 = vpop.f32.mrf.mxu0
    %v994 = vpop.f32.mrf.mxu0
    %995 = vdwg.mxu0
    %v996 = vadd.f32 %v784, %v949
    %v997 = vadd.f32 %v785, %v951
    %v998 = vadd.f32 %v786, %v990
    %v999 = vadd.f32 %v787, %v992
    %v1000 = vpack.c.bf16 %v996, %v996
    %v1001 = vpack.c.bf16 %v997, %v997
    %v1002 = vpack.c.bf16 %v998, %v998
    %v1003 = vpack.c.bf16 %v999, %v999
    %1004 = vst [vmem:[#allocation4] sm:$0xf] 0
    %1005 = vst [vmem:[#allocation4 + $0x14] sm:$0xf] 0
    %v1010 = vunpack.c.l.b16 %v1000
    %v1011 = vunpack.c.l.b16 %v1001
    %v1012 = vunpack.c.l.b16 %v1002
    %v1013 = vunpack.c.l.b16 %v1003
    %v1014 = vpack.c.b16 %v1011, %v1010
    %v1015 = vpack.c.b16 %v1013, %v1012
    %1018 = vst [vmem:[#allocation4 + $0x4] sm:$0xff] %v1014
    %1019 = vst [vmem:[#allocation4 + $0xc] sm:$0xff] %v1015
    %v1020 = vld [vmem:[#allocation4] sm:$0xff]
    %v1021 = vld [vmem:[#allocation4 + $0x8] sm:$0xff]
    %v1022 = vld [vmem:[#allocation4 + $0x10] sm:$0xf]
    %v1023 = vld [vmem:[%s1] sm:$0x11]
    %v1024 = vld [vmem:[%s1 + $0x8] sm:$0x11]
    %v1027 = vunpack.c.l.b16 %v1023
    %v1028 = vunpack.c.h.b16 %v1023
    %v1029 = vunpack.c.l.b16 %v1024
    %v1030 = vunpack.c.h.b16 %v1024
    %v1031 = vpack.c.b16 %v1027, %v1027
    %v1032 = vpack.c.b16 %v1028, %v1028
    %v1033 = vpack.c.b16 %v1029, %v1029
    %v1034 = vpack.c.b16 %v1030, %v1030
    %v1036 = vpack.i.b16 %v1031, %v1031
    %v1038 = vlaneseq
    %v1039 = vshrl.u32 %v1038, 7
    %v1040 = vsub.s32 0, %v1039
    %v1041 = vrot.slane %v1036, %v1040
    %v1043 = vpack.i.b16 %v1032, %v1032
    %v1045 = vlaneseq
    %v1046 = vshrl.u32 %v1045, 7
    %v1047 = vsub.s32 0, %v1046
    %v1048 = vrot.slane %v1043, %v1047
    %v1050 = vpack.i.b16 %v1033, %v1033
    %v1052 = vlaneseq
    %v1053 = vshrl.u32 %v1052, 7
    %v1054 = vsub.s32 0, %v1053
    %v1055 = vrot.slane %v1050, %v1054
    %v1057 = vpack.i.b16 %v1034, %v1034
    %v1059 = vlaneseq
    %v1060 = vshrl.u32 %v1059, 7
    %v1061 = vsub.s32 0, %v1060
    %v1062 = vrot.slane %v1057, %v1061
    %v1067 = vunpack.c.l.b16 %v1041
    %v1068 = vunpack.c.l.b16 %v1048
    %v1069 = vunpack.c.l.b16 %v1055
    %v1070 = vunpack.c.l.b16 %v1062
    %v1071 = vpack.c.b16 %v1068, %v1067
    %v1072 = vpack.c.b16 %v1070, %v1069
    %1073 = vrot.lane.b32.xlu0 %v1071, 111
    %v1074 = vpop.permute.xlu0 %1073
    %1075 = vrot.lane.b32.xlu0 %v1072, 111
    %v1076 = vpop.permute.xlu0 %1075
    %v1077 = vrot.slane %v1074, 4
    %v1078 = vrot.slane %v1076, 4
    %v1079 = vsel %vm110, %v1077, %v1074
    %v1080 = vsel %vm112, %v1077, %v1078
    %v1081 = vsel %vm110, %v1080, %v1076
    %v1085 = vmul.bf16 %v1020, %v1079
    %v1086 = vmul.bf16 %v1021, %v1081
    %v1087 = vmul.bf16 %v1022, %v1078
    %1091 = vrot.lane.b32.xlu0 %v1085, 17
    %v1092 = vpop.permute.xlu0 %1091
    %1093 = vrot.lane.b32.xlu0 %v1086, 17
    %v1094 = vpop.permute.xlu0 %1093
    %1095 = vrot.lane.b32.xlu0 %v1087, 17
    %v1096 = vpop.permute.xlu0 %1095
    %v1097 = vrot.slane %v1092, 4
    %v1098 = vrot.slane %v1094, 4
    %v1099 = vrot.slane %v1096, 4
    %v1100 = vsel %vm112, %v1097, %v1098
    %v1101 = vsel %vm134, %v1092, %v1100
    %v1102 = vsel %vm112, %v1098, %v1099
    %v1103 = vsel %vm134, %v1094, %v1102
    %1106 = vst [vmem:[#allocation5] sm:$0xff] %v1101
    %1107 = vst [vmem:[#allocation5 + $0x8] sm:$0xff] %v1103
    %v1108 = vld [vmem:[#allocation4] sm:$0xff]
    %v1109 = vld [vmem:[#allocation4 + $0x8] sm:$0xff]
    %v1110 = vld [vmem:[#allocation4 + $0x10] sm:$0xf]
    %v1111 = vld [vmem:[%s1] sm:$0x11]
    %v1112 = vld [vmem:[%s1 + $0x8] sm:$0x11]
    %v1115 = vunpack.c.l.b16 %v1111
    %v1116 = vunpack.c.h.b16 %v1111
    %v1117 = vunpack.c.l.b16 %v1112
    %v1118 = vunpack.c.h.b16 %v1112
    %v1119 = vpack.c.b16 %v1115, %v1115
    %v1120 = vpack.c.b16 %v1116, %v1116
    %v1121 = vpack.c.b16 %v1117, %v1117
    %v1122 = vpack.c.b16 %v1118, %v1118
    %v1124 = vshrl.u32 %v1119, 16
    %v1125 = vpack.i.b16 %v1124, %v1124
    %v1127 = vlaneseq
    %v1128 = vshrl.u32 %v1127, 7
    %v1129 = vsub.s32 0, %v1128
    %v1130 = vrot.slane %v1125, %v1129
    %v1132 = vshrl.u32 %v1120, 16
    %v1133 = vpack.i.b16 %v1132, %v1132
    %v1135 = vlaneseq
    %v1136 = vshrl.u32 %v1135, 7
    %v1137 = vsub.s32 0, %v1136
    %v1138 = vrot.slane %v1133, %v1137
    %v1140 = vshrl.u32 %v1121, 16
    %v1141 = vpack.i.b16 %v1140, %v1140
    %v1143 = vlaneseq
    %v1144 = vshrl.u32 %v1143, 7
    %v1145 = vsub.s32 0, %v1144
    %v1146 = vrot.slane %v1141, %v1145
    %v1148 = vshrl.u32 %v1122, 16
    %v1149 = vpack.i.b16 %v1148, %v1148
    %v1151 = vlaneseq
    %v1152 = vshrl.u32 %v1151, 7
    %v1153 = vsub.s32 0, %v1152
    %v1154 = vrot.slane %v1149, %v1153
    %v1159 = vunpack.c.l.b16 %v1130
    %v1160 = vunpack.c.l.b16 %v1138
    %v1161 = vunpack.c.l.b16 %v1146
    %v1162 = vunpack.c.l.b16 %v1154
    %v1163 = vpack.c.b16 %v1160, %v1159
    %v1164 = vpack.c.b16 %v1162, %v1161
    %1165 = vrot.lane.b32.xlu0 %v1163, 112
    %v1166 = vpop.permute.xlu0 %1165
    %1167 = vrot.lane.b32.xlu0 %v1164, 112
    %v1168 = vpop.permute.xlu0 %1167
    %v1169 = vrot.slane %v1166, 4
    %v1170 = vrot.slane %v1168, 4
    %v1171 = vsel %vm205, %v1169, %v1166
    %v1172 = vsel %vm112, %v1169, %v1170
    %v1173 = vsel %vm205, %v1172, %v1168
    %v1177 = vmul.bf16 %v1108, %v1171
    %v1178 = vmul.bf16 %v1109, %v1173
    %v1179 = vmul.bf16 %v1110, %v1170
    %1183 = vrot.lane.b32.xlu0 %v1177, 16
    %v1184 = vpop.permute.xlu0 %1183
    %1185 = vrot.lane.b32.xlu0 %v1178, 16
    %v1186 = vpop.permute.xlu0 %1185
    %1187 = vrot.lane.b32.xlu0 %v1179, 16
    %v1188 = vpop.permute.xlu0 %1187
    %v1189 = vrot.slane %v1184, 4
    %v1190 = vrot.slane %v1186, 4
    %v1191 = vrot.slane %v1188, 4
    %v1192 = vsel %vm112, %v1189, %v1190
    %v1193 = vsel %vm228, %v1184, %v1192
    %v1194 = vsel %vm112, %v1190, %v1191
    %v1195 = vsel %vm228, %v1186, %v1194
    %1198 = vst [vmem:[#allocation5 + $0x10] sm:$0xff] %v1193
    %1199 = vst [vmem:[#allocation5 + $0x18] sm:$0xff] %v1195
    %v1200 = vld [vmem:[#allocation4] sm:$0xff]
    %v1201 = vld [vmem:[#allocation4 + $0x8] sm:$0xff]
    %v1202 = vld [vmem:[#allocation4 + $0x10] sm:$0xf]
    %v1203 = vld [vmem:[%s1] sm:$0x22]
    %v1204 = vld [vmem:[%s1 + $0x8] sm:$0x22]
    %v1207 = vunpack.c.l.b16 %v1203
    %v1208 = vunpack.c.h.b16 %v1203
    %v1209 = vunpack.c.l.b16 %v1204
    %v1210 = vunpack.c.h.b16 %v1204
    %v1211 = vpack.c.b16 %v1207, %v1207
    %v1212 = vpack.c.b16 %v1208, %v1208
    %v1213 = vpack.c.b16 %v1209, %v1209
    %v1214 = vpack.c.b16 %v1210, %v1210
    %v1216 = vpack.i.b16 %v1211, %v1211
    %v1218 = vlaneseq
    %v1219 = vshrl.u32 %v1218, 7
    %v1220 = vsub.s32 1, %v1219
    %v1221 = vrot.slane %v1216, %v1220
    %v1223 = vpack.i.b16 %v1212, %v1212
    %v1225 = vlaneseq
    %v1226 = vshrl.u32 %v1225, 7
    %v1227 = vsub.s32 1, %v1226
    %v1228 = vrot.slane %v1223, %v1227
    %v1230 = vpack.i.b16 %v1213, %v1213
    %v1232 = vlaneseq
    %v1233 = vshrl.u32 %v1232, 7
    %v1234 = vsub.s32 1, %v1233
    %v1235 = vrot.slane %v1230, %v1234
    %v1237 = vpack.i.b16 %v1214, %v1214
    %v1239 = vlaneseq
    %v1240 = vshrl.u32 %v1239, 7
    %v1241 = vsub.s32 1, %v1240
    %v1242 = vrot.slane %v1237, %v1241
    %v1247 = vunpack.c.l.b16 %v1221
    %v1248 = vunpack.c.l.b16 %v1228
    %v1249 = vunpack.c.l.b16 %v1235
    %v1250 = vunpack.c.l.b16 %v1242
    %v1251 = vpack.c.b16 %v1248, %v1247
    %v1252 = vpack.c.b16 %v1250, %v1249
    %1253 = vrot.lane.b32.xlu0 %v1251, 113
    %v1254 = vpop.permute.xlu0 %1253
    %1255 = vrot.lane.b32.xlu0 %v1252, 113
    %v1256 = vpop.permute.xlu0 %1255
    %v1257 = vrot.slane %v1254, 4
    %v1258 = vrot.slane %v1256, 4
    %v1259 = vsel %vm295, %v1257, %v1254
    %v1260 = vsel %vm112, %v1257, %v1258
    %v1261 = vsel %vm295, %v1260, %v1256
    %v1265 = vmul.bf16 %v1200, %v1259
    %v1266 = vmul.bf16 %v1201, %v1261
    %v1267 = vmul.bf16 %v1202, %v1258
    %1271 = vrot.lane.b32.xlu0 %v1265, 15
    %v1272 = vpop.permute.xlu0 %1271
    %1273 = vrot.lane.b32.xlu0 %v1266, 15
    %v1274 = vpop.permute.xlu0 %1273
    %1275 = vrot.lane.b32.xlu0 %v1267, 15
    %v1276 = vpop.permute.xlu0 %1275
    %v1277 = vrot.slane %v1272, 4
    %v1278 = vrot.slane %v1274, 4
    %v1279 = vrot.slane %v1276, 4
    %v1280 = vsel %vm112, %v1277, %v1278
    %v1281 = vsel %vm318, %v1272, %v1280
    %v1282 = vsel %vm112, %v1278, %v1279
    %v1283 = vsel %vm318, %v1274, %v1282
    %1286 = vst [vmem:[#allocation5 + $0x20] sm:$0xff] %v1281
    %1287 = vst [vmem:[#allocation5 + $0x28] sm:$0xff] %v1283
    %v1288 = vld [vmem:[#allocation4] sm:$0xff]
    %v1289 = vld [vmem:[#allocation4 + $0x8] sm:$0xff]
    %v1290 = vld [vmem:[#allocation4 + $0x10] sm:$0xf]
    %v1291 = vld [vmem:[%s1] sm:$0x22]
    %v1292 = vld [vmem:[%s1 + $0x8] sm:$0x22]
    %v1295 = vunpack.c.l.b16 %v1291
    %v1296 = vunpack.c.h.b16 %v1291
    %v1297 = vunpack.c.l.b16 %v1292
    %v1298 = vunpack.c.h.b16 %v1292
    %v1299 = vpack.c.b16 %v1295, %v1295
    %v1300 = vpack.c.b16 %v1296, %v1296
    %v1301 = vpack.c.b16 %v1297, %v1297
    %v1302 = vpack.c.b16 %v1298, %v1298
    %v1304 = vshrl.u32 %v1299, 16
    %v1305 = vpack.i.b16 %v1304, %v1304
    %v1307 = vlaneseq
    %v1308 = vshrl.u32 %v1307, 7
    %v1309 = vsub.s32 1, %v1308
    %v1310 = vrot.slane %v1305, %v1309
    %v1312 = vshrl.u32 %v1300, 16
    %v1313 = vpack.i.b16 %v1312, %v1312
    %v1315 = vlaneseq
    %v1316 = vshrl.u32 %v1315, 7
    %v1317 = vsub.s32 1, %v1316
    %v1318 = vrot.slane %v1313, %v1317
    %v1320 = vshrl.u32 %v1301, 16
    %v1321 = vpack.i.b16 %v1320, %v1320
    %v1323 = vlaneseq
    %v1324 = vshrl.u32 %v1323, 7
    %v1325 = vsub.s32 1, %v1324
    %v1326 = vrot.slane %v1321, %v1325
    %v1328 = vshrl.u32 %v1302, 16
    %v1329 = vpack.i.b16 %v1328, %v1328
    %v1331 = vlaneseq
    %v1332 = vshrl.u32 %v1331, 7
    %v1333 = vsub.s32 1, %v1332
    %v1334 = vrot.slane %v1329, %v1333
    %v1339 = vunpack.c.l.b16 %v1310
    %v1340 = vunpack.c.l.b16 %v1318
    %v1341 = vunpack.c.l.b16 %v1326
    %v1342 = vunpack.c.l.b16 %v1334
    %v1343 = vpack.c.b16 %v1340, %v1339
    %v1344 = vpack.c.b16 %v1342, %v1341
    %1345 = vrot.lane.b32.xlu0 %v1343, 127
    %v1346 = vpop.permute.xlu0 %1345
    %1347 = vrot.lane.b32.xlu0 %v1344, 127
    %v1348 = vpop.permute.xlu0 %1347
    %v1349 = vrot.slane %v1346, 4
    %v1350 = vrot.slane %v1348, 4
    %v1351 = vsel %vm389, %v1349, %v1346
    %v1352 = vsel %vm112, %v1349, %v1350
    %v1353 = vsel %vm389, %v1352, %v1348
    %v1357 = vmul.bf16 %v1288, %v1351
    %v1358 = vmul.bf16 %v1289, %v1353
    %v1359 = vmul.bf16 %v1290, %v1350
    %1363 = vrot.lane.b32.xlu0 %v1357, 1
    %v1364 = vpop.permute.xlu0 %1363
    %1365 = vrot.lane.b32.xlu0 %v1358, 1
    %v1366 = vpop.permute.xlu0 %1365
    %1367 = vrot.lane.b32.xlu0 %v1359, 1
    %v1368 = vpop.permute.xlu0 %1367
    %v1369 = vrot.slane %v1364, 4
    %v1370 = vrot.slane %v1366, 4
    %v1371 = vrot.slane %v1368, 4
    %v1372 = vsel %vm112, %v1369, %v1370
    %v1373 = vsel %vm412, %v1364, %v1372
    %v1374 = vsel %vm112, %v1370, %v1371
    %v1375 = vsel %vm412, %v1366, %v1374
    %1378 = vst [vmem:[#allocation5 + $0x30] sm:$0xff] %v1373
    %1379 = vst [vmem:[#allocation5 + $0x38] sm:$0xff] %v1375
    %v1380 = vld [vmem:[#allocation4 + $0x4] sm:$0xff]
    %v1381 = vld [vmem:[#allocation4 + $0xc] sm:$0xff]
    %1382 = vst [vmem:[#allocation5 + $0x40] sm:$0xff] %v1380
    %1383 = vst [vmem:[#allocation5 + $0x48] sm:$0xff] %v1381
    %v1384 = vld [vmem:[#allocation4 + $0x4] sm:$0xff]
    %v1385 = vld [vmem:[#allocation4 + $0xc] sm:$0xff]
    %v1386 = vld [vmem:[#allocation4 + $0x14] sm:$0xf]
    %v1387 = vld [vmem:[%s1] sm:$0x44]
    %v1388 = vld [vmem:[%s1 + $0x8] sm:$0x44]
    %v1391 = vunpack.c.l.b16 %v1387
    %v1392 = vunpack.c.h.b16 %v1387
    %v1393 = vunpack.c.l.b16 %v1388
    %v1394 = vunpack.c.h.b16 %v1388
    %v1395 = vpack.c.b16 %v1391, %v1391
    %v1396 = vpack.c.b16 %v1392, %v1392
    %v1397 = vpack.c.b16 %v1393, %v1393
    %v1398 = vpack.c.b16 %v1394, %v1394
    %v1400 = vshrl.u32 %v1395, 16
    %v1401 = vpack.i.b16 %v1400, %v1400
    %v1403 = vlaneseq
    %v1404 = vshrl.u32 %v1403, 7
    %v1405 = vsub.s32 2, %v1404
    %v1406 = vrot.slane %v1401, %v1405
    %v1408 = vshrl.u32 %v1396, 16
    %v1409 = vpack.i.b16 %v1408, %v1408
    %v1411 = vlaneseq
    %v1412 = vshrl.u32 %v1411, 7
    %v1413 = vsub.s32 2, %v1412
    %v1414 = vrot.slane %v1409, %v1413
    %v1416 = vshrl.u32 %v1397, 16
    %v1417 = vpack.i.b16 %v1416, %v1416
    %v1419 = vlaneseq
    %v1420 = vshrl.u32 %v1419, 7
    %v1421 = vsub.s32 2, %v1420
    %v1422 = vrot.slane %v1417, %v1421
    %v1424 = vshrl.u32 %v1398, 16
    %v1425 = vpack.i.b16 %v1424, %v1424
    %v1427 = vlaneseq
    %v1428 = vshrl.u32 %v1427, 7
    %v1429 = vsub.s32 2, %v1428
    %v1430 = vrot.slane %v1425, %v1429
    %v1435 = vunpack.c.l.b16 %v1406
    %v1436 = vunpack.c.l.b16 %v1414
    %v1437 = vunpack.c.l.b16 %v1422
    %v1438 = vunpack.c.l.b16 %v1430
    %v1439 = vpack.c.b16 %v1436, %v1435
    %v1440 = vpack.c.b16 %v1438, %v1437
    %1441 = vrot.lane.b32.xlu0 %v1439, 1
    %v1442 = vpop.permute.xlu0 %1441
    %1443 = vrot.lane.b32.xlu0 %v1440, 1
    %v1444 = vpop.permute.xlu0 %1443
    %v1445 = vrot.slane %v1442, 4
    %v1446 = vrot.slane %v1444, 4
    %v1447 = vsel %vm412, %v1445, %v1442
    %v1448 = vsel %vm112, %v1445, %v1446
    %v1449 = vsel %vm412, %v1448, %v1444
    %v1453 = vmul.bf16 %v1384, %v1447
    %v1454 = vmul.bf16 %v1385, %v1449
    %v1455 = vmul.bf16 %v1386, %v1446
    %1459 = vrot.lane.b32.xlu0 %v1453, 127
    %v1460 = vpop.permute.xlu0 %1459
    %1461 = vrot.lane.b32.xlu0 %v1454, 127
    %v1462 = vpop.permute.xlu0 %1461
    %1463 = vrot.lane.b32.xlu0 %v1455, 127
    %v1464 = vpop.permute.xlu0 %1463
    %v1465 = vrot.slane %v1460, 4
    %v1466 = vrot.slane %v1462, 4
    %v1467 = vrot.slane %v1464, 4
    %v1468 = vsel %vm112, %v1465, %v1466
    %v1469 = vsel %vm389, %v1460, %v1468
    %v1470 = vsel %vm112, %v1466, %v1467
    %v1471 = vsel %vm389, %v1462, %v1470
    %1474 = vst [vmem:[#allocation5 + $0x50] sm:$0xff] %v1469
    %1475 = vst [vmem:[#allocation5 + $0x58] sm:$0xff] %v1471
    %v1476 = vld [vmem:[#allocation4 + $0x4] sm:$0xff]
    %v1477 = vld [vmem:[#allocation4 + $0xc] sm:$0xff]
    %v1478 = vld [vmem:[#allocation4 + $0x14] sm:$0xf]
    %v1479 = vld [vmem:[%s1] sm:$0x88]
    %v1480 = vld [vmem:[%s1 + $0x8] sm:$0x88]
    %v1483 = vunpack.c.l.b16 %v1479
    %v1484 = vunpack.c.h.b16 %v1479
    %v1485 = vunpack.c.l.b16 %v1480
    %v1486 = vunpack.c.h.b16 %v1480
    %v1487 = vpack.c.b16 %v1483, %v1483
    %v1488 = vpack.c.b16 %v1484, %v1484
    %v1489 = vpack.c.b16 %v1485, %v1485
    %v1490 = vpack.c.b16 %v1486, %v1486
    %v1492 = vpack.i.b16 %v1487, %v1487
    %v1494 = vlaneseq
    %v1495 = vshrl.u32 %v1494, 7
    %v1496 = vsub.s32 3, %v1495
    %v1497 = vrot.slane %v1492, %v1496
    %v1499 = vpack.i.b16 %v1488, %v1488
    %v1501 = vlaneseq
    %v1502 = vshrl.u32 %v1501, 7
    %v1503 = vsub.s32 3, %v1502
    %v1504 = vrot.slane %v1499, %v1503
    %v1506 = vpack.i.b16 %v1489, %v1489
    %v1508 = vlaneseq
    %v1509 = vshrl.u32 %v1508, 7
    %v1510 = vsub.s32 3, %v1509
    %v1511 = vrot.slane %v1506, %v1510
    %v1513 = vpack.i.b16 %v1490, %v1490
    %v1515 = vlaneseq
    %v1516 = vshrl.u32 %v1515, 7
    %v1517 = vsub.s32 3, %v1516
    %v1518 = vrot.slane %v1513, %v1517
    %v1523 = vunpack.c.l.b16 %v1497
    %v1524 = vunpack.c.l.b16 %v1504
    %v1525 = vunpack.c.l.b16 %v1511
    %v1526 = vunpack.c.l.b16 %v1518
    %v1527 = vpack.c.b16 %v1524, %v1523
    %v1528 = vpack.c.b16 %v1526, %v1525
    %1529 = vrot.lane.b32.xlu0 %v1527, 15
    %v1530 = vpop.permute.xlu0 %1529
    %1531 = vrot.lane.b32.xlu0 %v1528, 15
    %v1532 = vpop.permute.xlu0 %1531
    %v1533 = vrot.slane %v1530, 4
    %v1534 = vrot.slane %v1532, 4
    %v1535 = vsel %vm318, %v1533, %v1530
    %v1536 = vsel %vm112, %v1533, %v1534
    %v1537 = vsel %vm318, %v1536, %v1532
    %v1541 = vmul.bf16 %v1476, %v1535
    %v1542 = vmul.bf16 %v1477, %v1537
    %v1543 = vmul.bf16 %v1478, %v1534
    %1547 = vrot.lane.b32.xlu0 %v1541, 113
    %v1548 = vpop.permute.xlu0 %1547
    %1549 = vrot.lane.b32.xlu0 %v1542, 113
    %v1550 = vpop.permute.xlu0 %1549
    %1551 = vrot.lane.b32.xlu0 %v1543, 113
    %v1552 = vpop.permute.xlu0 %1551
    %v1553 = vrot.slane %v1548, 4
    %v1554 = vrot.slane %v1550, 4
    %v1555 = vrot.slane %v1552, 4
    %v1556 = vsel %vm112, %v1553, %v1554
    %v1557 = vsel %vm295, %v1548, %v1556
    %v1558 = vsel %vm112, %v1554, %v1555
    %v1559 = vsel %vm295, %v1550, %v1558
    %1562 = vst [vmem:[#allocation5 + $0x60] sm:$0xff] %v1557
    %1563 = vst [vmem:[#allocation5 + $0x68] sm:$0xff] %v1559
    %v1564 = vld [vmem:[#allocation4 + $0x4] sm:$0xff]
    %v1565 = vld [vmem:[#allocation4 + $0xc] sm:$0xff]
    %v1566 = vld [vmem:[#allocation4 + $0x14] sm:$0xf]
    %v1567 = vld [vmem:[%s1] sm:$0x88]
    %v1568 = vld [vmem:[%s1 + $0x8] sm:$0x88]
    %v1571 = vunpack.c.l.b16 %v1567
    %v1572 = vunpack.c.h.b16 %v1567
    %v1573 = vunpack.c.l.b16 %v1568
    %v1574 = vunpack.c.h.b16 %v1568
    %v1575 = vpack.c.b16 %v1571, %v1571
    %v1576 = vpack.c.b16 %v1572, %v1572
    %v1577 = vpack.c.b16 %v1573, %v1573
    %v1578 = vpack.c.b16 %v1574, %v1574
    %v1580 = vshrl.u32 %v1575, 16
    %v1581 = vpack.i.b16 %v1580, %v1580
    %v1583 = vlaneseq
    %v1584 = vshrl.u32 %v1583, 7
    %v1585 = vsub.s32 3, %v1584
    %v1586 = vrot.slane %v1581, %v1585
    %v1588 = vshrl.u32 %v1576, 16
    %v1589 = vpack.i.b16 %v1588, %v1588
    %v1591 = vlaneseq
    %v1592 = vshrl.u32 %v1591, 7
    %v1593 = vsub.s32 3, %v1592
    %v1594 = vrot.slane %v1589, %v1593
    %v1596 = vshrl.u32 %v1577, 16
    %v1597 = vpack.i.b16 %v1596, %v1596
    %v1599 = vlaneseq
    %v1600 = vshrl.u32 %v1599, 7
    %v1601 = vsub.s32 3, %v1600
    %v1602 = vrot.slane %v1597, %v1601
    %v1604 = vshrl.u32 %v1578, 16
    %v1605 = vpack.i.b16 %v1604, %v1604
    %v1607 = vlaneseq
    %v1608 = vshrl.u32 %v1607, 7
    %v1609 = vsub.s32 3, %v1608
    %v1610 = vrot.slane %v1605, %v1609
    %v1615 = vunpack.c.l.b16 %v1586
    %v1616 = vunpack.c.l.b16 %v1594
    %v1617 = vunpack.c.l.b16 %v1602
    %v1618 = vunpack.c.l.b16 %v1610
    %v1619 = vpack.c.b16 %v1616, %v1615
    %v1620 = vpack.c.b16 %v1618, %v1617
    %1621 = vrot.lane.b32.xlu0 %v1619, 16
    %v1622 = vpop.permute.xlu0 %1621
    %1623 = vrot.lane.b32.xlu0 %v1620, 16
    %v1624 = vpop.permute.xlu0 %1623
    %v1625 = vrot.slane %v1622, 4
    %v1626 = vrot.slane %v1624, 4
    %v1627 = vsel %vm228, %v1625, %v1622
    %v1628 = vsel %vm112, %v1625, %v1626
    %v1629 = vsel %vm228, %v1628, %v1624
    %v1633 = vmul.bf16 %v1564, %v1627
    %v1634 = vmul.bf16 %v1565, %v1629
    %v1635 = vmul.bf16 %v1566, %v1626
    %1639 = vrot.lane.b32.xlu0 %v1633, 112
    %v1640 = vpop.permute.xlu0 %1639
    %1641 = vrot.lane.b32.xlu0 %v1634, 112
    %v1642 = vpop.permute.xlu0 %1641
    %1643 = vrot.lane.b32.xlu0 %v1635, 112
    %v1644 = vpop.permute.xlu0 %1643
    %v1645 = vrot.slane %v1640, 4
    %v1646 = vrot.slane %v1642, 4
    %v1647 = vrot.slane %v1644, 4
    %v1648 = vsel %vm112, %v1645, %v1646
    %v1649 = vsel %vm205, %v1640, %v1648
    %v1650 = vsel %vm112, %v1646, %v1647
    %v1651 = vsel %vm205, %v1642, %v1650
    %1654 = vst [vmem:[#allocation5 + $0x70] sm:$0xff] %v1649
    %1655 = vst [vmem:[#allocation5 + $0x78] sm:$0xff] %v1651
    %v1656 = vld [vmem:[#allocation4 + $0x4] sm:$0xff]
    %v1657 = vld [vmem:[#allocation4 + $0xc] sm:$0xff]
    %v1658 = vld [vmem:[#allocation4 + $0x14] sm:$0xf]
    %v1659 = vld [vmem:[%s1 + $0x10] sm:$0x11]
    %v1660 = vld [vmem:[%s1 + $0x18] sm:$0x11]
    %v1663 = vunpack.c.l.b16 %v1659
    %v1664 = vunpack.c.h.b16 %v1659
    %v1665 = vunpack.c.l.b16 %v1660
    %v1666 = vunpack.c.h.b16 %v1660
    %v1667 = vpack.c.b16 %v1663, %v1663
    %v1668 = vpack.c.b16 %v1664, %v1664
    %v1669 = vpack.c.b16 %v1665, %v1665
    %v1670 = vpack.c.b16 %v1666, %v1666
    %v1672 = vpack.i.b16 %v1667, %v1667
    %v1674 = vlaneseq
    %v1675 = vshrl.u32 %v1674, 7
    %v1676 = vsub.s32 0, %v1675
    %v1677 = vrot.slane %v1672, %v1676
    %v1679 = vpack.i.b16 %v1668, %v1668
    %v1681 = vlaneseq
    %v1682 = vshrl.u32 %v1681, 7
    %v1683 = vsub.s32 0, %v1682
    %v1684 = vrot.slane %v1679, %v1683
    %v1686 = vpack.i.b16 %v1669, %v1669
    %v1688 = vlaneseq
    %v1689 = vshrl.u32 %v1688, 7
    %v1690 = vsub.s32 0, %v1689
    %v1691 = vrot.slane %v1686, %v1690
    %v1693 = vpack.i.b16 %v1670, %v1670
    %v1695 = vlaneseq
    %v1696 = vshrl.u32 %v1695, 7
    %v1697 = vsub.s32 0, %v1696
    %v1698 = vrot.slane %v1693, %v1697
    %v1703 = vunpack.c.l.b16 %v1677
    %v1704 = vunpack.c.l.b16 %v1684
    %v1705 = vunpack.c.l.b16 %v1691
    %v1706 = vunpack.c.l.b16 %v1698
    %v1707 = vpack.c.b16 %v1704, %v1703
    %v1708 = vpack.c.b16 %v1706, %v1705
    %1709 = vrot.lane.b32.xlu0 %v1707, 17
    %v1710 = vpop.permute.xlu0 %1709
    %1711 = vrot.lane.b32.xlu0 %v1708, 17
    %v1712 = vpop.permute.xlu0 %1711
    %v1713 = vrot.slane %v1710, 4
    %v1714 = vrot.slane %v1712, 4
    %v1715 = vsel %vm134, %v1713, %v1710
    %v1716 = vsel %vm112, %v1713, %v1714
    %v1717 = vsel %vm134, %v1716, %v1712
    %v1721 = vmul.bf16 %v1656, %v1715
    %v1722 = vmul.bf16 %v1657, %v1717
    %v1723 = vmul.bf16 %v1658, %v1714
    %1727 = vrot.lane.b32.xlu0 %v1721, 111
    %v1728 = vpop.permute.xlu0 %1727
    %1729 = vrot.lane.b32.xlu0 %v1722, 111
    %v1730 = vpop.permute.xlu0 %1729
    %1731 = vrot.lane.b32.xlu0 %v1723, 111
    %v1732 = vpop.permute.xlu0 %1731
    %v1733 = vrot.slane %v1728, 4
    %v1734 = vrot.slane %v1730, 4
    %v1735 = vrot.slane %v1732, 4
    %v1736 = vsel %vm112, %v1733, %v1734
    %v1737 = vsel %vm110, %v1728, %v1736
    %v1738 = vsel %vm112, %v1734, %v1735
    %v1739 = vsel %vm110, %v1730, %v1738
    %1742 = vst [vmem:[#allocation5 + $0x80] sm:$0xff] %v1737
    %1743 = vst [vmem:[#allocation5 + $0x88] sm:$0xff] %v1739
    %v1744 = vld [vmem:[%s5] sm:$0xff]
    %v1745 = vld [vmem:[%s5 + $0x8] sm:$0xff]
    %v1746 = vld [vmem:[%s5 + $0x10] sm:$0xff]
    %v1747 = vld [vmem:[%s5 + $0x18] sm:$0xff]
    %v1748 = vld [vmem:[%s5 + $0x20] sm:$0xff]
    %v1749 = vld [vmem:[%s5 + $0x28] sm:$0xff]
    %v1750 = vld [vmem:[%s5 + $0x30] sm:$0xff]
    %v1751 = vld [vmem:[%s5 + $0x38] sm:$0xff]
    %v1752 = vld [vmem:[%s4] sm:$0xf]
    %v1753 = vld [vmem:[%s4 + $0x4] sm:$0xf]
    %v1754 = vld [vmem:[#allocation5] sm:$0xff]
    %v1755 = vld [vmem:[#allocation5 + $0x8] sm:$0xff]
    %v1756 = vld [vmem:[#allocation5 + $0x10] sm:$0xff]
    %v1757 = vld [vmem:[#allocation5 + $0x18] sm:$0xff]
    %v1758 = vld [vmem:[#allocation5 + $0x20] sm:$0xff]
    %v1759 = vld [vmem:[#allocation5 + $0x28] sm:$0xff]
    %v1760 = vld [vmem:[#allocation5 + $0x30] sm:$0xff]
    %v1761 = vld [vmem:[#allocation5 + $0x38] sm:$0xff]
    %v1762 = vld [vmem:[#allocation5 + $0x40] sm:$0xff]
    %v1763 = vld [vmem:[#allocation5 + $0x48] sm:$0xff]
    %v1764 = vld [vmem:[#allocation5 + $0x50] sm:$0xff]
    %v1765 = vld [vmem:[#allocation5 + $0x58] sm:$0xff]
    %v1766 = vld [vmem:[#allocation5 + $0x60] sm:$0xff]
    %v1767 = vld [vmem:[#allocation5 + $0x68] sm:$0xff]
    %v1768 = vld [vmem:[#allocation5 + $0x70] sm:$0xff]
    %v1769 = vld [vmem:[#allocation5 + $0x78] sm:$0xff]
    %v1770 = vld [vmem:[#allocation5 + $0x80] sm:$0xff]
    %v1771 = vld [vmem:[#allocation5 + $0x88] sm:$0xff]
    %v1774 = vunpack.c.l.b16 %v1752
    %v1775 = vunpack.c.l.b16 %v1753
    %v1776 = vpack.c.b16 %v1775, %v1774
    %v1795 = vunpack.c.l.b16 %v1754
    %v1796 = vunpack.c.h.b16 %v1754
    %v1797 = vunpack.c.l.b16 %v1755
    %v1798 = vunpack.c.h.b16 %v1755
    %v1799 = vunpack.c.l.b16 %v1756
    %v1800 = vunpack.c.h.b16 %v1756
    %v1801 = vunpack.c.l.b16 %v1757
    %v1802 = vunpack.c.h.b16 %v1757
    %v1803 = vunpack.c.l.b16 %v1758
    %v1804 = vunpack.c.h.b16 %v1758
    %v1805 = vunpack.c.l.b16 %v1759
    %v1806 = vunpack.c.h.b16 %v1759
    %v1807 = vunpack.c.l.b16 %v1760
    %v1808 = vunpack.c.h.b16 %v1760
    %v1809 = vunpack.c.l.b16 %v1761
    %v1810 = vunpack.c.h.b16 %v1761
    %v1811 = vunpack.c.l.b16 %v1762
    %v1812 = vunpack.c.h.b16 %v1762
    %v1813 = vunpack.c.l.b16 %v1763
    %v1814 = vunpack.c.h.b16 %v1763
    %v1815 = vunpack.c.l.b16 %v1764
    %v1816 = vunpack.c.h.b16 %v1764
    %v1817 = vunpack.c.l.b16 %v1765
    %v1818 = vunpack.c.h.b16 %v1765
    %v1819 = vunpack.c.l.b16 %v1766
    %v1820 = vunpack.c.h.b16 %v1766
    %v1821 = vunpack.c.l.b16 %v1767
    %v1822 = vunpack.c.h.b16 %v1767
    %v1823 = vunpack.c.l.b16 %v1768
    %v1824 = vunpack.c.h.b16 %v1768
    %v1825 = vunpack.c.l.b16 %v1769
    %v1826 = vunpack.c.h.b16 %v1769
    %v1827 = vunpack.c.l.b16 %v1770
    %v1828 = vunpack.c.h.b16 %v1770
    %v1829 = vunpack.c.l.b16 %v1771
    %v1830 = vunpack.c.h.b16 %v1771
    %v1831 = vpack.c.b16 %v1799, %v1795
    %v1832 = vpack.c.b16 %v1800, %v1796
    %v1833 = vpack.c.b16 %v1801, %v1797
    %v1834 = vpack.c.b16 %v1802, %v1798
    %v1835 = vpack.c.b16 %v1807, %v1803
    %v1836 = vpack.c.b16 %v1808, %v1804
    %v1837 = vpack.c.b16 %v1809, %v1805
    %v1838 = vpack.c.b16 %v1810, %v1806
    %v1839 = vpack.c.b16 %v1815, %v1811
    %v1840 = vpack.c.b16 %v1816, %v1812
    %v1841 = vpack.c.b16 %v1817, %v1813
    %v1842 = vpack.c.b16 %v1818, %v1814
    %v1843 = vpack.c.b16 %v1823, %v1819
    %v1844 = vpack.c.b16 %v1824, %v1820
    %v1845 = vpack.c.b16 %v1825, %v1821
    %v1846 = vpack.c.b16 %v1826, %v1822
    %v1847 = vpack.c.b16 %v1827, %v1827
    %v1848 = vpack.c.b16 %v1828, %v1828
    %v1849 = vpack.c.b16 %v1829, %v1829
    %v1850 = vpack.c.b16 %v1830, %v1830
    %v1868 = vsel %vm897, %v1776, 0
    %v1871 = vsel %vm901, %v1847, 0
    %v1874 = vsel %vm901, %v1848, 0
    %v1877 = vsel %vm901, %v1849, 0
    %v1880 = vsel %vm901, %v1850, 0
    %1882 = vmatprep.subr.bf16.mxu0 0
    %1883 = vmatpush1.bf16.msra.mxu0 0
    %1884 = vmatprep.subr.bf16.mxu0 0
    %1885 = vmatpush1.bf16.msra.mxu0 0
    %1886 = vmatprep.subr.bf16.mxu0 0
    %1887 = vmatpush1.bf16.msra.mxu0 0
    %1888 = vmatprep.subr.bf16.mxu0 %v1874
    %1889 = vmatpush1.bf16.msra.mxu0 %v1871
    %1890 = vmatprep.subr.bf16.mxu0 %v1844
    %1891 = vmatpush1.bf16.msra.mxu0 %v1843
    %1892 = vmatprep.subr.bf16.mxu0 %v1840
    %1893 = vmatpush1.bf16.msra.mxu0 %v1839
    %1894 = vmatprep.subr.bf16.mxu0 %v1836
    %1895 = vmatpush1.bf16.msra.mxu0 %v1835
    %1896 = vmatprep.subr.bf16.mxu0 %v1832
    %1897 = vmatpush1.bf16.msra.mxu0 %v1831
    %1898 = vmatprep.subr.bf16.mxu0 0
    %1899 = vmatpush2.bf16.msra.mxu0 0
    %1900 = vmatprep.subr.bf16.mxu0 0
    %1901 = vmatpush2.bf16.msra.mxu0 0
    %1902 = vmatprep.subr.bf16.mxu0 0
    %1903 = vmatpush2.bf16.msra.mxu0 0
    %1904 = vmatprep.subr.bf16.mxu0 0
    %1905 = vmatpush2.bf16.msra.mxu0 0
    %1906 = vmatprep.subr.bf16.mxu0 0
    %1907 = vmatpush2.bf16.msra.mxu0 0
    %1908 = vmatprep.subr.bf16.mxu0 0
    %1909 = vmatpush2.bf16.msra.mxu0 0
    %1910 = vmatprep.subr.bf16.mxu0 0
    %1911 = vmatpush2.bf16.msra.mxu0 0
    %1912 = vmatprep.subr.bf16.mxu0 0
    %1913 = vmatpush2.bf16.msra.mxu0 0
    %1914 = vmatprep.mubr.bf16.mxu0 0
    %1915 = vmatmul.mubr.bf16.gmra.mxu0 %v1868
    %v1916 = vpop.f32.mrf.mxu0
    %v1917 = vadd.f32 0.0, %v1916
    %v1918 = vpop.f32.mrf.mxu0
    %v1919 = vadd.f32 0.0, %v1918
    %v1920 = vpop.f32.mrf.mxu0
    %v1921 = vadd.f32 0.0, %v1920
    %v1922 = vpop.f32.mrf.mxu0
    %v1923 = vadd.f32 0.0, %v1922
    %1924 = vdwg.mxu0
    %1925 = vmatprep.subr.bf16.mxu0 0
    %1926 = vmatpush1.bf16.msra.mxu0 0
    %1927 = vmatprep.subr.bf16.mxu0 0
    %1928 = vmatpush1.bf16.msra.mxu0 0
    %1929 = vmatprep.subr.bf16.mxu0 0
    %1930 = vmatpush1.bf16.msra.mxu0 0
    %1931 = vmatprep.subr.bf16.mxu0 %v1880
    %1932 = vmatpush1.bf16.msra.mxu0 %v1877
    %1933 = vmatprep.subr.bf16.mxu0 %v1846
    %1934 = vmatpush1.bf16.msra.mxu0 %v1845
    %1935 = vmatprep.subr.bf16.mxu0 %v1842
    %1936 = vmatpush1.bf16.msra.mxu0 %v1841
    %1937 = vmatprep.subr.bf16.mxu0 %v1838
    %1938 = vmatpush1.bf16.msra.mxu0 %v1837
    %1939 = vmatprep.subr.bf16.mxu0 %v1834
    %1940 = vmatpush1.bf16.msra.mxu0 %v1833
    %1941 = vmatprep.subr.bf16.mxu0 0
    %1942 = vmatpush2.bf16.msra.mxu0 0
    %1943 = vmatprep.subr.bf16.mxu0 0
    %1944 = vmatpush2.bf16.msra.mxu0 0
    %1945 = vmatprep.subr.bf16.mxu0 0
    %1946 = vmatpush2.bf16.msra.mxu0 0
    %1947 = vmatprep.subr.bf16.mxu0 0
    %1948 = vmatpush2.bf16.msra.mxu0 0
    %1949 = vmatprep.subr.bf16.mxu0 0
    %1950 = vmatpush2.bf16.msra.mxu0 0
    %1951 = vmatprep.subr.bf16.mxu0 0
    %1952 = vmatpush2.bf16.msra.mxu0 0
    %1953 = vmatprep.subr.bf16.mxu0 0
    %1954 = vmatpush2.bf16.msra.mxu0 0
    %1955 = vmatprep.subr.bf16.mxu0 0
    %1956 = vmatpush2.bf16.msra.mxu0 0
    %1957 = vmatprep.mubr.bf16.mxu0 0
    %1958 = vmatmul.mubr.bf16.gmra.mxu0 %v1868
    %v1959 = vpop.f32.mrf.mxu0
    %v1960 = vadd.f32 0.0, %v1959
    %v1961 = vpop.f32.mrf.mxu0
    %v1962 = vadd.f32 0.0, %v1961
    %v1963 = vpop.f32.mrf.mxu0
    %v1964 = vadd.f32 0.0, %v1963
    %v1965 = vpop.f32.mrf.mxu0
    %v1966 = vadd.f32 0.0, %v1965
    %1967 = vdwg.mxu0
    %v1968 = vadd.f32 %v1744, %v1917
    %v1969 = vadd.f32 %v1745, %v1919
    %v1970 = vadd.f32 %v1746, %v1960
    %v1971 = vadd.f32 %v1747, %v1962
    %v1972 = vadd.f32 %v1748, %v1921
    %v1973 = vadd.f32 %v1749, %v1923
    %v1974 = vadd.f32 %v1750, %v1964
    %v1975 = vadd.f32 %v1751, %v1966
    %v1976 = vpack.c.bf16 %v1972, %v1968
    %v1977 = vpack.c.bf16 %v1973, %v1969
    %v1978 = vpack.c.bf16 %v1974, %v1970
    %v1979 = vpack.c.bf16 %v1975, %v1971
    %v1982 = vcombine.low %v1976, %v1977
    %v1984 = vunpack.c.l.s4 1966171168
    %v1985 = vunpack.c.0.s8 %v1984
    %v1986 = vlaneseq
    %v1987 = vshrl.u32 %v1986, 7
    %v1988 = vsub.s32 %v1985, %v1987
    %v1989 = vrot.slane %v1982, %v1988
    %v1991 = vunpack.c.l.s4 1966171168
    %v1992 = vunpack.c.0.s8 %v1991
    %v1993 = vlaneseq
    %v1994 = vshrl.u32 %v1993, 7
    %v1995 = vsub.s32 %v1992, %v1994
    %v1996 = vrot.slane %v1989, %v1995
    %vm1998 = vcmask 1040384
    %vm1999 = vsmask.f32 256
    %vm2000 = vmand %vm1998, %vm1999
    %vm2001 = vcmask 1041409
    %vm2002 = vsmask.f32 1280
    %vm2003 = vmand %vm2001, %vm2002
    %vm2004 = vmor %vm2003, %vm2000
    %v2005 = vld [vmem:[#allocation6] sm:$0x3]
    %v2006 = vsel %vm2004, %v1996, %v2005
    %2007 = vst [vmem:[#allocation6] sm:$0x3] %v2006
    %v2009 = vshrl.u32 %v1996, 16
    %v2011 = vrot.slane %v2009, 7
    %v2012 = vrot.slane %v2011, 1
    %v2014 = vld [vmem:[#allocation6 + $0x2] sm:$0x3]
    %v2015 = vsel %vm2004, %v2012, %v2014
    %2016 = vst [vmem:[#allocation6 + $0x2] sm:$0x3] %v2015
    %v2017 = vcombine.high %v1989, %v1989
    %v2019 = vunpack.c.l.s4 1966171168
    %v2020 = vunpack.c.0.s8 %v2019
    %v2021 = vlaneseq
    %v2022 = vshrl.u32 %v2021, 7
    %v2023 = vsub.s32 %v2020, %v2022
    %v2024 = vrot.slane %v2017, %v2023
    %v2026 = vld [vmem:[#allocation6 + $0x4] sm:$0x3]
    %v2027 = vsel %vm2004, %v2024, %v2026
    %2028 = vst [vmem:[#allocation6 + $0x4] sm:$0x3] %v2027
    %v2030 = vshrl.u32 %v2024, 16
    %v2032 = vrot.slane %v2030, 7
    %v2033 = vrot.slane %v2032, 1
    %v2035 = vld [vmem:[#allocation6 + $0x6] sm:$0x3]
    %v2036 = vsel %vm2004, %v2033, %v2035
    %2037 = vst [vmem:[#allocation6 + $0x6] sm:$0x3] %v2036
    %v2038 = vcombine.high %v1996, %v1996
    %v2040 = vld [vmem:[#allocation6 + $0x8] sm:$0x3]
    %v2041 = vsel %vm2004, %v2038, %v2040
    %2042 = vst [vmem:[#allocation6 + $0x8] sm:$0x3] %v2041
    %v2044 = vshrl.u32 %v2038, 16
    %v2046 = vrot.slane %v2044, 7
    %v2047 = vrot.slane %v2046, 1
    %v2049 = vld [vmem:[#allocation6 + $0xa] sm:$0x3]
    %v2050 = vsel %vm2004, %v2047, %v2049
    %2051 = vst [vmem:[#allocation6 + $0xa] sm:$0x3] %v2050
    %v2052 = vcombine.high %v2024, %v2024
    %v2054 = vld [vmem:[#allocation6 + $0xc] sm:$0x3]
    %v2055 = vsel %vm2004, %v2052, %v2054
    %2056 = vst [vmem:[#allocation6 + $0xc] sm:$0x3] %v2055
    %v2058 = vshrl.u32 %v2052, 16
    %v2060 = vrot.slane %v2058, 7
    %v2061 = vrot.slane %v2060, 1
    %v2063 = vld [vmem:[#allocation6 + $0xe] sm:$0x3]
    %v2064 = vsel %vm2004, %v2061, %v2063
    %2065 = vst [vmem:[#allocation6 + $0xe] sm:$0x3] %v2064
    %v2066 = vcombine.high %v1976, %v1977
    %v2068 = vunpack.c.l.s4 1966171168
    %v2069 = vunpack.c.0.s8 %v2068
    %v2070 = vlaneseq
    %v2071 = vshrl.u32 %v2070, 7
    %v2072 = vsub.s32 %v2069, %v2071
    %v2073 = vrot.slane %v2066, %v2072
    %v2075 = vunpack.c.l.s4 1966171168
    %v2076 = vunpack.c.0.s8 %v2075
    %v2077 = vlaneseq
    %v2078 = vshrl.u32 %v2077, 7
    %v2079 = vsub.s32 %v2076, %v2078
    %v2080 = vrot.slane %v2073, %v2079
    %v2082 = vld [vmem:[#allocation6 + $0x10] sm:$0x3]
    %v2083 = vsel %vm2004, %v2080, %v2082
    %2084 = vst [vmem:[#allocation6 + $0x10] sm:$0x3] %v2083
    %v2086 = vshrl.u32 %v2080, 16
    %v2088 = vrot.slane %v2086, 7
    %v2089 = vrot.slane %v2088, 1
    %v2091 = vld [vmem:[#allocation6 + $0x12] sm:$0x3]
    %v2092 = vsel %vm2004, %v2089, %v2091
    %2093 = vst [vmem:[#allocation6 + $0x12] sm:$0x3] %v2092
    %v2094 = vcombine.high %v2073, %v2073
    %v2096 = vunpack.c.l.s4 1966171168
    %v2097 = vunpack.c.0.s8 %v2096
    %v2098 = vlaneseq
    %v2099 = vshrl.u32 %v2098, 7
    %v2100 = vsub.s32 %v2097, %v2099
    %v2101 = vrot.slane %v2094, %v2100
    %v2103 = vld [vmem:[#allocation6 + $0x14] sm:$0x3]
    %v2104 = vsel %vm2004, %v2101, %v2103
    %2105 = vst [vmem:[#allocation6 + $0x14] sm:$0x3] %v2104
    %v2107 = vshrl.u32 %v2101, 16
    %v2109 = vrot.slane %v2107, 7
    %v2110 = vrot.slane %v2109, 1
    %v2112 = vld [vmem:[#allocation6 + $0x16] sm:$0x3]
    %v2113 = vsel %vm2004, %v2110, %v2112
    %2114 = vst [vmem:[#allocation6 + $0x16] sm:$0x3] %v2113
    %v2115 = vcombine.high %v2080, %v2080
    %v2117 = vld [vmem:[#allocation6 + $0x18] sm:$0x3]
    %v2118 = vsel %vm2004, %v2115, %v2117
    %2119 = vst [vmem:[#allocation6 + $0x18] sm:$0x3] %v2118
    %v2121 = vshrl.u32 %v2115, 16
    %v2123 = vrot.slane %v2121, 7
    %v2124 = vrot.slane %v2123, 1
    %v2126 = vld [vmem:[#allocation6 + $0x1a] sm:$0x3]
    %v2127 = vsel %vm2004, %v2124, %v2126
    %2128 = vst [vmem:[#allocation6 + $0x1a] sm:$0x3] %v2127
    %v2129 = vcombine.high %v2101, %v2101
    %v2131 = vld [vmem:[#allocation6 + $0x1c] sm:$0x3]
    %v2132 = vsel %vm2004, %v2129, %v2131
    %2133 = vst [vmem:[#allocation6 + $0x1c] sm:$0x3] %v2132
    %v2135 = vshrl.u32 %v2129, 16
    %v2137 = vrot.slane %v2135, 7
    %v2138 = vrot.slane %v2137, 1
    %v2140 = vld [vmem:[#allocation6 + $0x1e] sm:$0x3]
    %v2141 = vsel %vm2004, %v2138, %v2140
    %2142 = vst [vmem:[#allocation6 + $0x1e] sm:$0x3] %v2141
    %v2145 = vcombine.low %v1978, %v1979
    %v2147 = vunpack.c.l.s4 1966171168
    %v2148 = vunpack.c.0.s8 %v2147
    %v2149 = vlaneseq
    %v2150 = vshrl.u32 %v2149, 7
    %v2151 = vsub.s32 %v2148, %v2150
    %v2152 = vrot.slane %v2145, %v2151
    %v2154 = vunpack.c.l.s4 1966171168
    %v2155 = vunpack.c.0.s8 %v2154
    %v2156 = vlaneseq
    %v2157 = vshrl.u32 %v2156, 7
    %v2158 = vsub.s32 %v2155, %v2157
    %v2159 = vrot.slane %v2152, %v2158
    %v2161 = vshll.u32 %v2159, 16
    %vm2164 = vsmask.f32 7938
    %vm2165 = vmand %vm1998, %vm2164
    %vm2166 = vsmask.f32 7942
    %vm2167 = vmand %vm2001, %vm2166
    %vm2168 = vmor %vm2167, %vm2165
    %v2169 = vld [vmem:[#allocation6] sm:$0x3]
    %v2170 = vsel %vm2168, %v2161, %v2169
    %2171 = vst [vmem:[#allocation6] sm:$0x3] %v2170
    %v2173 = vld [vmem:[#allocation6 + $0x2] sm:$0x3]
    %v2174 = vsel %vm2168, %v2159, %v2173
    %2175 = vst [vmem:[#allocation6 + $0x2] sm:$0x3] %v2174
    %v2176 = vcombine.high %v2152, %v2152
    %v2178 = vunpack.c.l.s4 1966171168
    %v2179 = vunpack.c.0.s8 %v2178
    %v2180 = vlaneseq
    %v2181 = vshrl.u32 %v2180, 7
    %v2182 = vsub.s32 %v2179, %v2181
    %v2183 = vrot.slane %v2176, %v2182
    %v2185 = vshll.u32 %v2183, 16
    %v2188 = vld [vmem:[#allocation6 + $0x4] sm:$0x3]
    %v2189 = vsel %vm2168, %v2185, %v2188
    %2190 = vst [vmem:[#allocation6 + $0x4] sm:$0x3] %v2189
    %v2192 = vld [vmem:[#allocation6 + $0x6] sm:$0x3]
    %v2193 = vsel %vm2168, %v2183, %v2192
    %2194 = vst [vmem:[#allocation6 + $0x6] sm:$0x3] %v2193
    %v2195 = vcombine.high %v2159, %v2159
    %v2197 = vshll.u32 %v2195, 16
    %v2200 = vld [vmem:[#allocation6 + $0x8] sm:$0x3]
    %v2201 = vsel %vm2168, %v2197, %v2200
    %2202 = vst [vmem:[#allocation6 + $0x8] sm:$0x3] %v2201
    %v2204 = vld [vmem:[#allocation6 + $0xa] sm:$0x3]
    %v2205 = vsel %vm2168, %v2195, %v2204
    %2206 = vst [vmem:[#allocation6 + $0xa] sm:$0x3] %v2205
    %v2207 = vcombine.high %v2183, %v2183
    %v2209 = vshll.u32 %v2207, 16
    %v2212 = vld [vmem:[#allocation6 + $0xc] sm:$0x3]
    %v2213 = vsel %vm2168, %v2209, %v2212
    %2214 = vst [vmem:[#allocation6 + $0xc] sm:$0x3] %v2213
    %v2216 = vld [vmem:[#allocation6 + $0xe] sm:$0x3]
    %v2217 = vsel %vm2168, %v2207, %v2216
    %2218 = vst [vmem:[#allocation6 + $0xe] sm:$0x3] %v2217
    %v2219 = vcombine.high %v1978, %v1979
    %v2221 = vunpack.c.l.s4 1966171168
    %v2222 = vunpack.c.0.s8 %v2221
    %v2223 = vlaneseq
    %v2224 = vshrl.u32 %v2223, 7
    %v2225 = vsub.s32 %v2222, %v2224
    %v2226 = vrot.slane %v2219, %v2225
    %v2228 = vunpack.c.l.s4 1966171168
    %v2229 = vunpack.c.0.s8 %v2228
    %v2230 = vlaneseq
    %v2231 = vshrl.u32 %v2230, 7
    %v2232 = vsub.s32 %v2229, %v2231
    %v2233 = vrot.slane %v2226, %v2232
    %v2235 = vshll.u32 %v2233, 16
    %v2238 = vld [vmem:[#allocation6 + $0x10] sm:$0x3]
    %v2239 = vsel %vm2168, %v2235, %v2238
    %2240 = vst [vmem:[#allocation6 + $0x10] sm:$0x3] %v2239
    %v2242 = vld [vmem:[#allocation6 + $0x12] sm:$0x3]
    %v2243 = vsel %vm2168, %v2233, %v2242
    %2244 = vst [vmem:[#allocation6 + $0x12] sm:$0x3] %v2243
    %v2245 = vcombine.high %v2226, %v2226
    %v2247 = vunpack.c.l.s4 1966171168
    %v2248 = vunpack.c.0.s8 %v2247
    %v2249 = vlaneseq
    %v2250 = vshrl.u32 %v2249, 7
    %v2251 = vsub.s32 %v2248, %v2250
    %v2252 = vrot.slane %v2245, %v2251
    %v2254 = vshll.u32 %v2252, 16
    %v2257 = vld [vmem:[#allocation6 + $0x14] sm:$0x3]
    %v2258 = vsel %vm2168, %v2254, %v2257
    %2259 = vst [vmem:[#allocation6 + $0x14] sm:$0x3] %v2258
    %v2261 = vld [vmem:[#allocation6 + $0x16] sm:$0x3]
    %v2262 = vsel %vm2168, %v2252, %v2261
    %2263 = vst [vmem:[#allocation6 + $0x16] sm:$0x3] %v2262
    %v2264 = vcombine.high %v2233, %v2233
    %v2266 = vshll.u32 %v2264, 16
    %v2269 = vld [vmem:[#allocation6 + $0x18] sm:$0x3]
    %v2270 = vsel %vm2168, %v2266, %v2269
    %2271 = vst [vmem:[#allocation6 + $0x18] sm:$0x3] %v2270
    %v2273 = vld [vmem:[#allocation6 + $0x1a] sm:$0x3]
    %v2274 = vsel %vm2168, %v2264, %v2273
    %2275 = vst [vmem:[#allocation6 + $0x1a] sm:$0x3] %v2274
    %v2276 = vcombine.high %v2252, %v2252
    %v2278 = vshll.u32 %v2276, 16
    %v2281 = vld [vmem:[#allocation6 + $0x1c] sm:$0x3]
    %v2282 = vsel %vm2168, %v2278, %v2281
    %2283 = vst [vmem:[#allocation6 + $0x1c] sm:$0x3] %v2282
    %v2285 = vld [vmem:[#allocation6 + $0x1e] sm:$0x3]
    %v2286 = vsel %vm2168, %v2276, %v2285
    %2287 = vst [vmem:[#allocation6 + $0x1e] sm:$0x3] %v2286
    %v2288 = vld [vmem:[%s7] sm:$0x1]
    %v2289 = vld [vmem:[#allocation6] sm:$0xff]
    %v2290 = vld [vmem:[#allocation6 + $0x8] sm:$0xff]
    %v2291 = vld [vmem:[#allocation6 + $0x10] sm:$0xff]
    %v2292 = vld [vmem:[#allocation6 + $0x18] sm:$0xff]
    %v2293 = vld [vmem:[#allocation7] sm:$0xf]
    %v2294 = vld [vmem:[#allocation7 + $0x4] sm:$0xf]
    %v2295 = vld [vmem:[#allocation7 + $0x8] sm:$0xf]
    %v2296 = vld [vmem:[#allocation7 + $0xc] sm:$0xf]
    %v2297 = vld [vmem:[#allocation7 + $0x10] sm:$0xf]
    %v2298 = vld [vmem:[#allocation7 + $0x14] sm:$0xf]
    %v2299 = vld [vmem:[#allocation7 + $0x18] sm:$0xf]
    %v2300 = vld [vmem:[#allocation7 + $0x1c] sm:$0xf]
    %v2301 = vld [vmem:[#allocation7 + $0x20] sm:$0xf]
    %v2302 = vld [vmem:[#allocation7 + $0x24] sm:$0xf]
    %v2303 = vld [vmem:[#allocation7 + $0x28] sm:$0xf]
    %v2304 = vld [vmem:[#allocation7 + $0x2c] sm:$0xf]
    %v2305 = vld [vmem:[#allocation7 + $0x30] sm:$0xf]
    %v2306 = vld [vmem:[#allocation7 + $0x34] sm:$0xf]
    %v2307 = vld [vmem:[#allocation7 + $0x38] sm:$0xf]
    %v2308 = vld [vmem:[#allocation7 + $0x3c] sm:$0xf]
    %v2309 = vld [vmem:[#allocation7 + $0x40] sm:$0xf]
    %v2310 = vld [vmem:[#allocation7 + $0x44] sm:$0xf]
    %v2311 = vld [vmem:[#allocation7 + $0x48] sm:$0xf]
    %v2312 = vld [vmem:[#allocation7 + $0x4c] sm:$0xf]
    %v2313 = vld [vmem:[#allocation7 + $0x50] sm:$0xf]
    %v2314 = vld [vmem:[#allocation7 + $0x54] sm:$0xf]
    %v2315 = vld [vmem:[#allocation7 + $0x58] sm:$0xf]
    %v2316 = vld [vmem:[#allocation7 + $0x5c] sm:$0xf]
    %v2317 = vld [vmem:[#allocation7 + $0x60] sm:$0xf]
    %v2318 = vld [vmem:[#allocation7 + $0x64] sm:$0xf]
    %v2319 = vld [vmem:[#allocation7 + $0x68] sm:$0xf]
    %v2320 = vld [vmem:[#allocation7 + $0x6c] sm:$0xf]
    %v2321 = vld [vmem:[#allocation7 + $0x70] sm:$0xf]
    %v2322 = vld [vmem:[#allocation7 + $0x74] sm:$0xf]
    %v2323 = vld [vmem:[#allocation7 + $0x78] sm:$0xf]
    %v2324 = vld [vmem:[#allocation7 + $0x7c] sm:$0xf]
    %v2325 = vld [vmem:[#allocation7 + $0x80] sm:$0xf]
    %v2326 = vld [vmem:[#allocation7 + $0x84] sm:$0xf]
    %v2327 = vld [vmem:[#allocation7 + $0x88] sm:$0xf]
    %v2328 = vld [vmem:[#allocation7 + $0x8c] sm:$0xf]
    %v2329 = vld [vmem:[#allocation7 + $0x90] sm:$0xf]
    %v2330 = vld [vmem:[#allocation7 + $0x94] sm:$0xf]
    %v2331 = vld [vmem:[#allocation7 + $0x98] sm:$0xf]
    %v2332 = vld [vmem:[#allocation7 + $0x9c] sm:$0xf]
    %v2333 = vld [vmem:[#allocation7 + $0xa0] sm:$0xf]
    %v2334 = vld [vmem:[#allocation7 + $0xa4] sm:$0xf]
    %v2335 = vld [vmem:[#allocation7 + $0xa8] sm:$0xf]
    %v2336 = vld [vmem:[#allocation7 + $0xac] sm:$0xf]
    %v2337 = vld [vmem:[#allocation7 + $0xb0] sm:$0xf]
    %v2338 = vld [vmem:[#allocation7 + $0xb4] sm:$0xf]
    %v2339 = vld [vmem:[#allocation7 + $0xb8] sm:$0xf]
    %v2340 = vld [vmem:[#allocation7 + $0xbc] sm:$0xf]
    %v2341 = vld [vmem:[#allocation7 + $0xc0] sm:$0xf]
    %v2342 = vld [vmem:[#allocation7 + $0xc4] sm:$0xf]
    %v2343 = vld [vmem:[#allocation7 + $0xc8] sm:$0xf]
    %v2344 = vld [vmem:[#allocation7 + $0xcc] sm:$0xf]
    %v2345 = vld [vmem:[#allocation7 + $0xd0] sm:$0xf]
    %v2346 = vld [vmem:[#allocation7 + $0xd4] sm:$0xf]
    %v2347 = vld [vmem:[#allocation7 + $0xd8] sm:$0xf]
    %v2348 = vld [vmem:[#allocation7 + $0xdc] sm:$0xf]
    %v2349 = vld [vmem:[#allocation7 + $0xe0] sm:$0xf]
    %v2350 = vld [vmem:[#allocation7 + $0xe4] sm:$0xf]
    %v2351 = vld [vmem:[#allocation7 + $0xe8] sm:$0xf]
    %v2352 = vld [vmem:[#allocation7 + $0xec] sm:$0xf]
    %v2353 = vld [vmem:[#allocation7 + $0xf0] sm:$0xf]
    %v2354 = vld [vmem:[#allocation7 + $0xf4] sm:$0xf]
    %v2355 = vld [vmem:[#allocation7 + $0xf8] sm:$0xf]
    %v2356 = vld [vmem:[#allocation7 + $0xfc] sm:$0xf]
    %v2357 = vld [vmem:[#allocation7 + $0x100] sm:$0xf]
    %v2358 = vld [vmem:[#allocation7 + $0x104] sm:$0xf]
    %v2359 = vld [vmem:[#allocation7 + $0x108] sm:$0xf]
    %v2360 = vld [vmem:[#allocation7 + $0x10c] sm:$0xf]
    %v2361 = vld [vmem:[#allocation7 + $0x110] sm:$0xf]
    %v2362 = vld [vmem:[#allocation7 + $0x114] sm:$0xf]
    %v2363 = vld [vmem:[#allocation7 + $0x118] sm:$0xf]
    %v2364 = vld [vmem:[#allocation7 + $0x11c] sm:$0xf]
    %v2365 = vld [vmem:[#allocation7 + $0x120] sm:$0xf]
    %v2366 = vld [vmem:[#allocation7 + $0x124] sm:$0xf]
    %v2367 = vld [vmem:[#allocation7 + $0x128] sm:$0xf]
    %v2368 = vld [vmem:[#allocation7 + $0x12c] sm:$0xf]
    %v2369 = vld [vmem:[#allocation7 + $0x130] sm:$0xf]
    %v2370 = vld [vmem:[#allocation7 + $0x134] sm:$0xf]
    %v2371 = vld [vmem:[#allocation7 + $0x138] sm:$0xf]
    %v2372 = vld [vmem:[#allocation7 + $0x13c] sm:$0xf]
    %v2373 = vld [vmem:[#allocation7 + $0x140] sm:$0xf]
    %v2374 = vld [vmem:[#allocation7 + $0x144] sm:$0xf]
    %v2375 = vld [vmem:[#allocation7 + $0x148] sm:$0xf]
    %v2376 = vld [vmem:[#allocation7 + $0x14c] sm:$0xf]
    %v2377 = vld [vmem:[#allocation7 + $0x150] sm:$0xf]
    %v2378 = vld [vmem:[#allocation7 + $0x154] sm:$0xf]
    %v2379 = vld [vmem:[#allocation7 + $0x158] sm:$0xf]
    %v2380 = vld [vmem:[#allocation7 + $0x15c] sm:$0xf]
    %v2381 = vld [vmem:[#allocation7 + $0x160] sm:$0xf]
    %v2382 = vld [vmem:[#allocation7 + $0x164] sm:$0xf]
    %v2383 = vld [vmem:[#allocation7 + $0x168] sm:$0xf]
    %v2384 = vld [vmem:[#allocation7 + $0x16c] sm:$0xf]
    %v2385 = vld [vmem:[#allocation7 + $0x170] sm:$0xf]
    %v2386 = vld [vmem:[#allocation7 + $0x174] sm:$0xf]
    %v2387 = vld [vmem:[#allocation7 + $0x178] sm:$0xf]
    %v2388 = vld [vmem:[#allocation7 + $0x17c] sm:$0xf]
    %v2389 = vld [vmem:[#allocation7 + $0x180] sm:$0xf]
    %v2390 = vld [vmem:[#allocation7 + $0x184] sm:$0xf]
    %v2391 = vld [vmem:[#allocation7 + $0x188] sm:$0xf]
    %v2392 = vld [vmem:[#allocation7 + $0x18c] sm:$0xf]
    %v2393 = vld [vmem:[#allocation7 + $0x190] sm:$0xf]
    %v2394 = vld [vmem:[#allocation7 + $0x194] sm:$0xf]
    %v2395 = vld [vmem:[#allocation7 + $0x198] sm:$0xf]
    %v2396 = vld [vmem:[#allocation7 + $0x19c] sm:$0xf]
    %v2397 = vld [vmem:[#allocation7 + $0x1a0] sm:$0xf]
    %v2398 = vld [vmem:[#allocation7 + $0x1a4] sm:$0xf]
    %v2399 = vld [vmem:[#allocation7 + $0x1a8] sm:$0xf]
    %v2400 = vld [vmem:[#allocation7 + $0x1ac] sm:$0xf]
    %v2401 = vld [vmem:[#allocation7 + $0x1b0] sm:$0xf]
    %v2402 = vld [vmem:[#allocation7 + $0x1b4] sm:$0xf]
    %v2403 = vld [vmem:[#allocation7 + $0x1b8] sm:$0xf]
    %v2404 = vld [vmem:[#allocation7 + $0x1bc] sm:$0xf]
    %v2405 = vld [vmem:[#allocation7 + $0x1c0] sm:$0xf]
    %v2406 = vld [vmem:[#allocation7 + $0x1c4] sm:$0xf]
    %v2407 = vld [vmem:[#allocation7 + $0x1c8] sm:$0xf]
    %v2408 = vld [vmem:[#allocation7 + $0x1cc] sm:$0xf]
    %v2409 = vld [vmem:[#allocation7 + $0x1d0] sm:$0xf]
    %v2410 = vld [vmem:[#allocation7 + $0x1d4] sm:$0xf]
    %v2411 = vld [vmem:[#allocation7 + $0x1d8] sm:$0xf]
    %v2412 = vld [vmem:[#allocation7 + $0x1dc] sm:$0xf]
    %v2413 = vld [vmem:[#allocation7 + $0x1e0] sm:$0xf]
    %v2414 = vld [vmem:[#allocation7 + $0x1e4] sm:$0xf]
    %v2415 = vld [vmem:[#allocation7 + $0x1e8] sm:$0xf]
    %v2416 = vld [vmem:[#allocation7 + $0x1ec] sm:$0xf]
    %v2417 = vld [vmem:[#allocation7 + $0x1f0] sm:$0xf]
    %v2418 = vld [vmem:[#allocation7 + $0x1f4] sm:$0xf]
    %v2419 = vld [vmem:[#allocation7 + $0x1f8] sm:$0xf]
    %v2420 = vld [vmem:[#allocation7 + $0x1fc] sm:$0xf]
    %v2421 = vld [vmem:[#allocation7 + $0x200] sm:$0xf]
    %v2422 = vld [vmem:[#allocation7 + $0x204] sm:$0xf]
    %v2423 = vld [vmem:[#allocation7 + $0x208] sm:$0xf]
    %v2424 = vld [vmem:[#allocation7 + $0x20c] sm:$0xf]
    %v2425 = vld [vmem:[#allocation7 + $0x210] sm:$0xf]
    %v2426 = vld [vmem:[#allocation7 + $0x214] sm:$0xf]
    %v2427 = vld [vmem:[#allocation7 + $0x218] sm:$0xf]
    %v2428 = vld [vmem:[#allocation7 + $0x21c] sm:$0xf]
    %v2429 = vld [vmem:[#allocation7 + $0x220] sm:$0xf]
    %v2430 = vld [vmem:[#allocation7 + $0x224] sm:$0xf]
    %v2431 = vld [vmem:[#allocation7 + $0x228] sm:$0xf]
    %v2432 = vld [vmem:[#allocation7 + $0x22c] sm:$0xf]
    %v2433 = vld [vmem:[#allocation7 + $0x230] sm:$0xf]
    %v2434 = vld [vmem:[#allocation7 + $0x234] sm:$0xf]
    %v2435 = vld [vmem:[#allocation7 + $0x238] sm:$0xf]
    %v2436 = vld [vmem:[#allocation7 + $0x23c] sm:$0xf]
    %v2437 = vld [vmem:[#allocation7 + $0x240] sm:$0xf]
    %v2438 = vld [vmem:[#allocation7 + $0x244] sm:$0xf]
    %v2439 = vld [vmem:[#allocation7 + $0x248] sm:$0xf]
    %v2440 = vld [vmem:[#allocation7 + $0x24c] sm:$0xf]
    %v2441 = vld [vmem:[#allocation7 + $0x250] sm:$0xf]
    %v2442 = vld [vmem:[#allocation7 + $0x254] sm:$0xf]
    %v2443 = vld [vmem:[#allocation7 + $0x258] sm:$0xf]
    %v2444 = vld [vmem:[#allocation7 + $0x25c] sm:$0xf]
    %v2445 = vld [vmem:[#allocation7 + $0x260] sm:$0xf]
    %v2446 = vld [vmem:[#allocation7 + $0x264] sm:$0xf]
    %v2447 = vld [vmem:[#allocation7 + $0x268] sm:$0xf]
    %v2448 = vld [vmem:[#allocation7 + $0x26c] sm:$0xf]
    %v2449 = vld [vmem:[#allocation7 + $0x270] sm:$0xf]
    %v2450 = vld [vmem:[#allocation7 + $0x274] sm:$0xf]
    %v2451 = vld [vmem:[#allocation7 + $0x278] sm:$0xf]
    %v2452 = vld [vmem:[#allocation7 + $0x27c] sm:$0xf]
    %v2453 = vld [vmem:[#allocation7 + $0x280] sm:$0xf]
    %v2454 = vld [vmem:[#allocation7 + $0x284] sm:$0xf]
    %v2455 = vld [vmem:[#allocation7 + $0x288] sm:$0xf]
    %v2456 = vld [vmem:[#allocation7 + $0x28c] sm:$0xf]
    %v2457 = vld [vmem:[#allocation7 + $0x290] sm:$0xf]
    %v2458 = vld [vmem:[#allocation7 + $0x294] sm:$0xf]
    %v2459 = vld [vmem:[#allocation7 + $0x298] sm:$0xf]
    %v2460 = vld [vmem:[#allocation7 + $0x29c] sm:$0xf]
    %v2461 = vld [vmem:[#allocation7 + $0x2a0] sm:$0xf]
    %v2462 = vld [vmem:[#allocation7 + $0x2a4] sm:$0xf]
    %v2463 = vld [vmem:[#allocation7 + $0x2a8] sm:$0xf]
    %v2464 = vld [vmem:[#allocation7 + $0x2ac] sm:$0xf]
    %v2465 = vld [vmem:[#allocation7 + $0x2b0] sm:$0xf]
    %v2466 = vld [vmem:[#allocation7 + $0x2b4] sm:$0xf]
    %v2467 = vld [vmem:[#allocation7 + $0x2b8] sm:$0xf]
    %v2468 = vld [vmem:[#allocation7 + $0x2bc] sm:$0xf]
    %v2469 = vld [vmem:[#allocation7 + $0x2c0] sm:$0xf]
    %v2470 = vld [vmem:[#allocation7 + $0x2c4] sm:$0xf]
    %v2471 = vld [vmem:[#allocation7 + $0x2c8] sm:$0xf]
    %v2472 = vld [vmem:[#allocation7 + $0x2cc] sm:$0xf]
    %v2473 = vld [vmem:[#allocation7 + $0x2d0] sm:$0xf]
    %v2474 = vld [vmem:[#allocation7 + $0x2d4] sm:$0xf]
    %v2475 = vld [vmem:[#allocation7 + $0x2d8] sm:$0xf]
    %v2476 = vld [vmem:[#allocation7 + $0x2dc] sm:$0xf]
    %v2477 = vld [vmem:[#allocation7 + $0x2e0] sm:$0xf]
    %v2478 = vld [vmem:[#allocation7 + $0x2e4] sm:$0xf]
    %v2479 = vld [vmem:[#allocation7 + $0x2e8] sm:$0xf]
    %v2480 = vld [vmem:[#allocation7 + $0x2ec] sm:$0xf]
    %v2481 = vld [vmem:[#allocation7 + $0x2f0] sm:$0xf]
    %v2482 = vld [vmem:[#allocation7 + $0x2f4] sm:$0xf]
    %v2483 = vld [vmem:[#allocation7 + $0x2f8] sm:$0xf]
    %v2484 = vld [vmem:[#allocation7 + $0x2fc] sm:$0xf]
    %v2485 = vld [vmem:[#allocation7 + $0x300] sm:$0xf]
    %v2486 = vld [vmem:[#allocation7 + $0x304] sm:$0xf]
    %v2487 = vld [vmem:[#allocation7 + $0x308] sm:$0xf]
    %v2488 = vld [vmem:[#allocation7 + $0x30c] sm:$0xf]
    %v2489 = vld [vmem:[#allocation7 + $0x310] sm:$0xf]
    %v2490 = vld [vmem:[#allocation7 + $0x314] sm:$0xf]
    %v2491 = vld [vmem:[#allocation7 + $0x318] sm:$0xf]
    %v2492 = vld [vmem:[#allocation7 + $0x31c] sm:$0xf]
    %v2493 = vld [vmem:[#allocation7 + $0x320] sm:$0xf]
    %v2494 = vld [vmem:[#allocation7 + $0x324] sm:$0xf]
    %v2495 = vld [vmem:[#allocation7 + $0x328] sm:$0xf]
    %v2496 = vld [vmem:[#allocation7 + $0x32c] sm:$0xf]
    %v2497 = vld [vmem:[#allocation7 + $0x330] sm:$0xf]
    %v2498 = vld [vmem:[#allocation7 + $0x334] sm:$0xf]
    %v2499 = vld [vmem:[#allocation7 + $0x338] sm:$0xf]
    %v2500 = vld [vmem:[#allocation7 + $0x33c] sm:$0xf]
    %v2501 = vld [vmem:[#allocation7 + $0x340] sm:$0xf]
    %v2502 = vld [vmem:[#allocation7 + $0x344] sm:$0xf]
    %v2503 = vld [vmem:[#allocation7 + $0x348] sm:$0xf]
    %v2504 = vld [vmem:[#allocation7 + $0x34c] sm:$0xf]
    %v2505 = vld [vmem:[#allocation7 + $0x350] sm:$0xf]
    %v2506 = vld [vmem:[#allocation7 + $0x354] sm:$0xf]
    %v2507 = vld [vmem:[#allocation7 + $0x358] sm:$0xf]
    %v2508 = vld [vmem:[#allocation7 + $0x35c] sm:$0xf]
    %v2509 = vld [vmem:[#allocation7 + $0x360] sm:$0xf]
    %v2510 = vld [vmem:[#allocation7 + $0x364] sm:$0xf]
    %v2511 = vld [vmem:[#allocation7 + $0x368] sm:$0xf]
    %v2512 = vld [vmem:[#allocation7 + $0x36c] sm:$0xf]
    %v2513 = vld [vmem:[#allocation7 + $0x370] sm:$0xf]
    %v2514 = vld [vmem:[#allocation7 + $0x374] sm:$0xf]
    %v2515 = vld [vmem:[#allocation7 + $0x378] sm:$0xf]
    %v2516 = vld [vmem:[#allocation7 + $0x37c] sm:$0xf]
    %v2517 = vld [vmem:[#allocation7 + $0x380] sm:$0xf]
    %v2518 = vld [vmem:[#allocation7 + $0x384] sm:$0xf]
    %v2519 = vld [vmem:[#allocation7 + $0x388] sm:$0xf]
    %v2520 = vld [vmem:[#allocation7 + $0x38c] sm:$0xf]
    %v2521 = vld [vmem:[#allocation7 + $0x390] sm:$0xf]
    %v2522 = vld [vmem:[#allocation7 + $0x394] sm:$0xf]
    %v2523 = vld [vmem:[#allocation7 + $0x398] sm:$0xf]
    %v2524 = vld [vmem:[#allocation7 + $0x39c] sm:$0xf]
    %v2525 = vld [vmem:[#allocation7 + $0x3a0] sm:$0xf]
    %v2526 = vld [vmem:[#allocation7 + $0x3a4] sm:$0xf]
    %v2527 = vld [vmem:[#allocation7 + $0x3a8] sm:$0xf]
    %v2528 = vld [vmem:[#allocation7 + $0x3ac] sm:$0xf]
    %v2529 = vld [vmem:[#allocation7 + $0x3b0] sm:$0xf]
    %v2530 = vld [vmem:[#allocation7 + $0x3b4] sm:$0xf]
    %v2531 = vld [vmem:[#allocation7 + $0x3b8] sm:$0xf]
    %v2532 = vld [vmem:[#allocation7 + $0x3bc] sm:$0xf]
    %v2533 = vld [vmem:[#allocation7 + $0x3c0] sm:$0xf]
    %v2534 = vld [vmem:[#allocation7 + $0x3c4] sm:$0xf]
    %v2535 = vld [vmem:[#allocation7 + $0x3c8] sm:$0xf]
    %v2536 = vld [vmem:[#allocation7 + $0x3cc] sm:$0xf]
    %v2537 = vld [vmem:[#allocation7 + $0x3d0] sm:$0xf]
    %v2538 = vld [vmem:[#allocation7 + $0x3d4] sm:$0xf]
    %v2539 = vld [vmem:[#allocation7 + $0x3d8] sm:$0xf]
    %v2540 = vld [vmem:[#allocation7 + $0x3dc] sm:$0xf]
    %v2541 = vld [vmem:[#allocation7 + $0x3e0] sm:$0xf]
    %v2542 = vld [vmem:[#allocation7 + $0x3e4] sm:$0xf]
    %v2543 = vld [vmem:[#allocation7 + $0x3e8] sm:$0xf]
    %v2544 = vld [vmem:[#allocation7 + $0x3ec] sm:$0xf]
    %v2545 = vld [vmem:[#allocation7 + $0x3f0] sm:$0xf]
    %v2546 = vld [vmem:[#allocation7 + $0x3f4] sm:$0xf]
    %v2547 = vld [vmem:[#allocation7 + $0x3f8] sm:$0xf]
    %v2548 = vld [vmem:[#allocation7 + $0x3fc] sm:$0xf]
    %v2549 = vld [vmem:[#allocation7 + $0x400] sm:$0xf]
    %v2550 = vld [vmem:[#allocation7 + $0x404] sm:$0xf]
    %v2551 = vld [vmem:[#allocation7 + $0x408] sm:$0xf]
    %v2552 = vld [vmem:[#allocation7 + $0x40c] sm:$0xf]
    %v2553 = vld [vmem:[#allocation7 + $0x410] sm:$0xf]
    %v2554 = vld [vmem:[#allocation7 + $0x414] sm:$0xf]
    %v2555 = vld [vmem:[#allocation7 + $0x418] sm:$0xf]
    %v2556 = vld [vmem:[#allocation7 + $0x41c] sm:$0xf]
    %v2557 = vld [vmem:[#allocation7 + $0x420] sm:$0xf]
    %v2558 = vld [vmem:[#allocation7 + $0x424] sm:$0xf]
    %v2559 = vld [vmem:[#allocation7 + $0x428] sm:$0xf]
    %v2560 = vld [vmem:[#allocation7 + $0x42c] sm:$0xf]
    %v2561 = vld [vmem:[#allocation7 + $0x430] sm:$0xf]
    %v2562 = vld [vmem:[#allocation7 + $0x434] sm:$0xf]
    %v2563 = vld [vmem:[#allocation7 + $0x438] sm:$0xf]
    %v2564 = vld [vmem:[#allocation7 + $0x43c] sm:$0xf]
    %v2565 = vld [vmem:[#allocation7 + $0x440] sm:$0xf]
    %v2566 = vld [vmem:[#allocation7 + $0x444] sm:$0xf]
    %v2567 = vld [vmem:[#allocation7 + $0x448] sm:$0xf]
    %v2568 = vld [vmem:[#allocation7 + $0x44c] sm:$0xf]
    %v2569 = vld [vmem:[#allocation7 + $0x450] sm:$0xf]
    %v2570 = vld [vmem:[#allocation7 + $0x454] sm:$0xf]
    %v2571 = vld [vmem:[#allocation7 + $0x458] sm:$0xf]
    %v2572 = vld [vmem:[#allocation7 + $0x45c] sm:$0xf]
    %v2573 = vld [vmem:[#allocation7 + $0x460] sm:$0xf]
    %v2574 = vld [vmem:[#allocation7 + $0x464] sm:$0xf]
    %v2575 = vld [vmem:[#allocation7 + $0x468] sm:$0xf]
    %v2576 = vld [vmem:[#allocation7 + $0x46c] sm:$0xf]
    %v2577 = vld [vmem:[#allocation7 + $0x470] sm:$0xf]
    %v2578 = vld [vmem:[#allocation7 + $0x474] sm:$0xf]
    %v2579 = vld [vmem:[#allocation7 + $0x478] sm:$0xf]
    %v2580 = vld [vmem:[#allocation7 + $0x47c] sm:$0xf]
    %v2581 = vld [vmem:[#allocation7 + $0x480] sm:$0xf]
    %v2582 = vld [vmem:[#allocation7 + $0x484] sm:$0xf]
    %v2583 = vld [vmem:[#allocation7 + $0x488] sm:$0xf]
    %v2584 = vld [vmem:[#allocation7 + $0x48c] sm:$0xf]
    %v2585 = vld [vmem:[#allocation7 + $0x490] sm:$0xf]
    %v2586 = vld [vmem:[#allocation7 + $0x494] sm:$0xf]
    %v2587 = vld [vmem:[#allocation7 + $0x498] sm:$0xf]
    %v2588 = vld [vmem:[#allocation7 + $0x49c] sm:$0xf]
    %v2589 = vld [vmem:[#allocation7 + $0x4a0] sm:$0xf]
    %v2590 = vld [vmem:[#allocation7 + $0x4a4] sm:$0xf]
    %v2591 = vld [vmem:[#allocation7 + $0x4a8] sm:$0xf]
    %v2592 = vld [vmem:[#allocation7 + $0x4ac] sm:$0xf]
    %v2593 = vld [vmem:[#allocation7 + $0x4b0] sm:$0xf]
    %v2594 = vld [vmem:[#allocation7 + $0x4b4] sm:$0xf]
    %v2595 = vld [vmem:[#allocation7 + $0x4b8] sm:$0xf]
    %v2596 = vld [vmem:[#allocation7 + $0x4bc] sm:$0xf]
    %v2597 = vld [vmem:[#allocation7 + $0x4c0] sm:$0xf]
    %v2598 = vld [vmem:[#allocation7 + $0x4c4] sm:$0xf]
    %v2599 = vld [vmem:[#allocation7 + $0x4c8] sm:$0xf]
    %v2600 = vld [vmem:[#allocation7 + $0x4cc] sm:$0xf]
    %v2601 = vld [vmem:[#allocation7 + $0x4d0] sm:$0xf]
    %v2602 = vld [vmem:[#allocation7 + $0x4d4] sm:$0xf]
    %v2603 = vld [vmem:[#allocation7 + $0x4d8] sm:$0xf]
    %v2604 = vld [vmem:[#allocation7 + $0x4dc] sm:$0xf]
    %v2605 = vld [vmem:[#allocation7 + $0x4e0] sm:$0xf]
    %v2606 = vld [vmem:[#allocation7 + $0x4e4] sm:$0xf]
    %v2607 = vld [vmem:[#allocation7 + $0x4e8] sm:$0xf]
    %v2608 = vld [vmem:[#allocation7 + $0x4ec] sm:$0xf]
    %v2609 = vld [vmem:[#allocation7 + $0x4f0] sm:$0xf]
    %v2610 = vld [vmem:[#allocation7 + $0x4f4] sm:$0xf]
    %v2611 = vld [vmem:[#allocation7 + $0x4f8] sm:$0xf]
    %v2612 = vld [vmem:[#allocation7 + $0x4fc] sm:$0xf]
    %v2613 = vld [vmem:[#allocation7 + $0x500] sm:$0xf]
    %v2614 = vld [vmem:[#allocation7 + $0x504] sm:$0xf]
    %v2615 = vld [vmem:[#allocation7 + $0x508] sm:$0xf]
    %v2616 = vld [vmem:[#allocation7 + $0x50c] sm:$0xf]
    %v2617 = vld [vmem:[#allocation7 + $0x510] sm:$0xf]
    %v2618 = vld [vmem:[#allocation7 + $0x514] sm:$0xf]
    %v2619 = vld [vmem:[#allocation7 + $0x518] sm:$0xf]
    %v2620 = vld [vmem:[#allocation7 + $0x51c] sm:$0xf]
    %v2621 = vld [vmem:[#allocation7 + $0x520] sm:$0xf]
    %v2622 = vld [vmem:[#allocation7 + $0x524] sm:$0xf]
    %v2623 = vld [vmem:[#allocation7 + $0x528] sm:$0xf]
    %v2624 = vld [vmem:[#allocation7 + $0x52c] sm:$0xf]
    %v2625 = vld [vmem:[#allocation7 + $0x530] sm:$0xf]
    %v2626 = vld [vmem:[#allocation7 + $0x534] sm:$0xf]
    %v2627 = vld [vmem:[#allocation7 + $0x538] sm:$0xf]
    %v2628 = vld [vmem:[#allocation7 + $0x53c] sm:$0xf]
    %v2629 = vld [vmem:[#allocation7 + $0x540] sm:$0xf]
    %v2630 = vld [vmem:[#allocation7 + $0x544] sm:$0xf]
    %v2631 = vld [vmem:[#allocation7 + $0x548] sm:$0xf]
    %v2632 = vld [vmem:[#allocation7 + $0x54c] sm:$0xf]
    %v2633 = vld [vmem:[#allocation7 + $0x550] sm:$0xf]
    %v2634 = vld [vmem:[#allocation7 + $0x554] sm:$0xf]
    %v2635 = vld [vmem:[#allocation7 + $0x558] sm:$0xf]
    %v2636 = vld [vmem:[#allocation7 + $0x55c] sm:$0xf]
    %v2637 = vld [vmem:[#allocation7 + $0x560] sm:$0xf]
    %v2638 = vld [vmem:[#allocation7 + $0x564] sm:$0xf]
    %v2639 = vld [vmem:[#allocation7 + $0x568] sm:$0xf]
    %v2640 = vld [vmem:[#allocation7 + $0x56c] sm:$0xf]
    %v2641 = vld [vmem:[#allocation7 + $0x570] sm:$0xf]
    %v2642 = vld [vmem:[#allocation7 + $0x574] sm:$0xf]
    %v2643 = vld [vmem:[#allocation7 + $0x578] sm:$0xf]
    %v2644 = vld [vmem:[#allocation7 + $0x57c] sm:$0xf]
    %v2645 = vld [vmem:[#allocation7 + $0x580] sm:$0xf]
    %v2646 = vld [vmem:[#allocation7 + $0x584] sm:$0xf]
    %v2647 = vld [vmem:[#allocation7 + $0x588] sm:$0xf]
    %v2648 = vld [vmem:[#allocation7 + $0x58c] sm:$0xf]
    %v2649 = vld [vmem:[#allocation7 + $0x590] sm:$0xf]
    %v2650 = vld [vmem:[#allocation7 + $0x594] sm:$0xf]
    %v2651 = vld [vmem:[#allocation7 + $0x598] sm:$0xf]
    %v2652 = vld [vmem:[#allocation7 + $0x59c] sm:$0xf]
    %v2653 = vld [vmem:[#allocation7 + $0x5a0] sm:$0xf]
    %v2654 = vld [vmem:[#allocation7 + $0x5a4] sm:$0xf]
    %v2655 = vld [vmem:[#allocation7 + $0x5a8] sm:$0xf]
    %v2656 = vld [vmem:[#allocation7 + $0x5ac] sm:$0xf]
    %v2657 = vld [vmem:[#allocation7 + $0x5b0] sm:$0xf]
    %v2658 = vld [vmem:[#allocation7 + $0x5b4] sm:$0xf]
    %v2659 = vld [vmem:[#allocation7 + $0x5b8] sm:$0xf]
    %v2660 = vld [vmem:[#allocation7 + $0x5bc] sm:$0xf]
    %v2661 = vld [vmem:[#allocation7 + $0x5c0] sm:$0xf]
    %v2662 = vld [vmem:[#allocation7 + $0x5c4] sm:$0xf]
    %v2663 = vld [vmem:[#allocation7 + $0x5c8] sm:$0xf]
    %v2664 = vld [vmem:[#allocation7 + $0x5cc] sm:$0xf]
    %v2665 = vld [vmem:[#allocation7 + $0x5d0] sm:$0xf]
    %v2666 = vld [vmem:[#allocation7 + $0x5d4] sm:$0xf]
    %v2667 = vld [vmem:[#allocation7 + $0x5d8] sm:$0xf]
    %v2668 = vld [vmem:[#allocation7 + $0x5dc] sm:$0xf]
    %v2669 = vld [vmem:[#allocation7 + $0x5e0] sm:$0xf]
    %v2670 = vld [vmem:[#allocation7 + $0x5e4] sm:$0xf]
    %v2671 = vld [vmem:[#allocation7 + $0x5e8] sm:$0xf]
    %v2672 = vld [vmem:[#allocation7 + $0x5ec] sm:$0xf]
    %v2673 = vld [vmem:[#allocation7 + $0x5f0] sm:$0xf]
    %v2674 = vld [vmem:[#allocation7 + $0x5f4] sm:$0xf]
    %v2675 = vld [vmem:[#allocation7 + $0x5f8] sm:$0xf]
    %v2676 = vld [vmem:[#allocation7 + $0x5fc] sm:$0xf]
    %v2677 = vld [vmem:[#allocation7 + $0x600] sm:$0xf]
    %v2678 = vld [vmem:[#allocation7 + $0x604] sm:$0xf]
    %v2679 = vld [vmem:[#allocation7 + $0x608] sm:$0xf]
    %v2680 = vld [vmem:[#allocation7 + $0x60c] sm:$0xf]
    %v2681 = vld [vmem:[#allocation7 + $0x610] sm:$0xf]
    %v2682 = vld [vmem:[#allocation7 + $0x614] sm:$0xf]
    %v2683 = vld [vmem:[#allocation7 + $0x618] sm:$0xf]
    %v2684 = vld [vmem:[#allocation7 + $0x61c] sm:$0xf]
    %v2685 = vld [vmem:[#allocation7 + $0x620] sm:$0xf]
    %v2686 = vld [vmem:[#allocation7 + $0x624] sm:$0xf]
    %v2687 = vld [vmem:[#allocation7 + $0x628] sm:$0xf]
    %v2688 = vld [vmem:[#allocation7 + $0x62c] sm:$0xf]
    %v2689 = vld [vmem:[#allocation7 + $0x630] sm:$0xf]
    %v2690 = vld [vmem:[#allocation7 + $0x634] sm:$0xf]
    %v2691 = vld [vmem:[#allocation7 + $0x638] sm:$0xf]
    %v2692 = vld [vmem:[#allocation7 + $0x63c] sm:$0xf]
    %v2693 = vld [vmem:[#allocation7 + $0x640] sm:$0xf]
    %v2694 = vld [vmem:[#allocation7 + $0x644] sm:$0xf]
    %v2695 = vld [vmem:[#allocation7 + $0x648] sm:$0xf]
    %v2696 = vld [vmem:[#allocation7 + $0x64c] sm:$0xf]
    %v2697 = vld [vmem:[#allocation7 + $0x650] sm:$0xf]
    %v2698 = vld [vmem:[#allocation7 + $0x654] sm:$0xf]
    %v2699 = vld [vmem:[#allocation7 + $0x658] sm:$0xf]
    %v2700 = vld [vmem:[#allocation7 + $0x65c] sm:$0xf]
    %v2701 = vld [vmem:[#allocation7 + $0x660] sm:$0xf]
    %v2702 = vld [vmem:[#allocation7 + $0x664] sm:$0xf]
    %v2703 = vld [vmem:[#allocation7 + $0x668] sm:$0xf]
    %v2704 = vld [vmem:[#allocation7 + $0x66c] sm:$0xf]
    %v2705 = vld [vmem:[#allocation7 + $0x670] sm:$0xf]
    %v2706 = vld [vmem:[#allocation7 + $0x674] sm:$0xf]
    %v2707 = vld [vmem:[#allocation7 + $0x678] sm:$0xf]
    %v2708 = vld [vmem:[#allocation7 + $0x67c] sm:$0xf]
    %v2709 = vld [vmem:[#allocation7 + $0x680] sm:$0xf]
    %v2710 = vld [vmem:[#allocation7 + $0x684] sm:$0xf]
    %v2711 = vld [vmem:[#allocation7 + $0x688] sm:$0xf]
    %v2712 = vld [vmem:[#allocation7 + $0x68c] sm:$0xf]
    %v2713 = vld [vmem:[#allocation7 + $0x690] sm:$0xf]
    %v2714 = vld [vmem:[#allocation7 + $0x694] sm:$0xf]
    %v2715 = vld [vmem:[#allocation7 + $0x698] sm:$0xf]
    %v2716 = vld [vmem:[#allocation7 + $0x69c] sm:$0xf]
    %v2717 = vld [vmem:[#allocation7 + $0x6a0] sm:$0xf]
    %v2718 = vld [vmem:[#allocation7 + $0x6a4] sm:$0xf]
    %v2719 = vld [vmem:[#allocation7 + $0x6a8] sm:$0xf]
    %v2720 = vld [vmem:[#allocation7 + $0x6ac] sm:$0xf]
    %v2721 = vld [vmem:[#allocation7 + $0x6b0] sm:$0xf]
    %v2722 = vld [vmem:[#allocation7 + $0x6b4] sm:$0xf]
    %v2723 = vld [vmem:[#allocation7 + $0x6b8] sm:$0xf]
    %v2724 = vld [vmem:[#allocation7 + $0x6bc] sm:$0xf]
    %v2725 = vld [vmem:[#allocation7 + $0x6c0] sm:$0xf]
    %v2726 = vld [vmem:[#allocation7 + $0x6c4] sm:$0xf]
    %v2727 = vld [vmem:[#allocation7 + $0x6c8] sm:$0xf]
    %v2728 = vld [vmem:[#allocation7 + $0x6cc] sm:$0xf]
    %v2729 = vld [vmem:[#allocation7 + $0x6d0] sm:$0xf]
    %v2730 = vld [vmem:[#allocation7 + $0x6d4] sm:$0xf]
    %v2731 = vld [vmem:[#allocation7 + $0x6d8] sm:$0xf]
    %v2732 = vld [vmem:[#allocation7 + $0x6dc] sm:$0xf]
    %v2733 = vld [vmem:[#allocation7 + $0x6e0] sm:$0xf]
    %v2734 = vld [vmem:[#allocation7 + $0x6e4] sm:$0xf]
    %v2735 = vld [vmem:[#allocation7 + $0x6e8] sm:$0xf]
    %v2736 = vld [vmem:[#allocation7 + $0x6ec] sm:$0xf]
    %v2737 = vld [vmem:[#allocation7 + $0x6f0] sm:$0xf]
    %v2738 = vld [vmem:[#allocation7 + $0x6f4] sm:$0xf]
    %v2739 = vld [vmem:[#allocation7 + $0x6f8] sm:$0xf]
    %v2740 = vld [vmem:[#allocation7 + $0x6fc] sm:$0xf]
    %v2741 = vld [vmem:[#allocation7 + $0x700] sm:$0xf]
    %v2742 = vld [vmem:[#allocation7 + $0x704] sm:$0xf]
    %v2743 = vld [vmem:[#allocation7 + $0x708] sm:$0xf]
    %v2744 = vld [vmem:[#allocation7 + $0x70c] sm:$0xf]
    %v2745 = vld [vmem:[#allocation7 + $0x710] sm:$0xf]
    %v2746 = vld [vmem:[#allocation7 + $0x714] sm:$0xf]
    %v2747 = vld [vmem:[#allocation7 + $0x718] sm:$0xf]
    %v2748 = vld [vmem:[#allocation7 + $0x71c] sm:$0xf]
    %v2749 = vld [vmem:[#allocation7 + $0x720] sm:$0xf]
    %v2750 = vld [vmem:[#allocation7 + $0x724] sm:$0xf]
    %v2751 = vld [vmem:[#allocation7 + $0x728] sm:$0xf]
    %v2752 = vld [vmem:[#allocation7 + $0x72c] sm:$0xf]
    %v2753 = vld [vmem:[#allocation7 + $0x730] sm:$0xf]
    %v2754 = vld [vmem:[#allocation7 + $0x734] sm:$0xf]
    %v2755 = vld [vmem:[#allocation7 + $0x738] sm:$0xf]
    %v2756 = vld [vmem:[#allocation7 + $0x73c] sm:$0xf]
    %v2757 = vld [vmem:[#allocation7 + $0x740] sm:$0xf]
    %v2758 = vld [vmem:[#allocation7 + $0x744] sm:$0xf]
    %v2759 = vld [vmem:[#allocation7 + $0x748] sm:$0xf]
    %v2760 = vld [vmem:[#allocation7 + $0x74c] sm:$0xf]
    %v2761 = vld [vmem:[#allocation7 + $0x750] sm:$0xf]
    %v2762 = vld [vmem:[#allocation7 + $0x754] sm:$0xf]
    %v2763 = vld [vmem:[#allocation7 + $0x758] sm:$0xf]
    %v2764 = vld [vmem:[#allocation7 + $0x75c] sm:$0xf]
    %v2765 = vld [vmem:[#allocation7 + $0x760] sm:$0xf]
    %v2766 = vld [vmem:[#allocation7 + $0x764] sm:$0xf]
    %v2767 = vld [vmem:[#allocation7 + $0x768] sm:$0xf]
    %v2768 = vld [vmem:[#allocation7 + $0x76c] sm:$0xf]
    %v2769 = vld [vmem:[#allocation7 + $0x770] sm:$0xf]
    %v2770 = vld [vmem:[#allocation7 + $0x774] sm:$0xf]
    %v2771 = vld [vmem:[#allocation7 + $0x778] sm:$0xf]
    %v2772 = vld [vmem:[#allocation7 + $0x77c] sm:$0xf]
    %v2773 = vld [vmem:[#allocation7 + $0x780] sm:$0xf]
    %v2774 = vld [vmem:[#allocation7 + $0x784] sm:$0xf]
    %v2775 = vld [vmem:[#allocation7 + $0x788] sm:$0xf]
    %v2776 = vld [vmem:[#allocation7 + $0x78c] sm:$0xf]
    %v2777 = vld [vmem:[#allocation7 + $0x790] sm:$0xf]
    %v2778 = vld [vmem:[#allocation7 + $0x794] sm:$0xf]
    %v2779 = vld [vmem:[#allocation7 + $0x798] sm:$0xf]
    %v2780 = vld [vmem:[#allocation7 + $0x79c] sm:$0xf]
    %v2781 = vld [vmem:[#allocation7 + $0x7a0] sm:$0xf]
    %v2782 = vld [vmem:[#allocation7 + $0x7a4] sm:$0xf]
    %v2783 = vld [vmem:[#allocation7 + $0x7a8] sm:$0xf]
    %v2784 = vld [vmem:[#allocation7 + $0x7ac] sm:$0xf]
    %v2785 = vld [vmem:[#allocation7 + $0x7b0] sm:$0xf]
    %v2786 = vld [vmem:[#allocation7 + $0x7b4] sm:$0xf]
    %v2787 = vld [vmem:[#allocation7 + $0x7b8] sm:$0xf]
    %v2788 = vld [vmem:[#allocation7 + $0x7bc] sm:$0xf]
    %v2789 = vld [vmem:[#allocation7 + $0x7c0] sm:$0xf]
    %v2790 = vld [vmem:[#allocation7 + $0x7c4] sm:$0xf]
    %v2791 = vld [vmem:[#allocation7 + $0x7c8] sm:$0xf]
    %v2792 = vld [vmem:[#allocation7 + $0x7cc] sm:$0xf]
    %v2793 = vld [vmem:[#allocation7 + $0x7d0] sm:$0xf]
    %v2794 = vld [vmem:[#allocation7 + $0x7d4] sm:$0xf]
    %v2795 = vld [vmem:[#allocation7 + $0x7d8] sm:$0xf]
    %v2796 = vld [vmem:[#allocation7 + $0x7dc] sm:$0xf]
    %v2797 = vld [vmem:[#allocation7 + $0x7e0] sm:$0xf]
    %v2798 = vld [vmem:[#allocation7 + $0x7e4] sm:$0xf]
    %v2799 = vld [vmem:[#allocation7 + $0x7e8] sm:$0xf]
    %v2800 = vld [vmem:[#allocation7 + $0x7ec] sm:$0xf]
    %v2801 = vld [vmem:[#allocation7 + $0x7f0] sm:$0xf]
    %v2802 = vld [vmem:[#allocation7 + $0x7f4] sm:$0xf]
    %v2803 = vld [vmem:[#allocation7 + $0x7f8] sm:$0xf]
    %v2804 = vld [vmem:[#allocation7 + $0x7fc] sm:$0xf]
    %v2809 = vcombine.high %v2289, %v2289
    %v2811 = vunpack.c.l.s4 1966171168
    %v2812 = vunpack.c.0.s8 %v2811
    %v2813 = vlaneseq
    %v2814 = vshrl.u32 %v2813, 7
    %v2815 = vsub.s32 %v2812, %v2814
    %v2816 = vrot.slane %v2289, %v2815
    %v2818 = vunpack.c.l.s4 1966171168
    %v2819 = vunpack.c.0.s8 %v2818
    %v2820 = vlaneseq
    %v2821 = vshrl.u32 %v2820, 7
    %v2822 = vsub.s32 %v2819, %v2821
    %v2823 = vrot.slane %v2809, %v2822
    %v2824 = vcombine.high %v2816, %v2816
    %v2825 = vcombine.high %v2823, %v2823
    %v2827 = vunpack.c.l.s4 1966171168
    %v2828 = vunpack.c.0.s8 %v2827
    %v2829 = vlaneseq
    %v2830 = vshrl.u32 %v2829, 7
    %v2831 = vsub.s32 %v2828, %v2830
    %v2832 = vrot.slane %v2816, %v2831
    %v2834 = vunpack.c.l.s4 1966171168
    %v2835 = vunpack.c.0.s8 %v2834
    %v2836 = vlaneseq
    %v2837 = vshrl.u32 %v2836, 7
    %v2838 = vsub.s32 %v2835, %v2837
    %v2839 = vrot.slane %v2823, %v2838
    %v2841 = vunpack.c.l.s4 1966171168
    %v2842 = vunpack.c.0.s8 %v2841
    %v2843 = vlaneseq
    %v2844 = vshrl.u32 %v2843, 7
    %v2845 = vsub.s32 %v2842, %v2844
    %v2846 = vrot.slane %v2824, %v2845
    %v2848 = vunpack.c.l.s4 1966171168
    %v2849 = vunpack.c.0.s8 %v2848
    %v2850 = vlaneseq
    %v2851 = vshrl.u32 %v2850, 7
    %v2852 = vsub.s32 %v2849, %v2851
    %v2853 = vrot.slane %v2825, %v2852
    %v2854 = vcombine.high %v2832, %v2832
    %v2855 = vcombine.high %v2839, %v2839
    %v2856 = vcombine.high %v2846, %v2846
    %v2857 = vcombine.high %v2853, %v2853
    %v2858 = vcombine.high %v2290, %v2290
    %v2860 = vunpack.c.l.s4 1966171168
    %v2861 = vunpack.c.0.s8 %v2860
    %v2862 = vlaneseq
    %v2863 = vshrl.u32 %v2862, 7
    %v2864 = vsub.s32 %v2861, %v2863
    %v2865 = vrot.slane %v2290, %v2864
    %v2867 = vunpack.c.l.s4 1966171168
    %v2868 = vunpack.c.0.s8 %v2867
    %v2869 = vlaneseq
    %v2870 = vshrl.u32 %v2869, 7
    %v2871 = vsub.s32 %v2868, %v2870
    %v2872 = vrot.slane %v2858, %v2871
    %v2873 = vcombine.high %v2865, %v2865
    %v2874 = vcombine.high %v2872, %v2872
    %v2876 = vunpack.c.l.s4 1966171168
    %v2877 = vunpack.c.0.s8 %v2876
    %v2878 = vlaneseq
    %v2879 = vshrl.u32 %v2878, 7
    %v2880 = vsub.s32 %v2877, %v2879
    %v2881 = vrot.slane %v2865, %v2880
    %v2883 = vunpack.c.l.s4 1966171168
    %v2884 = vunpack.c.0.s8 %v2883
    %v2885 = vlaneseq
    %v2886 = vshrl.u32 %v2885, 7
    %v2887 = vsub.s32 %v2884, %v2886
    %v2888 = vrot.slane %v2872, %v2887
    %v2890 = vunpack.c.l.s4 1966171168
    %v2891 = vunpack.c.0.s8 %v2890
    %v2892 = vlaneseq
    %v2893 = vshrl.u32 %v2892, 7
    %v2894 = vsub.s32 %v2891, %v2893
    %v2895 = vrot.slane %v2873, %v2894
    %v2897 = vunpack.c.l.s4 1966171168
    %v2898 = vunpack.c.0.s8 %v2897
    %v2899 = vlaneseq
    %v2900 = vshrl.u32 %v2899, 7
    %v2901 = vsub.s32 %v2898, %v2900
    %v2902 = vrot.slane %v2874, %v2901
    %v2903 = vcombine.high %v2881, %v2881
    %v2904 = vcombine.high %v2888, %v2888
    %v2905 = vcombine.high %v2895, %v2895
    %v2906 = vcombine.high %v2902, %v2902
    %v2907 = vcombine.high %v2291, %v2291
    %v2909 = vunpack.c.l.s4 1966171168
    %v2910 = vunpack.c.0.s8 %v2909
    %v2911 = vlaneseq
    %v2912 = vshrl.u32 %v2911, 7
    %v2913 = vsub.s32 %v2910, %v2912
    %v2914 = vrot.slane %v2291, %v2913
    %v2916 = vunpack.c.l.s4 1966171168
    %v2917 = vunpack.c.0.s8 %v2916
    %v2918 = vlaneseq
    %v2919 = vshrl.u32 %v2918, 7
    %v2920 = vsub.s32 %v2917, %v2919
    %v2921 = vrot.slane %v2907, %v2920
    %v2922 = vcombine.high %v2914, %v2914
    %v2923 = vcombine.high %v2921, %v2921
    %v2925 = vunpack.c.l.s4 1966171168
    %v2926 = vunpack.c.0.s8 %v2925
    %v2927 = vlaneseq
    %v2928 = vshrl.u32 %v2927, 7
    %v2929 = vsub.s32 %v2926, %v2928
    %v2930 = vrot.slane %v2914, %v2929
    %v2932 = vunpack.c.l.s4 1966171168
    %v2933 = vunpack.c.0.s8 %v2932
    %v2934 = vlaneseq
    %v2935 = vshrl.u32 %v2934, 7
    %v2936 = vsub.s32 %v2933, %v2935
    %v2937 = vrot.slane %v2921, %v2936
    %v2939 = vunpack.c.l.s4 1966171168
    %v2940 = vunpack.c.0.s8 %v2939
    %v2941 = vlaneseq
    %v2942 = vshrl.u32 %v2941, 7
    %v2943 = vsub.s32 %v2940, %v2942
    %v2944 = vrot.slane %v2922, %v2943
    %v2946 = vunpack.c.l.s4 1966171168
    %v2947 = vunpack.c.0.s8 %v2946
    %v2948 = vlaneseq
    %v2949 = vshrl.u32 %v2948, 7
    %v2950 = vsub.s32 %v2947, %v2949
    %v2951 = vrot.slane %v2923, %v2950
    %v2952 = vcombine.high %v2930, %v2930
    %v2953 = vcombine.high %v2937, %v2937
    %v2954 = vcombine.high %v2944, %v2944
    %v2955 = vcombine.high %v2951, %v2951
    %v2956 = vcombine.high %v2292, %v2292
    %v2958 = vunpack.c.l.s4 1966171168
    %v2959 = vunpack.c.0.s8 %v2958
    %v2960 = vlaneseq
    %v2961 = vshrl.u32 %v2960, 7
    %v2962 = vsub.s32 %v2959, %v2961
    %v2963 = vrot.slane %v2292, %v2962
    %v2965 = vunpack.c.l.s4 1966171168
    %v2966 = vunpack.c.0.s8 %v2965
    %v2967 = vlaneseq
    %v2968 = vshrl.u32 %v2967, 7
    %v2969 = vsub.s32 %v2966, %v2968
    %v2970 = vrot.slane %v2956, %v2969
    %v2971 = vcombine.high %v2963, %v2963
    %v2972 = vcombine.high %v2970, %v2970
    %v2974 = vunpack.c.l.s4 1966171168
    %v2975 = vunpack.c.0.s8 %v2974
    %v2976 = vlaneseq
    %v2977 = vshrl.u32 %v2976, 7
    %v2978 = vsub.s32 %v2975, %v2977
    %v2979 = vrot.slane %v2963, %v2978
    %v2981 = vunpack.c.l.s4 1966171168
    %v2982 = vunpack.c.0.s8 %v2981
    %v2983 = vlaneseq
    %v2984 = vshrl.u32 %v2983, 7
    %v2985 = vsub.s32 %v2982, %v2984
    %v2986 = vrot.slane %v2970, %v2985
    %v2988 = vunpack.c.l.s4 1966171168
    %v2989 = vunpack.c.0.s8 %v2988
    %v2990 = vlaneseq
    %v2991 = vshrl.u32 %v2990, 7
    %v2992 = vsub.s32 %v2989, %v2991
    %v2993 = vrot.slane %v2971, %v2992
    %v2995 = vunpack.c.l.s4 1966171168
    %v2996 = vunpack.c.0.s8 %v2995
    %v2997 = vlaneseq
    %v2998 = vshrl.u32 %v2997, 7
    %v2999 = vsub.s32 %v2996, %v2998
    %v3000 = vrot.slane %v2972, %v2999
    %v3001 = vcombine.high %v2979, %v2979
    %v3002 = vcombine.high %v2986, %v2986
    %v3003 = vcombine.high %v2993, %v2993
    %v3004 = vcombine.high %v3000, %v3000
    %v3549 = vunpack.c.l.b16 %v2293
    %v3550 = vunpack.c.l.b16 %v2294
    %v3551 = vunpack.c.l.b16 %v2295
    %v3552 = vunpack.c.l.b16 %v2296
    %v3553 = vunpack.c.l.b16 %v2297
    %v3554 = vunpack.c.l.b16 %v2298
    %v3555 = vunpack.c.l.b16 %v2299
    %v3556 = vunpack.c.l.b16 %v2300
    %v3557 = vunpack.c.l.b16 %v2301
    %v3558 = vunpack.c.l.b16 %v2302
    %v3559 = vunpack.c.l.b16 %v2303
    %v3560 = vunpack.c.l.b16 %v2304
    %v3561 = vunpack.c.l.b16 %v2305
    %v3562 = vunpack.c.l.b16 %v2306
    %v3563 = vunpack.c.l.b16 %v2307
    %v3564 = vunpack.c.l.b16 %v2308
    %v3565 = vunpack.c.l.b16 %v2309
    %v3566 = vunpack.c.l.b16 %v2310
    %v3567 = vunpack.c.l.b16 %v2311
    %v3568 = vunpack.c.l.b16 %v2312
    %v3569 = vunpack.c.l.b16 %v2313
    %v3570 = vunpack.c.l.b16 %v2314
    %v3571 = vunpack.c.l.b16 %v2315
    %v3572 = vunpack.c.l.b16 %v2316
    %v3573 = vunpack.c.l.b16 %v2317
    %v3574 = vunpack.c.l.b16 %v2318
    %v3575 = vunpack.c.l.b16 %v2319
    %v3576 = vunpack.c.l.b16 %v2320
    %v3577 = vunpack.c.l.b16 %v2321
    %v3578 = vunpack.c.l.b16 %v2322
    %v3579 = vunpack.c.l.b16 %v2323
    %v3580 = vunpack.c.l.b16 %v2324
    %v3581 = vunpack.c.l.b16 %v2325
    %v3582 = vunpack.c.l.b16 %v2326
    %v3583 = vunpack.c.l.b16 %v2327
    %v3584 = vunpack.c.l.b16 %v2328
    %v3585 = vunpack.c.l.b16 %v2329
    %v3586 = vunpack.c.l.b16 %v2330
    %v3587 = vunpack.c.l.b16 %v2331
    %v3588 = vunpack.c.l.b16 %v2332
    %v3589 = vunpack.c.l.b16 %v2333
    %v3590 = vunpack.c.l.b16 %v2334
    %v3591 = vunpack.c.l.b16 %v2335
    %v3592 = vunpack.c.l.b16 %v2336
    %v3593 = vunpack.c.l.b16 %v2337
    %v3594 = vunpack.c.l.b16 %v2338
    %v3595 = vunpack.c.l.b16 %v2339
    %v3596 = vunpack.c.l.b16 %v2340
    %v3597 = vunpack.c.l.b16 %v2341
    %v3598 = vunpack.c.l.b16 %v2342
    %v3599 = vunpack.c.l.b16 %v2343
    %v3600 = vunpack.c.l.b16 %v2344
    %v3601 = vunpack.c.l.b16 %v2345
    %v3602 = vunpack.c.l.b16 %v2346
    %v3603 = vunpack.c.l.b16 %v2347
    %v3604 = vunpack.c.l.b16 %v2348
    %v3605 = vunpack.c.l.b16 %v2349
    %v3606 = vunpack.c.l.b16 %v2350
    %v3607 = vunpack.c.l.b16 %v2351
    %v3608 = vunpack.c.l.b16 %v2352
    %v3609 = vunpack.c.l.b16 %v2353
    %v3610 = vunpack.c.l.b16 %v2354
    %v3611 = vunpack.c.l.b16 %v2355
    %v3612 = vunpack.c.l.b16 %v2356
    %v3613 = vunpack.c.l.b16 %v2357
    %v3614 = vunpack.c.l.b16 %v2358
    %v3615 = vunpack.c.l.b16 %v2359
    %v3616 = vunpack.c.l.b16 %v2360
    %v3617 = vunpack.c.l.b16 %v2361
    %v3618 = vunpack.c.l.b16 %v2362
    %v3619 = vunpack.c.l.b16 %v2363
    %v3620 = vunpack.c.l.b16 %v2364
    %v3621 = vunpack.c.l.b16 %v2365
    %v3622 = vunpack.c.l.b16 %v2366
    %v3623 = vunpack.c.l.b16 %v2367
    %v3624 = vunpack.c.l.b16 %v2368
    %v3625 = vunpack.c.l.b16 %v2369
    %v3626 = vunpack.c.l.b16 %v2370
    %v3627 = vunpack.c.l.b16 %v2371
    %v3628 = vunpack.c.l.b16 %v2372
    %v3629 = vunpack.c.l.b16 %v2373
    %v3630 = vunpack.c.l.b16 %v2374
    %v3631 = vunpack.c.l.b16 %v2375
    %v3632 = vunpack.c.l.b16 %v2376
    %v3633 = vunpack.c.l.b16 %v2377
    %v3634 = vunpack.c.l.b16 %v2378
    %v3635 = vunpack.c.l.b16 %v2379
    %v3636 = vunpack.c.l.b16 %v2380
    %v3637 = vunpack.c.l.b16 %v2381
    %v3638 = vunpack.c.l.b16 %v2382
    %v3639 = vunpack.c.l.b16 %v2383
    %v3640 = vunpack.c.l.b16 %v2384
    %v3641 = vunpack.c.l.b16 %v2385
    %v3642 = vunpack.c.l.b16 %v2386
    %v3643 = vunpack.c.l.b16 %v2387
    %v3644 = vunpack.c.l.b16 %v2388
    %v3645 = vunpack.c.l.b16 %v2389
    %v3646 = vunpack.c.l.b16 %v2390
    %v3647 = vunpack.c.l.b16 %v2391
    %v3648 = vunpack.c.l.b16 %v2392
    %v3649 = vunpack.c.l.b16 %v2393
    %v3650 = vunpack.c.l.b16 %v2394
    %v3651 = vunpack.c.l.b16 %v2395
    %v3652 = vunpack.c.l.b16 %v2396
    %v3653 = vunpack.c.l.b16 %v2397
    %v3654 = vunpack.c.l.b16 %v2398
    %v3655 = vunpack.c.l.b16 %v2399
    %v3656 = vunpack.c.l.b16 %v2400
    %v3657 = vunpack.c.l.b16 %v2401
    %v3658 = vunpack.c.l.b16 %v2402
    %v3659 = vunpack.c.l.b16 %v2403
    %v3660 = vunpack.c.l.b16 %v2404
    %v3661 = vunpack.c.l.b16 %v2405
    %v3662 = vunpack.c.l.b16 %v2406
    %v3663 = vunpack.c.l.b16 %v2407
    %v3664 = vunpack.c.l.b16 %v2408
    %v3665 = vunpack.c.l.b16 %v2409
    %v3666 = vunpack.c.l.b16 %v2410
    %v3667 = vunpack.c.l.b16 %v2411
    %v3668 = vunpack.c.l.b16 %v2412
    %v3669 = vunpack.c.l.b16 %v2413
    %v3670 = vunpack.c.l.b16 %v2414
    %v3671 = vunpack.c.l.b16 %v2415
    %v3672 = vunpack.c.l.b16 %v2416
    %v3673 = vunpack.c.l.b16 %v2417
    %v3674 = vunpack.c.l.b16 %v2418
    %v3675 = vunpack.c.l.b16 %v2419
    %v3676 = vunpack.c.l.b16 %v2420
    %v3677 = vunpack.c.l.b16 %v2421
    %v3678 = vunpack.c.l.b16 %v2422
    %v3679 = vunpack.c.l.b16 %v2423
    %v3680 = vunpack.c.l.b16 %v2424
    %v3681 = vunpack.c.l.b16 %v2425
    %v3682 = vunpack.c.l.b16 %v2426
    %v3683 = vunpack.c.l.b16 %v2427
    %v3684 = vunpack.c.l.b16 %v2428
    %v3685 = vunpack.c.l.b16 %v2429
    %v3686 = vunpack.c.l.b16 %v2430
    %v3687 = vunpack.c.l.b16 %v2431
    %v3688 = vunpack.c.l.b16 %v2432
    %v3689 = vunpack.c.l.b16 %v2433
    %v3690 = vunpack.c.l.b16 %v2434
    %v3691 = vunpack.c.l.b16 %v2435
    %v3692 = vunpack.c.l.b16 %v2436
    %v3693 = vunpack.c.l.b16 %v2437
    %v3694 = vunpack.c.l.b16 %v2438
    %v3695 = vunpack.c.l.b16 %v2439
    %v3696 = vunpack.c.l.b16 %v2440
    %v3697 = vunpack.c.l.b16 %v2441
    %v3698 = vunpack.c.l.b16 %v2442
    %v3699 = vunpack.c.l.b16 %v2443
    %v3700 = vunpack.c.l.b16 %v2444
    %v3701 = vunpack.c.l.b16 %v2445
    %v3702 = vunpack.c.l.b16 %v2446
    %v3703 = vunpack.c.l.b16 %v2447
    %v3704 = vunpack.c.l.b16 %v2448
    %v3705 = vunpack.c.l.b16 %v2449
    %v3706 = vunpack.c.l.b16 %v2450
    %v3707 = vunpack.c.l.b16 %v2451
    %v3708 = vunpack.c.l.b16 %v2452
    %v3709 = vunpack.c.l.b16 %v2453
    %v3710 = vunpack.c.l.b16 %v2454
    %v3711 = vunpack.c.l.b16 %v2455
    %v3712 = vunpack.c.l.b16 %v2456
    %v3713 = vunpack.c.l.b16 %v2457
    %v3714 = vunpack.c.l.b16 %v2458
    %v3715 = vunpack.c.l.b16 %v2459
    %v3716 = vunpack.c.l.b16 %v2460
    %v3717 = vunpack.c.l.b16 %v2461
    %v3718 = vunpack.c.l.b16 %v2462
    %v3719 = vunpack.c.l.b16 %v2463
    %v3720 = vunpack.c.l.b16 %v2464
    %v3721 = vunpack.c.l.b16 %v2465
    %v3722 = vunpack.c.l.b16 %v2466
    %v3723 = vunpack.c.l.b16 %v2467
    %v3724 = vunpack.c.l.b16 %v2468
    %v3725 = vunpack.c.l.b16 %v2469
    %v3726 = vunpack.c.l.b16 %v2470
    %v3727 = vunpack.c.l.b16 %v2471
    %v3728 = vunpack.c.l.b16 %v2472
    %v3729 = vunpack.c.l.b16 %v2473
    %v3730 = vunpack.c.l.b16 %v2474
    %v3731 = vunpack.c.l.b16 %v2475
    %v3732 = vunpack.c.l.b16 %v2476
    %v3733 = vunpack.c.l.b16 %v2477
    %v3734 = vunpack.c.l.b16 %v2478
    %v3735 = vunpack.c.l.b16 %v2479
    %v3736 = vunpack.c.l.b16 %v2480
    %v3737 = vunpack.c.l.b16 %v2481
    %v3738 = vunpack.c.l.b16 %v2482
    %v3739 = vunpack.c.l.b16 %v2483
    %v3740 = vunpack.c.l.b16 %v2484
    %v3741 = vunpack.c.l.b16 %v2485
    %v3742 = vunpack.c.l.b16 %v2486
    %v3743 = vunpack.c.l.b16 %v2487
    %v3744 = vunpack.c.l.b16 %v2488
    %v3745 = vunpack.c.l.b16 %v2489
    %v3746 = vunpack.c.l.b16 %v2490
    %v3747 = vunpack.c.l.b16 %v2491
    %v3748 = vunpack.c.l.b16 %v2492
    %v3749 = vunpack.c.l.b16 %v2493
    %v3750 = vunpack.c.l.b16 %v2494
    %v3751 = vunpack.c.l.b16 %v2495
    %v3752 = vunpack.c.l.b16 %v2496
    %v3753 = vunpack.c.l.b16 %v2497
    %v3754 = vunpack.c.l.b16 %v2498
    %v3755 = vunpack.c.l.b16 %v2499
    %v3756 = vunpack.c.l.b16 %v2500
    %v3757 = vunpack.c.l.b16 %v2501
    %v3758 = vunpack.c.l.b16 %v2502
    %v3759 = vunpack.c.l.b16 %v2503
    %v3760 = vunpack.c.l.b16 %v2504
    %v3761 = vunpack.c.l.b16 %v2505
    %v3762 = vunpack.c.l.b16 %v2506
    %v3763 = vunpack.c.l.b16 %v2507
    %v3764 = vunpack.c.l.b16 %v2508
    %v3765 = vunpack.c.l.b16 %v2509
    %v3766 = vunpack.c.l.b16 %v2510
    %v3767 = vunpack.c.l.b16 %v2511
    %v3768 = vunpack.c.l.b16 %v2512
    %v3769 = vunpack.c.l.b16 %v2513
    %v3770 = vunpack.c.l.b16 %v2514
    %v3771 = vunpack.c.l.b16 %v2515
    %v3772 = vunpack.c.l.b16 %v2516
    %v3773 = vunpack.c.l.b16 %v2517
    %v3774 = vunpack.c.l.b16 %v2518
    %v3775 = vunpack.c.l.b16 %v2519
    %v3776 = vunpack.c.l.b16 %v2520
    %v3777 = vunpack.c.l.b16 %v2521
    %v3778 = vunpack.c.l.b16 %v2522
    %v3779 = vunpack.c.l.b16 %v2523
    %v3780 = vunpack.c.l.b16 %v2524
    %v3781 = vunpack.c.l.b16 %v2525
    %v3782 = vunpack.c.l.b16 %v2526
    %v3783 = vunpack.c.l.b16 %v2527
    %v3784 = vunpack.c.l.b16 %v2528
    %v3785 = vunpack.c.l.b16 %v2529
    %v3786 = vunpack.c.l.b16 %v2530
    %v3787 = vunpack.c.l.b16 %v2531
    %v3788 = vunpack.c.l.b16 %v2532
    %v3789 = vunpack.c.l.b16 %v2533
    %v3790 = vunpack.c.l.b16 %v2534
    %v3791 = vunpack.c.l.b16 %v2535
    %v3792 = vunpack.c.l.b16 %v2536
    %v3793 = vunpack.c.l.b16 %v2537
    %v3794 = vunpack.c.l.b16 %v2538
    %v3795 = vunpack.c.l.b16 %v2539
    %v3796 = vunpack.c.l.b16 %v2540
    %v3797 = vunpack.c.l.b16 %v2541
    %v3798 = vunpack.c.l.b16 %v2542
    %v3799 = vunpack.c.l.b16 %v2543
    %v3800 = vunpack.c.l.b16 %v2544
    %v3801 = vunpack.c.l.b16 %v2545
    %v3802 = vunpack.c.l.b16 %v2546
    %v3803 = vunpack.c.l.b16 %v2547
    %v3804 = vunpack.c.l.b16 %v2548
    %v3805 = vunpack.c.l.b16 %v2549
    %v3806 = vunpack.c.l.b16 %v2550
    %v3807 = vunpack.c.l.b16 %v2551
    %v3808 = vunpack.c.l.b16 %v2552
    %v3809 = vunpack.c.l.b16 %v2553
    %v3810 = vunpack.c.l.b16 %v2554
    %v3811 = vunpack.c.l.b16 %v2555
    %v3812 = vunpack.c.l.b16 %v2556
    %v3813 = vunpack.c.l.b16 %v2557
    %v3814 = vunpack.c.l.b16 %v2558
    %v3815 = vunpack.c.l.b16 %v2559
    %v3816 = vunpack.c.l.b16 %v2560
    %v3817 = vunpack.c.l.b16 %v2561
    %v3818 = vunpack.c.l.b16 %v2562
    %v3819 = vunpack.c.l.b16 %v2563
    %v3820 = vunpack.c.l.b16 %v2564
    %v3821 = vunpack.c.l.b16 %v2565
    %v3822 = vunpack.c.l.b16 %v2566
    %v3823 = vunpack.c.l.b16 %v2567
    %v3824 = vunpack.c.l.b16 %v2568
    %v3825 = vunpack.c.l.b16 %v2569
    %v3826 = vunpack.c.l.b16 %v2570
    %v3827 = vunpack.c.l.b16 %v2571
    %v3828 = vunpack.c.l.b16 %v2572
    %v3829 = vunpack.c.l.b16 %v2573
    %v3830 = vunpack.c.l.b16 %v2574
    %v3831 = vunpack.c.l.b16 %v2575
    %v3832 = vunpack.c.l.b16 %v2576
    %v3833 = vunpack.c.l.b16 %v2577
    %v3834 = vunpack.c.l.b16 %v2578
    %v3835 = vunpack.c.l.b16 %v2579
    %v3836 = vunpack.c.l.b16 %v2580
    %v3837 = vunpack.c.l.b16 %v2581
    %v3838 = vunpack.c.l.b16 %v2582
    %v3839 = vunpack.c.l.b16 %v2583
    %v3840 = vunpack.c.l.b16 %v2584
    %v3841 = vunpack.c.l.b16 %v2585
    %v3842 = vunpack.c.l.b16 %v2586
    %v3843 = vunpack.c.l.b16 %v2587
    %v3844 = vunpack.c.l.b16 %v2588
    %v3845 = vunpack.c.l.b16 %v2589
    %v3846 = vunpack.c.l.b16 %v2590
    %v3847 = vunpack.c.l.b16 %v2591
    %v3848 = vunpack.c.l.b16 %v2592
    %v3849 = vunpack.c.l.b16 %v2593
    %v3850 = vunpack.c.l.b16 %v2594
    %v3851 = vunpack.c.l.b16 %v2595
    %v3852 = vunpack.c.l.b16 %v2596
    %v3853 = vunpack.c.l.b16 %v2597
    %v3854 = vunpack.c.l.b16 %v2598
    %v3855 = vunpack.c.l.b16 %v2599
    %v3856 = vunpack.c.l.b16 %v2600
    %v3857 = vunpack.c.l.b16 %v2601
    %v3858 = vunpack.c.l.b16 %v2602
    %v3859 = vunpack.c.l.b16 %v2603
    %v3860 = vunpack.c.l.b16 %v2604
    %v3861 = vunpack.c.l.b16 %v2605
    %v3862 = vunpack.c.l.b16 %v2606
    %v3863 = vunpack.c.l.b16 %v2607
    %v3864 = vunpack.c.l.b16 %v2608
    %v3865 = vunpack.c.l.b16 %v2609
    %v3866 = vunpack.c.l.b16 %v2610
    %v3867 = vunpack.c.l.b16 %v2611
    %v3868 = vunpack.c.l.b16 %v2612
    %v3869 = vunpack.c.l.b16 %v2613
    %v3870 = vunpack.c.l.b16 %v2614
    %v3871 = vunpack.c.l.b16 %v2615
    %v3872 = vunpack.c.l.b16 %v2616
    %v3873 = vunpack.c.l.b16 %v2617
    %v3874 = vunpack.c.l.b16 %v2618
    %v3875 = vunpack.c.l.b16 %v2619
    %v3876 = vunpack.c.l.b16 %v2620
    %v3877 = vunpack.c.l.b16 %v2621
    %v3878 = vunpack.c.l.b16 %v2622
    %v3879 = vunpack.c.l.b16 %v2623
    %v3880 = vunpack.c.l.b16 %v2624
    %v3881 = vunpack.c.l.b16 %v2625
    %v3882 = vunpack.c.l.b16 %v2626
    %v3883 = vunpack.c.l.b16 %v2627
    %v3884 = vunpack.c.l.b16 %v2628
    %v3885 = vunpack.c.l.b16 %v2629
    %v3886 = vunpack.c.l.b16 %v2630
    %v3887 = vunpack.c.l.b16 %v2631
    %v3888 = vunpack.c.l.b16 %v2632
    %v3889 = vunpack.c.l.b16 %v2633
    %v3890 = vunpack.c.l.b16 %v2634
    %v3891 = vunpack.c.l.b16 %v2635
    %v3892 = vunpack.c.l.b16 %v2636
    %v3893 = vunpack.c.l.b16 %v2637
    %v3894 = vunpack.c.l.b16 %v2638
    %v3895 = vunpack.c.l.b16 %v2639
    %v3896 = vunpack.c.l.b16 %v2640
    %v3897 = vunpack.c.l.b16 %v2641
    %v3898 = vunpack.c.l.b16 %v2642
    %v3899 = vunpack.c.l.b16 %v2643
    %v3900 = vunpack.c.l.b16 %v2644
    %v3901 = vunpack.c.l.b16 %v2645
    %v3902 = vunpack.c.l.b16 %v2646
    %v3903 = vunpack.c.l.b16 %v2647
    %v3904 = vunpack.c.l.b16 %v2648
    %v3905 = vunpack.c.l.b16 %v2649
    %v3906 = vunpack.c.l.b16 %v2650
    %v3907 = vunpack.c.l.b16 %v2651
    %v3908 = vunpack.c.l.b16 %v2652
    %v3909 = vunpack.c.l.b16 %v2653
    %v3910 = vunpack.c.l.b16 %v2654
    %v3911 = vunpack.c.l.b16 %v2655
    %v3912 = vunpack.c.l.b16 %v2656
    %v3913 = vunpack.c.l.b16 %v2657
    %v3914 = vunpack.c.l.b16 %v2658
    %v3915 = vunpack.c.l.b16 %v2659
    %v3916 = vunpack.c.l.b16 %v2660
    %v3917 = vunpack.c.l.b16 %v2661
    %v3918 = vunpack.c.l.b16 %v2662
    %v3919 = vunpack.c.l.b16 %v2663
    %v3920 = vunpack.c.l.b16 %v2664
    %v3921 = vunpack.c.l.b16 %v2665
    %v3922 = vunpack.c.l.b16 %v2666
    %v3923 = vunpack.c.l.b16 %v2667
    %v3924 = vunpack.c.l.b16 %v2668
    %v3925 = vunpack.c.l.b16 %v2669
    %v3926 = vunpack.c.l.b16 %v2670
    %v3927 = vunpack.c.l.b16 %v2671
    %v3928 = vunpack.c.l.b16 %v2672
    %v3929 = vunpack.c.l.b16 %v2673
    %v3930 = vunpack.c.l.b16 %v2674
    %v3931 = vunpack.c.l.b16 %v2675
    %v3932 = vunpack.c.l.b16 %v2676
    %v3933 = vunpack.c.l.b16 %v2677
    %v3934 = vunpack.c.l.b16 %v2678
    %v3935 = vunpack.c.l.b16 %v2679
    %v3936 = vunpack.c.l.b16 %v2680
    %v3937 = vunpack.c.l.b16 %v2681
    %v3938 = vunpack.c.l.b16 %v2682
    %v3939 = vunpack.c.l.b16 %v2683
    %v3940 = vunpack.c.l.b16 %v2684
    %v3941 = vunpack.c.l.b16 %v2685
    %v3942 = vunpack.c.l.b16 %v2686
    %v3943 = vunpack.c.l.b16 %v2687
    %v3944 = vunpack.c.l.b16 %v2688
    %v3945 = vunpack.c.l.b16 %v2689
    %v3946 = vunpack.c.l.b16 %v2690
    %v3947 = vunpack.c.l.b16 %v2691
    %v3948 = vunpack.c.l.b16 %v2692
    %v3949 = vunpack.c.l.b16 %v2693
    %v3950 = vunpack.c.l.b16 %v2694
    %v3951 = vunpack.c.l.b16 %v2695
    %v3952 = vunpack.c.l.b16 %v2696
    %v3953 = vunpack.c.l.b16 %v2697
    %v3954 = vunpack.c.l.b16 %v2698
    %v3955 = vunpack.c.l.b16 %v2699
    %v3956 = vunpack.c.l.b16 %v2700
    %v3957 = vunpack.c.l.b16 %v2701
    %v3958 = vunpack.c.l.b16 %v2702
    %v3959 = vunpack.c.l.b16 %v2703
    %v3960 = vunpack.c.l.b16 %v2704
    %v3961 = vunpack.c.l.b16 %v2705
    %v3962 = vunpack.c.l.b16 %v2706
    %v3963 = vunpack.c.l.b16 %v2707
    %v3964 = vunpack.c.l.b16 %v2708
    %v3965 = vunpack.c.l.b16 %v2709
    %v3966 = vunpack.c.l.b16 %v2710
    %v3967 = vunpack.c.l.b16 %v2711
    %v3968 = vunpack.c.l.b16 %v2712
    %v3969 = vunpack.c.l.b16 %v2713
    %v3970 = vunpack.c.l.b16 %v2714
    %v3971 = vunpack.c.l.b16 %v2715
    %v3972 = vunpack.c.l.b16 %v2716
    %v3973 = vunpack.c.l.b16 %v2717
    %v3974 = vunpack.c.l.b16 %v2718
    %v3975 = vunpack.c.l.b16 %v2719
    %v3976 = vunpack.c.l.b16 %v2720
    %v3977 = vunpack.c.l.b16 %v2721
    %v3978 = vunpack.c.l.b16 %v2722
    %v3979 = vunpack.c.l.b16 %v2723
    %v3980 = vunpack.c.l.b16 %v2724
    %v3981 = vunpack.c.l.b16 %v2725
    %v3982 = vunpack.c.l.b16 %v2726
    %v3983 = vunpack.c.l.b16 %v2727
    %v3984 = vunpack.c.l.b16 %v2728
    %v3985 = vunpack.c.l.b16 %v2729
    %v3986 = vunpack.c.l.b16 %v2730
    %v3987 = vunpack.c.l.b16 %v2731
    %v3988 = vunpack.c.l.b16 %v2732
    %v3989 = vunpack.c.l.b16 %v2733
    %v3990 = vunpack.c.l.b16 %v2734
    %v3991 = vunpack.c.l.b16 %v2735
    %v3992 = vunpack.c.l.b16 %v2736
    %v3993 = vunpack.c.l.b16 %v2737
    %v3994 = vunpack.c.l.b16 %v2738
    %v3995 = vunpack.c.l.b16 %v2739
    %v3996 = vunpack.c.l.b16 %v2740
    %v3997 = vunpack.c.l.b16 %v2741
    %v3998 = vunpack.c.l.b16 %v2742
    %v3999 = vunpack.c.l.b16 %v2743
    %v4000 = vunpack.c.l.b16 %v2744
    %v4001 = vunpack.c.l.b16 %v2745
    %v4002 = vunpack.c.l.b16 %v2746
    %v4003 = vunpack.c.l.b16 %v2747
    %v4004 = vunpack.c.l.b16 %v2748
    %v4005 = vunpack.c.l.b16 %v2749
    %v4006 = vunpack.c.l.b16 %v2750
    %v4007 = vunpack.c.l.b16 %v2751
    %v4008 = vunpack.c.l.b16 %v2752
    %v4009 = vunpack.c.l.b16 %v2753
    %v4010 = vunpack.c.l.b16 %v2754
    %v4011 = vunpack.c.l.b16 %v2755
    %v4012 = vunpack.c.l.b16 %v2756
    %v4013 = vunpack.c.l.b16 %v2757
    %v4014 = vunpack.c.l.b16 %v2758
    %v4015 = vunpack.c.l.b16 %v2759
    %v4016 = vunpack.c.l.b16 %v2760
    %v4017 = vunpack.c.l.b16 %v2761
    %v4018 = vunpack.c.l.b16 %v2762
    %v4019 = vunpack.c.l.b16 %v2763
    %v4020 = vunpack.c.l.b16 %v2764
    %v4021 = vunpack.c.l.b16 %v2765
    %v4022 = vunpack.c.l.b16 %v2766
    %v4023 = vunpack.c.l.b16 %v2767
    %v4024 = vunpack.c.l.b16 %v2768
    %v4025 = vunpack.c.l.b16 %v2769
    %v4026 = vunpack.c.l.b16 %v2770
    %v4027 = vunpack.c.l.b16 %v2771
    %v4028 = vunpack.c.l.b16 %v2772
    %v4029 = vunpack.c.l.b16 %v2773
    %v4030 = vunpack.c.l.b16 %v2774
    %v4031 = vunpack.c.l.b16 %v2775
    %v4032 = vunpack.c.l.b16 %v2776
    %v4033 = vunpack.c.l.b16 %v2777
    %v4034 = vunpack.c.l.b16 %v2778
    %v4035 = vunpack.c.l.b16 %v2779
    %v4036 = vunpack.c.l.b16 %v2780
    %v4037 = vunpack.c.l.b16 %v2781
    %v4038 = vunpack.c.l.b16 %v2782
    %v4039 = vunpack.c.l.b16 %v2783
    %v4040 = vunpack.c.l.b16 %v2784
    %v4041 = vunpack.c.l.b16 %v2785
    %v4042 = vunpack.c.l.b16 %v2786
    %v4043 = vunpack.c.l.b16 %v2787
    %v4044 = vunpack.c.l.b16 %v2788
    %v4045 = vunpack.c.l.b16 %v2789
    %v4046 = vunpack.c.l.b16 %v2790
    %v4047 = vunpack.c.l.b16 %v2791
    %v4048 = vunpack.c.l.b16 %v2792
    %v4049 = vunpack.c.l.b16 %v2793
    %v4050 = vunpack.c.l.b16 %v2794
    %v4051 = vunpack.c.l.b16 %v2795
    %v4052 = vunpack.c.l.b16 %v2796
    %v4053 = vunpack.c.l.b16 %v2797
    %v4054 = vunpack.c.l.b16 %v2798
    %v4055 = vunpack.c.l.b16 %v2799
    %v4056 = vunpack.c.l.b16 %v2800
    %v4057 = vunpack.c.l.b16 %v2801
    %v4058 = vunpack.c.l.b16 %v2802
    %v4059 = vunpack.c.l.b16 %v2803
    %v4060 = vunpack.c.l.b16 %v2804
    %v4061 = vpack.c.b16 %v3550, %v3549
    %v4062 = vpack.c.b16 %v3552, %v3551
    %v4063 = vpack.c.b16 %v3554, %v3553
    %v4064 = vpack.c.b16 %v3556, %v3555
    %v4065 = vpack.c.b16 %v3558, %v3557
    %v4066 = vpack.c.b16 %v3560, %v3559
    %v4067 = vpack.c.b16 %v3562, %v3561
    %v4068 = vpack.c.b16 %v3564, %v3563
    %v4069 = vpack.c.b16 %v3566, %v3565
    %v4070 = vpack.c.b16 %v3568, %v3567
    %v4071 = vpack.c.b16 %v3570, %v3569
    %v4072 = vpack.c.b16 %v3572, %v3571
    %v4073 = vpack.c.b16 %v3574, %v3573
    %v4074 = vpack.c.b16 %v3576, %v3575
    %v4075 = vpack.c.b16 %v3578, %v3577
    %v4076 = vpack.c.b16 %v3580, %v3579
    %v4077 = vpack.c.b16 %v3582, %v3581
    %v4078 = vpack.c.b16 %v3584, %v3583
    %v4079 = vpack.c.b16 %v3586, %v3585
    %v4080 = vpack.c.b16 %v3588, %v3587
    %v4081 = vpack.c.b16 %v3590, %v3589
    %v4082 = vpack.c.b16 %v3592, %v3591
    %v4083 = vpack.c.b16 %v3594, %v3593
    %v4084 = vpack.c.b16 %v3596, %v3595
    %v4085 = vpack.c.b16 %v3598, %v3597
    %v4086 = vpack.c.b16 %v3600, %v3599
    %v4087 = vpack.c.b16 %v3602, %v3601
    %v4088 = vpack.c.b16 %v3604, %v3603
    %v4089 = vpack.c.b16 %v3606, %v3605
    %v4090 = vpack.c.b16 %v3608, %v3607
    %v4091 = vpack.c.b16 %v3610, %v3609
    %v4092 = vpack.c.b16 %v3612, %v3611
    %v4093 = vpack.c.b16 %v3614, %v3613
    %v4094 = vpack.c.b16 %v3616, %v3615
    %v4095 = vpack.c.b16 %v3618, %v3617
    %v4096 = vpack.c.b16 %v3620, %v3619
    %v4097 = vpack.c.b16 %v3622, %v3621
    %v4098 = vpack.c.b16 %v3624, %v3623
    %v4099 = vpack.c.b16 %v3626, %v3625
    %v4100 = vpack.c.b16 %v3628, %v3627
    %v4101 = vpack.c.b16 %v3630, %v3629
    %v4102 = vpack.c.b16 %v3632, %v3631
    %v4103 = vpack.c.b16 %v3634, %v3633
    %v4104 = vpack.c.b16 %v3636, %v3635
    %v4105 = vpack.c.b16 %v3638, %v3637
    %v4106 = vpack.c.b16 %v3640, %v3639
    %v4107 = vpack.c.b16 %v3642, %v3641
    %v4108 = vpack.c.b16 %v3644, %v3643
    %v4109 = vpack.c.b16 %v3646, %v3645
    %v4110 = vpack.c.b16 %v3648, %v3647
    %v4111 = vpack.c.b16 %v3650, %v3649
    %v4112 = vpack.c.b16 %v3652, %v3651
    %v4113 = vpack.c.b16 %v3654, %v3653
    %v4114 = vpack.c.b16 %v3656, %v3655
    %v4115 = vpack.c.b16 %v3658, %v3657
    %v4116 = vpack.c.b16 %v3660, %v3659
    %v4117 = vpack.c.b16 %v3662, %v3661
    %v4118 = vpack.c.b16 %v3664, %v3663
    %v4119 = vpack.c.b16 %v3666, %v3665
    %v4120 = vpack.c.b16 %v3668, %v3667
    %v4121 = vpack.c.b16 %v3670, %v3669
    %v4122 = vpack.c.b16 %v3672, %v3671
    %v4123 = vpack.c.b16 %v3674, %v3673
    %v4124 = vpack.c.b16 %v3676, %v3675
    %v4125 = vpack.c.b16 %v3678, %v3677
    %v4126 = vpack.c.b16 %v3680, %v3679
    %v4127 = vpack.c.b16 %v3682, %v3681
    %v4128 = vpack.c.b16 %v3684, %v3683
    %v4129 = vpack.c.b16 %v3686, %v3685
    %v4130 = vpack.c.b16 %v3688, %v3687
    %v4131 = vpack.c.b16 %v3690, %v3689
    %v4132 = vpack.c.b16 %v3692, %v3691
    %v4133 = vpack.c.b16 %v3694, %v3693
    %v4134 = vpack.c.b16 %v3696, %v3695
    %v4135 = vpack.c.b16 %v3698, %v3697
    %v4136 = vpack.c.b16 %v3700, %v3699
    %v4137 = vpack.c.b16 %v3702, %v3701
    %v4138 = vpack.c.b16 %v3704, %v3703
    %v4139 = vpack.c.b16 %v3706, %v3705
    %v4140 = vpack.c.b16 %v3708, %v3707
    %v4141 = vpack.c.b16 %v3710, %v3709
    %v4142 = vpack.c.b16 %v3712, %v3711
    %v4143 = vpack.c.b16 %v3714, %v3713
    %v4144 = vpack.c.b16 %v3716, %v3715
    %v4145 = vpack.c.b16 %v3718, %v3717
    %v4146 = vpack.c.b16 %v3720, %v3719
    %v4147 = vpack.c.b16 %v3722, %v3721
    %v4148 = vpack.c.b16 %v3724, %v3723
    %v4149 = vpack.c.b16 %v3726, %v3725
    %v4150 = vpack.c.b16 %v3728, %v3727
    %v4151 = vpack.c.b16 %v3730, %v3729
    %v4152 = vpack.c.b16 %v3732, %v3731
    %v4153 = vpack.c.b16 %v3734, %v3733
    %v4154 = vpack.c.b16 %v3736, %v3735
    %v4155 = vpack.c.b16 %v3738, %v3737
    %v4156 = vpack.c.b16 %v3740, %v3739
    %v4157 = vpack.c.b16 %v3742, %v3741
    %v4158 = vpack.c.b16 %v3744, %v3743
    %v4159 = vpack.c.b16 %v3746, %v3745
    %v4160 = vpack.c.b16 %v3748, %v3747
    %v4161 = vpack.c.b16 %v3750, %v3749
    %v4162 = vpack.c.b16 %v3752, %v3751
    %v4163 = vpack.c.b16 %v3754, %v3753
    %v4164 = vpack.c.b16 %v3756, %v3755
    %v4165 = vpack.c.b16 %v3758, %v3757
    %v4166 = vpack.c.b16 %v3760, %v3759
    %v4167 = vpack.c.b16 %v3762, %v3761
    %v4168 = vpack.c.b16 %v3764, %v3763
    %v4169 = vpack.c.b16 %v3766, %v3765
    %v4170 = vpack.c.b16 %v3768, %v3767
    %v4171 = vpack.c.b16 %v3770, %v3769
    %v4172 = vpack.c.b16 %v3772, %v3771
    %v4173 = vpack.c.b16 %v3774, %v3773
    %v4174 = vpack.c.b16 %v3776, %v3775
    %v4175 = vpack.c.b16 %v3778, %v3777
    %v4176 = vpack.c.b16 %v3780, %v3779
    %v4177 = vpack.c.b16 %v3782, %v3781
    %v4178 = vpack.c.b16 %v3784, %v3783
    %v4179 = vpack.c.b16 %v3786, %v3785
    %v4180 = vpack.c.b16 %v3788, %v3787
    %v4181 = vpack.c.b16 %v3790, %v3789
    %v4182 = vpack.c.b16 %v3792, %v3791
    %v4183 = vpack.c.b16 %v3794, %v3793
    %v4184 = vpack.c.b16 %v3796, %v3795
    %v4185 = vpack.c.b16 %v3798, %v3797
    %v4186 = vpack.c.b16 %v3800, %v3799
    %v4187 = vpack.c.b16 %v3802, %v3801
    %v4188 = vpack.c.b16 %v3804, %v3803
    %v4189 = vpack.c.b16 %v3806, %v3805
    %v4190 = vpack.c.b16 %v3808, %v3807
    %v4191 = vpack.c.b16 %v3810, %v3809
    %v4192 = vpack.c.b16 %v3812, %v3811
    %v4193 = vpack.c.b16 %v3814, %v3813
    %v4194 = vpack.c.b16 %v3816, %v3815
    %v4195 = vpack.c.b16 %v3818, %v3817
    %v4196 = vpack.c.b16 %v3820, %v3819
    %v4197 = vpack.c.b16 %v3822, %v3821
    %v4198 = vpack.c.b16 %v3824, %v3823
    %v4199 = vpack.c.b16 %v3826, %v3825
    %v4200 = vpack.c.b16 %v3828, %v3827
    %v4201 = vpack.c.b16 %v3830, %v3829
    %v4202 = vpack.c.b16 %v3832, %v3831
    %v4203 = vpack.c.b16 %v3834, %v3833
    %v4204 = vpack.c.b16 %v3836, %v3835
    %v4205 = vpack.c.b16 %v3838, %v3837
    %v4206 = vpack.c.b16 %v3840, %v3839
    %v4207 = vpack.c.b16 %v3842, %v3841
    %v4208 = vpack.c.b16 %v3844, %v3843
    %v4209 = vpack.c.b16 %v3846, %v3845
    %v4210 = vpack.c.b16 %v3848, %v3847
    %v4211 = vpack.c.b16 %v3850, %v3849
    %v4212 = vpack.c.b16 %v3852, %v3851
    %v4213 = vpack.c.b16 %v3854, %v3853
    %v4214 = vpack.c.b16 %v3856, %v3855
    %v4215 = vpack.c.b16 %v3858, %v3857
    %v4216 = vpack.c.b16 %v3860, %v3859
    %v4217 = vpack.c.b16 %v3862, %v3861
    %v4218 = vpack.c.b16 %v3864, %v3863
    %v4219 = vpack.c.b16 %v3866, %v3865
    %v4220 = vpack.c.b16 %v3868, %v3867
    %v4221 = vpack.c.b16 %v3870, %v3869
    %v4222 = vpack.c.b16 %v3872, %v3871
    %v4223 = vpack.c.b16 %v3874, %v3873
    %v4224 = vpack.c.b16 %v3876, %v3875
    %v4225 = vpack.c.b16 %v3878, %v3877
    %v4226 = vpack.c.b16 %v3880, %v3879
    %v4227 = vpack.c.b16 %v3882, %v3881
    %v4228 = vpack.c.b16 %v3884, %v3883
    %v4229 = vpack.c.b16 %v3886, %v3885
    %v4230 = vpack.c.b16 %v3888, %v3887
    %v4231 = vpack.c.b16 %v3890, %v3889
    %v4232 = vpack.c.b16 %v3892, %v3891
    %v4233 = vpack.c.b16 %v3894, %v3893
    %v4234 = vpack.c.b16 %v3896, %v3895
    %v4235 = vpack.c.b16 %v3898, %v3897
    %v4236 = vpack.c.b16 %v3900, %v3899
    %v4237 = vpack.c.b16 %v3902, %v3901
    %v4238 = vpack.c.b16 %v3904, %v3903
    %v4239 = vpack.c.b16 %v3906, %v3905
    %v4240 = vpack.c.b16 %v3908, %v3907
    %v4241 = vpack.c.b16 %v3910, %v3909
    %v4242 = vpack.c.b16 %v3912, %v3911
    %v4243 = vpack.c.b16 %v3914, %v3913
    %v4244 = vpack.c.b16 %v3916, %v3915
    %v4245 = vpack.c.b16 %v3918, %v3917
    %v4246 = vpack.c.b16 %v3920, %v3919
    %v4247 = vpack.c.b16 %v3922, %v3921
    %v4248 = vpack.c.b16 %v3924, %v3923
    %v4249 = vpack.c.b16 %v3926, %v3925
    %v4250 = vpack.c.b16 %v3928, %v3927
    %v4251 = vpack.c.b16 %v3930, %v3929
    %v4252 = vpack.c.b16 %v3932, %v3931
    %v4253 = vpack.c.b16 %v3934, %v3933
    %v4254 = vpack.c.b16 %v3936, %v3935
    %v4255 = vpack.c.b16 %v3938, %v3937
    %v4256 = vpack.c.b16 %v3940, %v3939
    %v4257 = vpack.c.b16 %v3942, %v3941
    %v4258 = vpack.c.b16 %v3944, %v3943
    %v4259 = vpack.c.b16 %v3946, %v3945
    %v4260 = vpack.c.b16 %v3948, %v3947
    %v4261 = vpack.c.b16 %v3950, %v3949
    %v4262 = vpack.c.b16 %v3952, %v3951
    %v4263 = vpack.c.b16 %v3954, %v3953
    %v4264 = vpack.c.b16 %v3956, %v3955
    %v4265 = vpack.c.b16 %v3958, %v3957
    %v4266 = vpack.c.b16 %v3960, %v3959
    %v4267 = vpack.c.b16 %v3962, %v3961
    %v4268 = vpack.c.b16 %v3964, %v3963
    %v4269 = vpack.c.b16 %v3966, %v3965
    %v4270 = vpack.c.b16 %v3968, %v3967
    %v4271 = vpack.c.b16 %v3970, %v3969
    %v4272 = vpack.c.b16 %v3972, %v3971
    %v4273 = vpack.c.b16 %v3974, %v3973
    %v4274 = vpack.c.b16 %v3976, %v3975
    %v4275 = vpack.c.b16 %v3978, %v3977
    %v4276 = vpack.c.b16 %v3980, %v3979
    %v4277 = vpack.c.b16 %v3982, %v3981
    %v4278 = vpack.c.b16 %v3984, %v3983
    %v4279 = vpack.c.b16 %v3986, %v3985
    %v4280 = vpack.c.b16 %v3988, %v3987
    %v4281 = vpack.c.b16 %v3990, %v3989
    %v4282 = vpack.c.b16 %v3992, %v3991
    %v4283 = vpack.c.b16 %v3994, %v3993
    %v4284 = vpack.c.b16 %v3996, %v3995
    %v4285 = vpack.c.b16 %v3998, %v3997
    %v4286 = vpack.c.b16 %v4000, %v3999
    %v4287 = vpack.c.b16 %v4002, %v4001
    %v4288 = vpack.c.b16 %v4004, %v4003
    %v4289 = vpack.c.b16 %v4006, %v4005
    %v4290 = vpack.c.b16 %v4008, %v4007
    %v4291 = vpack.c.b16 %v4010, %v4009
    %v4292 = vpack.c.b16 %v4012, %v4011
    %v4293 = vpack.c.b16 %v4014, %v4013
    %v4294 = vpack.c.b16 %v4016, %v4015
    %v4295 = vpack.c.b16 %v4018, %v4017
    %v4296 = vpack.c.b16 %v4020, %v4019
    %v4297 = vpack.c.b16 %v4022, %v4021
    %v4298 = vpack.c.b16 %v4024, %v4023
    %v4299 = vpack.c.b16 %v4026, %v4025
    %v4300 = vpack.c.b16 %v4028, %v4027
    %v4301 = vpack.c.b16 %v4030, %v4029
    %v4302 = vpack.c.b16 %v4032, %v4031
    %v4303 = vpack.c.b16 %v4034, %v4033
    %v4304 = vpack.c.b16 %v4036, %v4035
    %v4305 = vpack.c.b16 %v4038, %v4037
    %v4306 = vpack.c.b16 %v4040, %v4039
    %v4307 = vpack.c.b16 %v4042, %v4041
    %v4308 = vpack.c.b16 %v4044, %v4043
    %v4309 = vpack.c.b16 %v4046, %v4045
    %v4310 = vpack.c.b16 %v4048, %v4047
    %v4311 = vpack.c.b16 %v4050, %v4049
    %v4312 = vpack.c.b16 %v4052, %v4051
    %v4313 = vpack.c.b16 %v4054, %v4053
    %v4314 = vpack.c.b16 %v4056, %v4055
    %v4315 = vpack.c.b16 %v4058, %v4057
    %v4316 = vpack.c.b16 %v4060, %v4059
    %4573 = vmatprep.subr.bf16.mxu0 0
    %4574 = vmatpush1.bf16.msra.mxu0 %v4068
    %4575 = vmatprep.subr.bf16.mxu0 0
    %4576 = vmatpush1.bf16.msra.mxu0 %v4067
    %4577 = vmatprep.subr.bf16.mxu0 0
    %4578 = vmatpush1.bf16.msra.mxu0 %v4066
    %4579 = vmatprep.subr.bf16.mxu0 0
    %4580 = vmatpush1.bf16.msra.mxu0 %v4065
    %4581 = vmatprep.subr.bf16.mxu0 0
    %4582 = vmatpush1.bf16.msra.mxu0 %v4064
    %4583 = vmatprep.subr.bf16.mxu0 0
    %4584 = vmatpush1.bf16.msra.mxu0 %v4063
    %4585 = vmatprep.subr.bf16.mxu0 0
    %4586 = vmatpush1.bf16.msra.mxu0 %v4062
    %4587 = vmatprep.subr.bf16.mxu0 0
    %4588 = vmatpush1.bf16.msra.mxu0 %v4061
    %4589 = vmatprep.subr.bf16.mxu0 0
    %4590 = vmatpush2.bf16.msra.mxu0 %v4076
    %4591 = vmatprep.subr.bf16.mxu0 0
    %4592 = vmatpush2.bf16.msra.mxu0 %v4075
    %4593 = vmatprep.subr.bf16.mxu0 0
    %4594 = vmatpush2.bf16.msra.mxu0 %v4074
    %4595 = vmatprep.subr.bf16.mxu0 0
    %4596 = vmatpush2.bf16.msra.mxu0 %v4073
    %4597 = vmatprep.subr.bf16.mxu0 0
    %4598 = vmatpush2.bf16.msra.mxu0 %v4072
    %4599 = vmatprep.subr.bf16.mxu0 0
    %4600 = vmatpush2.bf16.msra.mxu0 %v4071
    %4601 = vmatprep.subr.bf16.mxu0 0
    %4602 = vmatpush2.bf16.msra.mxu0 %v4070
    %4603 = vmatprep.subr.bf16.mxu0 0
    %4604 = vmatpush2.bf16.msra.mxu0 %v4069
    %4605 = vmatprep.mubr.bf16.mxu0 %v2846
    %4606 = vmatmul.mubr.bf16.gmra.mxu0 %v2832
    %v4607 = vpop.f32.mrf.mxu0
    %v4608 = vadd.f32 0.0, %v4607
    %v4609 = vpop.f32.mrf.mxu0
    %v4610 = vpop.f32.mrf.mxu0
    %v4611 = vpop.f32.mrf.mxu0
    %4612 = vdwg.mxu0
    %4613 = vmatprep.subr.bf16.mxu0 0
    %4614 = vmatpush1.bf16.msra.mxu0 %v4084
    %4615 = vmatprep.subr.bf16.mxu0 0
    %4616 = vmatpush1.bf16.msra.mxu0 %v4083
    %4617 = vmatprep.subr.bf16.mxu0 0
    %4618 = vmatpush1.bf16.msra.mxu0 %v4082
    %4619 = vmatprep.subr.bf16.mxu0 0
    %4620 = vmatpush1.bf16.msra.mxu0 %v4081
    %4621 = vmatprep.subr.bf16.mxu0 0
    %4622 = vmatpush1.bf16.msra.mxu0 %v4080
    %4623 = vmatprep.subr.bf16.mxu0 0
    %4624 = vmatpush1.bf16.msra.mxu0 %v4079
    %4625 = vmatprep.subr.bf16.mxu0 0
    %4626 = vmatpush1.bf16.msra.mxu0 %v4078
    %4627 = vmatprep.subr.bf16.mxu0 0
    %4628 = vmatpush1.bf16.msra.mxu0 %v4077
    %4629 = vmatprep.subr.bf16.mxu0 0
    %4630 = vmatpush2.bf16.msra.mxu0 %v4092
    %4631 = vmatprep.subr.bf16.mxu0 0
    %4632 = vmatpush2.bf16.msra.mxu0 %v4091
    %4633 = vmatprep.subr.bf16.mxu0 0
    %4634 = vmatpush2.bf16.msra.mxu0 %v4090
    %4635 = vmatprep.subr.bf16.mxu0 0
    %4636 = vmatpush2.bf16.msra.mxu0 %v4089
    %4637 = vmatprep.subr.bf16.mxu0 0
    %4638 = vmatpush2.bf16.msra.mxu0 %v4088
    %4639 = vmatprep.subr.bf16.mxu0 0
    %4640 = vmatpush2.bf16.msra.mxu0 %v4087
    %4641 = vmatprep.subr.bf16.mxu0 0
    %4642 = vmatpush2.bf16.msra.mxu0 %v4086
    %4643 = vmatprep.subr.bf16.mxu0 0
    %4644 = vmatpush2.bf16.msra.mxu0 %v4085
    %4645 = vmatprep.mubr.bf16.mxu0 %v2856
    %4646 = vmatmul.mubr.bf16.gmra.mxu0 %v2854
    %v4647 = vpop.f32.mrf.mxu0
    %v4648 = vadd.f32 %v4608, %v4647
    %v4649 = vpop.f32.mrf.mxu0
    %v4650 = vpop.f32.mrf.mxu0
    %v4651 = vpop.f32.mrf.mxu0
    %4652 = vdwg.mxu0
    %4653 = vmatprep.subr.bf16.mxu0 0
    %4654 = vmatpush1.bf16.msra.mxu0 %v4100
    %4655 = vmatprep.subr.bf16.mxu0 0
    %4656 = vmatpush1.bf16.msra.mxu0 %v4099
    %4657 = vmatprep.subr.bf16.mxu0 0
    %4658 = vmatpush1.bf16.msra.mxu0 %v4098
    %4659 = vmatprep.subr.bf16.mxu0 0
    %4660 = vmatpush1.bf16.msra.mxu0 %v4097
    %4661 = vmatprep.subr.bf16.mxu0 0
    %4662 = vmatpush1.bf16.msra.mxu0 %v4096
    %4663 = vmatprep.subr.bf16.mxu0 0
    %4664 = vmatpush1.bf16.msra.mxu0 %v4095
    %4665 = vmatprep.subr.bf16.mxu0 0
    %4666 = vmatpush1.bf16.msra.mxu0 %v4094
    %4667 = vmatprep.subr.bf16.mxu0 0
    %4668 = vmatpush1.bf16.msra.mxu0 %v4093
    %4669 = vmatprep.subr.bf16.mxu0 0
    %4670 = vmatpush2.bf16.msra.mxu0 %v4108
    %4671 = vmatprep.subr.bf16.mxu0 0
    %4672 = vmatpush2.bf16.msra.mxu0 %v4107
    %4673 = vmatprep.subr.bf16.mxu0 0
    %4674 = vmatpush2.bf16.msra.mxu0 %v4106
    %4675 = vmatprep.subr.bf16.mxu0 0
    %4676 = vmatpush2.bf16.msra.mxu0 %v4105
    %4677 = vmatprep.subr.bf16.mxu0 0
    %4678 = vmatpush2.bf16.msra.mxu0 %v4104
    %4679 = vmatprep.subr.bf16.mxu0 0
    %4680 = vmatpush2.bf16.msra.mxu0 %v4103
    %4681 = vmatprep.subr.bf16.mxu0 0
    %4682 = vmatpush2.bf16.msra.mxu0 %v4102
    %4683 = vmatprep.subr.bf16.mxu0 0
    %4684 = vmatpush2.bf16.msra.mxu0 %v4101
    %4685 = vmatprep.mubr.bf16.mxu0 %v2853
    %4686 = vmatmul.mubr.bf16.gmra.mxu0 %v2839
    %v4687 = vpop.f32.mrf.mxu0
    %v4688 = vadd.f32 %v4648, %v4687
    %v4689 = vpop.f32.mrf.mxu0
    %v4690 = vpop.f32.mrf.mxu0
    %v4691 = vpop.f32.mrf.mxu0
    %4692 = vdwg.mxu0
    %4693 = vmatprep.subr.bf16.mxu0 0
    %4694 = vmatpush1.bf16.msra.mxu0 %v4116
    %4695 = vmatprep.subr.bf16.mxu0 0
    %4696 = vmatpush1.bf16.msra.mxu0 %v4115
    %4697 = vmatprep.subr.bf16.mxu0 0
    %4698 = vmatpush1.bf16.msra.mxu0 %v4114
    %4699 = vmatprep.subr.bf16.mxu0 0
    %4700 = vmatpush1.bf16.msra.mxu0 %v4113
    %4701 = vmatprep.subr.bf16.mxu0 0
    %4702 = vmatpush1.bf16.msra.mxu0 %v4112
    %4703 = vmatprep.subr.bf16.mxu0 0
    %4704 = vmatpush1.bf16.msra.mxu0 %v4111
    %4705 = vmatprep.subr.bf16.mxu0 0
    %4706 = vmatpush1.bf16.msra.mxu0 %v4110
    %4707 = vmatprep.subr.bf16.mxu0 0
    %4708 = vmatpush1.bf16.msra.mxu0 %v4109
    %4709 = vmatprep.subr.bf16.mxu0 0
    %4710 = vmatpush2.bf16.msra.mxu0 %v4124
    %4711 = vmatprep.subr.bf16.mxu0 0
    %4712 = vmatpush2.bf16.msra.mxu0 %v4123
    %4713 = vmatprep.subr.bf16.mxu0 0
    %4714 = vmatpush2.bf16.msra.mxu0 %v4122
    %4715 = vmatprep.subr.bf16.mxu0 0
    %4716 = vmatpush2.bf16.msra.mxu0 %v4121
    %4717 = vmatprep.subr.bf16.mxu0 0
    %4718 = vmatpush2.bf16.msra.mxu0 %v4120
    %4719 = vmatprep.subr.bf16.mxu0 0
    %4720 = vmatpush2.bf16.msra.mxu0 %v4119
    %4721 = vmatprep.subr.bf16.mxu0 0
    %4722 = vmatpush2.bf16.msra.mxu0 %v4118
    %4723 = vmatprep.subr.bf16.mxu0 0
    %4724 = vmatpush2.bf16.msra.mxu0 %v4117
    %4725 = vmatprep.mubr.bf16.mxu0 %v2857
    %4726 = vmatmul.mubr.bf16.gmra.mxu0 %v2855
    %v4727 = vpop.f32.mrf.mxu0
    %v4728 = vadd.f32 %v4688, %v4727
    %v4729 = vpop.f32.mrf.mxu0
    %v4730 = vpop.f32.mrf.mxu0
    %v4731 = vpop.f32.mrf.mxu0
    %4732 = vdwg.mxu0
    %4733 = vmatprep.subr.bf16.mxu0 0
    %4734 = vmatpush1.bf16.msra.mxu0 %v4132
    %4735 = vmatprep.subr.bf16.mxu0 0
    %4736 = vmatpush1.bf16.msra.mxu0 %v4131
    %4737 = vmatprep.subr.bf16.mxu0 0
    %4738 = vmatpush1.bf16.msra.mxu0 %v4130
    %4739 = vmatprep.subr.bf16.mxu0 0
    %4740 = vmatpush1.bf16.msra.mxu0 %v4129
    %4741 = vmatprep.subr.bf16.mxu0 0
    %4742 = vmatpush1.bf16.msra.mxu0 %v4128
    %4743 = vmatprep.subr.bf16.mxu0 0
    %4744 = vmatpush1.bf16.msra.mxu0 %v4127
    %4745 = vmatprep.subr.bf16.mxu0 0
    %4746 = vmatpush1.bf16.msra.mxu0 %v4126
    %4747 = vmatprep.subr.bf16.mxu0 0
    %4748 = vmatpush1.bf16.msra.mxu0 %v4125
    %4749 = vmatprep.subr.bf16.mxu0 0
    %4750 = vmatpush2.bf16.msra.mxu0 %v4140
    %4751 = vmatprep.subr.bf16.mxu0 0
    %4752 = vmatpush2.bf16.msra.mxu0 %v4139
    %4753 = vmatprep.subr.bf16.mxu0 0
    %4754 = vmatpush2.bf16.msra.mxu0 %v4138
    %4755 = vmatprep.subr.bf16.mxu0 0
    %4756 = vmatpush2.bf16.msra.mxu0 %v4137
    %4757 = vmatprep.subr.bf16.mxu0 0
    %4758 = vmatpush2.bf16.msra.mxu0 %v4136
    %4759 = vmatprep.subr.bf16.mxu0 0
    %4760 = vmatpush2.bf16.msra.mxu0 %v4135
    %4761 = vmatprep.subr.bf16.mxu0 0
    %4762 = vmatpush2.bf16.msra.mxu0 %v4134
    %4763 = vmatprep.subr.bf16.mxu0 0
    %4764 = vmatpush2.bf16.msra.mxu0 %v4133
    %4765 = vmatprep.mubr.bf16.mxu0 %v2895
    %4766 = vmatmul.mubr.bf16.gmra.mxu0 %v2881
    %v4767 = vpop.f32.mrf.mxu0
    %v4768 = vadd.f32 %v4728, %v4767
    %v4769 = vpop.f32.mrf.mxu0
    %v4770 = vpop.f32.mrf.mxu0
    %v4771 = vpop.f32.mrf.mxu0
    %4772 = vdwg.mxu0
    %4773 = vmatprep.subr.bf16.mxu0 0
    %4774 = vmatpush1.bf16.msra.mxu0 %v4148
    %4775 = vmatprep.subr.bf16.mxu0 0
    %4776 = vmatpush1.bf16.msra.mxu0 %v4147
    %4777 = vmatprep.subr.bf16.mxu0 0
    %4778 = vmatpush1.bf16.msra.mxu0 %v4146
    %4779 = vmatprep.subr.bf16.mxu0 0
    %4780 = vmatpush1.bf16.msra.mxu0 %v4145
    %4781 = vmatprep.subr.bf16.mxu0 0
    %4782 = vmatpush1.bf16.msra.mxu0 %v4144
    %4783 = vmatprep.subr.bf16.mxu0 0
    %4784 = vmatpush1.bf16.msra.mxu0 %v4143
    %4785 = vmatprep.subr.bf16.mxu0 0
    %4786 = vmatpush1.bf16.msra.mxu0 %v4142
    %4787 = vmatprep.subr.bf16.mxu0 0
    %4788 = vmatpush1.bf16.msra.mxu0 %v4141
    %4789 = vmatprep.subr.bf16.mxu0 0
    %4790 = vmatpush2.bf16.msra.mxu0 %v4156
    %4791 = vmatprep.subr.bf16.mxu0 0
    %4792 = vmatpush2.bf16.msra.mxu0 %v4155
    %4793 = vmatprep.subr.bf16.mxu0 0
    %4794 = vmatpush2.bf16.msra.mxu0 %v4154
    %4795 = vmatprep.subr.bf16.mxu0 0
    %4796 = vmatpush2.bf16.msra.mxu0 %v4153
    %4797 = vmatprep.subr.bf16.mxu0 0
    %4798 = vmatpush2.bf16.msra.mxu0 %v4152
    %4799 = vmatprep.subr.bf16.mxu0 0
    %4800 = vmatpush2.bf16.msra.mxu0 %v4151
    %4801 = vmatprep.subr.bf16.mxu0 0
    %4802 = vmatpush2.bf16.msra.mxu0 %v4150
    %4803 = vmatprep.subr.bf16.mxu0 0
    %4804 = vmatpush2.bf16.msra.mxu0 %v4149
    %4805 = vmatprep.mubr.bf16.mxu0 %v2905
    %4806 = vmatmul.mubr.bf16.gmra.mxu0 %v2903
    %v4807 = vpop.f32.mrf.mxu0
    %v4808 = vadd.f32 %v4768, %v4807
    %v4809 = vpop.f32.mrf.mxu0
    %v4810 = vpop.f32.mrf.mxu0
    %v4811 = vpop.f32.mrf.mxu0
    %4812 = vdwg.mxu0
    %4813 = vmatprep.subr.bf16.mxu0 0
    %4814 = vmatpush1.bf16.msra.mxu0 %v4164
    %4815 = vmatprep.subr.bf16.mxu0 0
    %4816 = vmatpush1.bf16.msra.mxu0 %v4163
    %4817 = vmatprep.subr.bf16.mxu0 0
    %4818 = vmatpush1.bf16.msra.mxu0 %v4162
    %4819 = vmatprep.subr.bf16.mxu0 0
    %4820 = vmatpush1.bf16.msra.mxu0 %v4161
    %4821 = vmatprep.subr.bf16.mxu0 0
    %4822 = vmatpush1.bf16.msra.mxu0 %v4160
    %4823 = vmatprep.subr.bf16.mxu0 0
    %4824 = vmatpush1.bf16.msra.mxu0 %v4159
    %4825 = vmatprep.subr.bf16.mxu0 0
    %4826 = vmatpush1.bf16.msra.mxu0 %v4158
    %4827 = vmatprep.subr.bf16.mxu0 0
    %4828 = vmatpush1.bf16.msra.mxu0 %v4157
    %4829 = vmatprep.subr.bf16.mxu0 0
    %4830 = vmatpush2.bf16.msra.mxu0 %v4172
    %4831 = vmatprep.subr.bf16.mxu0 0
    %4832 = vmatpush2.bf16.msra.mxu0 %v4171
    %4833 = vmatprep.subr.bf16.mxu0 0
    %4834 = vmatpush2.bf16.msra.mxu0 %v4170
    %4835 = vmatprep.subr.bf16.mxu0 0
    %4836 = vmatpush2.bf16.msra.mxu0 %v4169
    %4837 = vmatprep.subr.bf16.mxu0 0
    %4838 = vmatpush2.bf16.msra.mxu0 %v4168
    %4839 = vmatprep.subr.bf16.mxu0 0
    %4840 = vmatpush2.bf16.msra.mxu0 %v4167
    %4841 = vmatprep.subr.bf16.mxu0 0
    %4842 = vmatpush2.bf16.msra.mxu0 %v4166
    %4843 = vmatprep.subr.bf16.mxu0 0
    %4844 = vmatpush2.bf16.msra.mxu0 %v4165
    %4845 = vmatprep.mubr.bf16.mxu0 %v2902
    %4846 = vmatmul.mubr.bf16.gmra.mxu0 %v2888
    %v4847 = vpop.f32.mrf.mxu0
    %v4848 = vadd.f32 %v4808, %v4847
    %v4849 = vpop.f32.mrf.mxu0
    %v4850 = vpop.f32.mrf.mxu0
    %v4851 = vpop.f32.mrf.mxu0
    %4852 = vdwg.mxu0
    %4853 = vmatprep.subr.bf16.mxu0 0
    %4854 = vmatpush1.bf16.msra.mxu0 %v4180
    %4855 = vmatprep.subr.bf16.mxu0 0
    %4856 = vmatpush1.bf16.msra.mxu0 %v4179
    %4857 = vmatprep.subr.bf16.mxu0 0
    %4858 = vmatpush1.bf16.msra.mxu0 %v4178
    %4859 = vmatprep.subr.bf16.mxu0 0
    %4860 = vmatpush1.bf16.msra.mxu0 %v4177
    %4861 = vmatprep.subr.bf16.mxu0 0
    %4862 = vmatpush1.bf16.msra.mxu0 %v4176
    %4863 = vmatprep.subr.bf16.mxu0 0
    %4864 = vmatpush1.bf16.msra.mxu0 %v4175
    %4865 = vmatprep.subr.bf16.mxu0 0
    %4866 = vmatpush1.bf16.msra.mxu0 %v4174
    %4867 = vmatprep.subr.bf16.mxu0 0
    %4868 = vmatpush1.bf16.msra.mxu0 %v4173
    %4869 = vmatprep.subr.bf16.mxu0 0
    %4870 = vmatpush2.bf16.msra.mxu0 %v4188
    %4871 = vmatprep.subr.bf16.mxu0 0
    %4872 = vmatpush2.bf16.msra.mxu0 %v4187
    %4873 = vmatprep.subr.bf16.mxu0 0
    %4874 = vmatpush2.bf16.msra.mxu0 %v4186
    %4875 = vmatprep.subr.bf16.mxu0 0
    %4876 = vmatpush2.bf16.msra.mxu0 %v4185
    %4877 = vmatprep.subr.bf16.mxu0 0
    %4878 = vmatpush2.bf16.msra.mxu0 %v4184
    %4879 = vmatprep.subr.bf16.mxu0 0
    %4880 = vmatpush2.bf16.msra.mxu0 %v4183
    %4881 = vmatprep.subr.bf16.mxu0 0
    %4882 = vmatpush2.bf16.msra.mxu0 %v4182
    %4883 = vmatprep.subr.bf16.mxu0 0
    %4884 = vmatpush2.bf16.msra.mxu0 %v4181
    %4885 = vmatprep.mubr.bf16.mxu0 %v2906
    %4886 = vmatmul.mubr.bf16.gmra.mxu0 %v2904
    %v4887 = vpop.f32.mrf.mxu0
    %v4888 = vadd.f32 %v4848, %v4887
    %v4889 = vpop.f32.mrf.mxu0
    %v4890 = vpop.f32.mrf.mxu0
    %v4891 = vpop.f32.mrf.mxu0
    %4892 = vdwg.mxu0
    %4893 = vmatprep.subr.bf16.mxu0 0
    %4894 = vmatpush1.bf16.msra.mxu0 %v4196
    %4895 = vmatprep.subr.bf16.mxu0 0
    %4896 = vmatpush1.bf16.msra.mxu0 %v4195
    %4897 = vmatprep.subr.bf16.mxu0 0
    %4898 = vmatpush1.bf16.msra.mxu0 %v4194
    %4899 = vmatprep.subr.bf16.mxu0 0
    %4900 = vmatpush1.bf16.msra.mxu0 %v4193
    %4901 = vmatprep.subr.bf16.mxu0 0
    %4902 = vmatpush1.bf16.msra.mxu0 %v4192
    %4903 = vmatprep.subr.bf16.mxu0 0
    %4904 = vmatpush1.bf16.msra.mxu0 %v4191
    %4905 = vmatprep.subr.bf16.mxu0 0
    %4906 = vmatpush1.bf16.msra.mxu0 %v4190
    %4907 = vmatprep.subr.bf16.mxu0 0
    %4908 = vmatpush1.bf16.msra.mxu0 %v4189
    %4909 = vmatprep.subr.bf16.mxu0 0
    %4910 = vmatpush2.bf16.msra.mxu0 %v4204
    %4911 = vmatprep.subr.bf16.mxu0 0
    %4912 = vmatpush2.bf16.msra.mxu0 %v4203
    %4913 = vmatprep.subr.bf16.mxu0 0
    %4914 = vmatpush2.bf16.msra.mxu0 %v4202
    %4915 = vmatprep.subr.bf16.mxu0 0
    %4916 = vmatpush2.bf16.msra.mxu0 %v4201
    %4917 = vmatprep.subr.bf16.mxu0 0
    %4918 = vmatpush2.bf16.msra.mxu0 %v4200
    %4919 = vmatprep.subr.bf16.mxu0 0
    %4920 = vmatpush2.bf16.msra.mxu0 %v4199
    %4921 = vmatprep.subr.bf16.mxu0 0
    %4922 = vmatpush2.bf16.msra.mxu0 %v4198
    %4923 = vmatprep.subr.bf16.mxu0 0
    %4924 = vmatpush2.bf16.msra.mxu0 %v4197
    %4925 = vmatprep.mubr.bf16.mxu0 %v2944
    %4926 = vmatmul.mubr.bf16.gmra.mxu0 %v2930
    %v4927 = vpop.f32.mrf.mxu0
    %v4928 = vadd.f32 %v4888, %v4927
    %v4929 = vpop.f32.mrf.mxu0
    %v4930 = vpop.f32.mrf.mxu0
    %v4931 = vpop.f32.mrf.mxu0
    %4932 = vdwg.mxu0
    %4933 = vmatprep.subr.bf16.mxu0 0
    %4934 = vmatpush1.bf16.msra.mxu0 %v4212
    %4935 = vmatprep.subr.bf16.mxu0 0
    %4936 = vmatpush1.bf16.msra.mxu0 %v4211
    %4937 = vmatprep.subr.bf16.mxu0 0
    %4938 = vmatpush1.bf16.msra.mxu0 %v4210
    %4939 = vmatprep.subr.bf16.mxu0 0
    %4940 = vmatpush1.bf16.msra.mxu0 %v4209
    %4941 = vmatprep.subr.bf16.mxu0 0
    %4942 = vmatpush1.bf16.msra.mxu0 %v4208
    %4943 = vmatprep.subr.bf16.mxu0 0
    %4944 = vmatpush1.bf16.msra.mxu0 %v4207
    %4945 = vmatprep.subr.bf16.mxu0 0
    %4946 = vmatpush1.bf16.msra.mxu0 %v4206
    %4947 = vmatprep.subr.bf16.mxu0 0
    %4948 = vmatpush1.bf16.msra.mxu0 %v4205
    %4949 = vmatprep.subr.bf16.mxu0 0
    %4950 = vmatpush2.bf16.msra.mxu0 %v4220
    %4951 = vmatprep.subr.bf16.mxu0 0
    %4952 = vmatpush2.bf16.msra.mxu0 %v4219
    %4953 = vmatprep.subr.bf16.mxu0 0
    %4954 = vmatpush2.bf16.msra.mxu0 %v4218
    %4955 = vmatprep.subr.bf16.mxu0 0
    %4956 = vmatpush2.bf16.msra.mxu0 %v4217
    %4957 = vmatprep.subr.bf16.mxu0 0
    %4958 = vmatpush2.bf16.msra.mxu0 %v4216
    %4959 = vmatprep.subr.bf16.mxu0 0
    %4960 = vmatpush2.bf16.msra.mxu0 %v4215
    %4961 = vmatprep.subr.bf16.mxu0 0
    %4962 = vmatpush2.bf16.msra.mxu0 %v4214
    %4963 = vmatprep.subr.bf16.mxu0 0
    %4964 = vmatpush2.bf16.msra.mxu0 %v4213
    %4965 = vmatprep.mubr.bf16.mxu0 %v2954
    %4966 = vmatmul.mubr.bf16.gmra.mxu0 %v2952
    %v4967 = vpop.f32.mrf.mxu0
    %v4968 = vadd.f32 %v4928, %v4967
    %v4969 = vpop.f32.mrf.mxu0
    %v4970 = vpop.f32.mrf.mxu0
    %v4971 = vpop.f32.mrf.mxu0
    %4972 = vdwg.mxu0
    %4973 = vmatprep.subr.bf16.mxu0 0
    %4974 = vmatpush1.bf16.msra.mxu0 %v4228
    %4975 = vmatprep.subr.bf16.mxu0 0
    %4976 = vmatpush1.bf16.msra.mxu0 %v4227
    %4977 = vmatprep.subr.bf16.mxu0 0
    %4978 = vmatpush1.bf16.msra.mxu0 %v4226
    %4979 = vmatprep.subr.bf16.mxu0 0
    %4980 = vmatpush1.bf16.msra.mxu0 %v4225
    %4981 = vmatprep.subr.bf16.mxu0 0
    %4982 = vmatpush1.bf16.msra.mxu0 %v4224
    %4983 = vmatprep.subr.bf16.mxu0 0
    %4984 = vmatpush1.bf16.msra.mxu0 %v4223
    %4985 = vmatprep.subr.bf16.mxu0 0
    %4986 = vmatpush1.bf16.msra.mxu0 %v4222
    %4987 = vmatprep.subr.bf16.mxu0 0
    %4988 = vmatpush1.bf16.msra.mxu0 %v4221
    %4989 = vmatprep.subr.bf16.mxu0 0
    %4990 = vmatpush2.bf16.msra.mxu0 %v4236
    %4991 = vmatprep.subr.bf16.mxu0 0
    %4992 = vmatpush2.bf16.msra.mxu0 %v4235
    %4993 = vmatprep.subr.bf16.mxu0 0
    %4994 = vmatpush2.bf16.msra.mxu0 %v4234
    %4995 = vmatprep.subr.bf16.mxu0 0
    %4996 = vmatpush2.bf16.msra.mxu0 %v4233
    %4997 = vmatprep.subr.bf16.mxu0 0
    %4998 = vmatpush2.bf16.msra.mxu0 %v4232
    %4999 = vmatprep.subr.bf16.mxu0 0
    %5000 = vmatpush2.bf16.msra.mxu0 %v4231
    %5001 = vmatprep.subr.bf16.mxu0 0
    %5002 = vmatpush2.bf16.msra.mxu0 %v4230
    %5003 = vmatprep.subr.bf16.mxu0 0
    %5004 = vmatpush2.bf16.msra.mxu0 %v4229
    %5005 = vmatprep.mubr.bf16.mxu0 %v2951
    %5006 = vmatmul.mubr.bf16.gmra.mxu0 %v2937
    %v5007 = vpop.f32.mrf.mxu0
    %v5008 = vadd.f32 %v4968, %v5007
    %v5009 = vpop.f32.mrf.mxu0
    %v5010 = vpop.f32.mrf.mxu0
    %v5011 = vpop.f32.mrf.mxu0
    %5012 = vdwg.mxu0
    %5013 = vmatprep.subr.bf16.mxu0 0
    %5014 = vmatpush1.bf16.msra.mxu0 %v4244
    %5015 = vmatprep.subr.bf16.mxu0 0
    %5016 = vmatpush1.bf16.msra.mxu0 %v4243
    %5017 = vmatprep.subr.bf16.mxu0 0
    %5018 = vmatpush1.bf16.msra.mxu0 %v4242
    %5019 = vmatprep.subr.bf16.mxu0 0
    %5020 = vmatpush1.bf16.msra.mxu0 %v4241
    %5021 = vmatprep.subr.bf16.mxu0 0
    %5022 = vmatpush1.bf16.msra.mxu0 %v4240
    %5023 = vmatprep.subr.bf16.mxu0 0
    %5024 = vmatpush1.bf16.msra.mxu0 %v4239
    %5025 = vmatprep.subr.bf16.mxu0 0
    %5026 = vmatpush1.bf16.msra.mxu0 %v4238
    %5027 = vmatprep.subr.bf16.mxu0 0
    %5028 = vmatpush1.bf16.msra.mxu0 %v4237
    %5029 = vmatprep.subr.bf16.mxu0 0
    %5030 = vmatpush2.bf16.msra.mxu0 %v4252
    %5031 = vmatprep.subr.bf16.mxu0 0
    %5032 = vmatpush2.bf16.msra.mxu0 %v4251
    %5033 = vmatprep.subr.bf16.mxu0 0
    %5034 = vmatpush2.bf16.msra.mxu0 %v4250
    %5035 = vmatprep.subr.bf16.mxu0 0
    %5036 = vmatpush2.bf16.msra.mxu0 %v4249
    %5037 = vmatprep.subr.bf16.mxu0 0
    %5038 = vmatpush2.bf16.msra.mxu0 %v4248
    %5039 = vmatprep.subr.bf16.mxu0 0
    %5040 = vmatpush2.bf16.msra.mxu0 %v4247
    %5041 = vmatprep.subr.bf16.mxu0 0
    %5042 = vmatpush2.bf16.msra.mxu0 %v4246
    %5043 = vmatprep.subr.bf16.mxu0 0
    %5044 = vmatpush2.bf16.msra.mxu0 %v4245
    %5045 = vmatprep.mubr.bf16.mxu0 %v2955
    %5046 = vmatmul.mubr.bf16.gmra.mxu0 %v2953
    %v5047 = vpop.f32.mrf.mxu0
    %v5048 = vadd.f32 %v5008, %v5047
    %v5049 = vpop.f32.mrf.mxu0
    %v5050 = vpop.f32.mrf.mxu0
    %v5051 = vpop.f32.mrf.mxu0
    %5052 = vdwg.mxu0
    %5053 = vmatprep.subr.bf16.mxu0 0
    %5054 = vmatpush1.bf16.msra.mxu0 %v4260
    %5055 = vmatprep.subr.bf16.mxu0 0
    %5056 = vmatpush1.bf16.msra.mxu0 %v4259
    %5057 = vmatprep.subr.bf16.mxu0 0
    %5058 = vmatpush1.bf16.msra.mxu0 %v4258
    %5059 = vmatprep.subr.bf16.mxu0 0
    %5060 = vmatpush1.bf16.msra.mxu0 %v4257
    %5061 = vmatprep.subr.bf16.mxu0 0
    %5062 = vmatpush1.bf16.msra.mxu0 %v4256
    %5063 = vmatprep.subr.bf16.mxu0 0
    %5064 = vmatpush1.bf16.msra.mxu0 %v4255
    %5065 = vmatprep.subr.bf16.mxu0 0
    %5066 = vmatpush1.bf16.msra.mxu0 %v4254
    %5067 = vmatprep.subr.bf16.mxu0 0
    %5068 = vmatpush1.bf16.msra.mxu0 %v4253
    %5069 = vmatprep.subr.bf16.mxu0 0
    %5070 = vmatpush2.bf16.msra.mxu0 %v4268
    %5071 = vmatprep.subr.bf16.mxu0 0
    %5072 = vmatpush2.bf16.msra.mxu0 %v4267
    %5073 = vmatprep.subr.bf16.mxu0 0
    %5074 = vmatpush2.bf16.msra.mxu0 %v4266
    %5075 = vmatprep.subr.bf16.mxu0 0
    %5076 = vmatpush2.bf16.msra.mxu0 %v4265
    %5077 = vmatprep.subr.bf16.mxu0 0
    %5078 = vmatpush2.bf16.msra.mxu0 %v4264
    %5079 = vmatprep.subr.bf16.mxu0 0
    %5080 = vmatpush2.bf16.msra.mxu0 %v4263
    %5081 = vmatprep.subr.bf16.mxu0 0
    %5082 = vmatpush2.bf16.msra.mxu0 %v4262
    %5083 = vmatprep.subr.bf16.mxu0 0
    %5084 = vmatpush2.bf16.msra.mxu0 %v4261
    %5085 = vmatprep.mubr.bf16.mxu0 %v2993
    %5086 = vmatmul.mubr.bf16.gmra.mxu0 %v2979
    %v5087 = vpop.f32.mrf.mxu0
    %v5088 = vadd.f32 %v5048, %v5087
    %v5089 = vpop.f32.mrf.mxu0
    %v5090 = vpop.f32.mrf.mxu0
    %v5091 = vpop.f32.mrf.mxu0
    %5092 = vdwg.mxu0
    %5093 = vmatprep.subr.bf16.mxu0 0
    %5094 = vmatpush1.bf16.msra.mxu0 %v4276
    %5095 = vmatprep.subr.bf16.mxu0 0
    %5096 = vmatpush1.bf16.msra.mxu0 %v4275
    %5097 = vmatprep.subr.bf16.mxu0 0
    %5098 = vmatpush1.bf16.msra.mxu0 %v4274
    %5099 = vmatprep.subr.bf16.mxu0 0
    %5100 = vmatpush1.bf16.msra.mxu0 %v4273
    %5101 = vmatprep.subr.bf16.mxu0 0
    %5102 = vmatpush1.bf16.msra.mxu0 %v4272
    %5103 = vmatprep.subr.bf16.mxu0 0
    %5104 = vmatpush1.bf16.msra.mxu0 %v4271
    %5105 = vmatprep.subr.bf16.mxu0 0
    %5106 = vmatpush1.bf16.msra.mxu0 %v4270
    %5107 = vmatprep.subr.bf16.mxu0 0
    %5108 = vmatpush1.bf16.msra.mxu0 %v4269
    %5109 = vmatprep.subr.bf16.mxu0 0
    %5110 = vmatpush2.bf16.msra.mxu0 %v4284
    %5111 = vmatprep.subr.bf16.mxu0 0
    %5112 = vmatpush2.bf16.msra.mxu0 %v4283
    %5113 = vmatprep.subr.bf16.mxu0 0
    %5114 = vmatpush2.bf16.msra.mxu0 %v4282
    %5115 = vmatprep.subr.bf16.mxu0 0
    %5116 = vmatpush2.bf16.msra.mxu0 %v4281
    %5117 = vmatprep.subr.bf16.mxu0 0
    %5118 = vmatpush2.bf16.msra.mxu0 %v4280
    %5119 = vmatprep.subr.bf16.mxu0 0
    %5120 = vmatpush2.bf16.msra.mxu0 %v4279
    %5121 = vmatprep.subr.bf16.mxu0 0
    %5122 = vmatpush2.bf16.msra.mxu0 %v4278
    %5123 = vmatprep.subr.bf16.mxu0 0
    %5124 = vmatpush2.bf16.msra.mxu0 %v4277
    %5125 = vmatprep.mubr.bf16.mxu0 %v3003
    %5126 = vmatmul.mubr.bf16.gmra.mxu0 %v3001
    %v5127 = vpop.f32.mrf.mxu0
    %v5128 = vadd.f32 %v5088, %v5127
    %v5129 = vpop.f32.mrf.mxu0
    %v5130 = vpop.f32.mrf.mxu0
    %v5131 = vpop.f32.mrf.mxu0
    %5132 = vdwg.mxu0
    %5133 = vmatprep.subr.bf16.mxu0 0
    %5134 = vmatpush1.bf16.msra.mxu0 %v4292
    %5135 = vmatprep.subr.bf16.mxu0 0
    %5136 = vmatpush1.bf16.msra.mxu0 %v4291
    %5137 = vmatprep.subr.bf16.mxu0 0
    %5138 = vmatpush1.bf16.msra.mxu0 %v4290
    %5139 = vmatprep.subr.bf16.mxu0 0
    %5140 = vmatpush1.bf16.msra.mxu0 %v4289
    %5141 = vmatprep.subr.bf16.mxu0 0
    %5142 = vmatpush1.bf16.msra.mxu0 %v4288
    %5143 = vmatprep.subr.bf16.mxu0 0
    %5144 = vmatpush1.bf16.msra.mxu0 %v4287
    %5145 = vmatprep.subr.bf16.mxu0 0
    %5146 = vmatpush1.bf16.msra.mxu0 %v4286
    %5147 = vmatprep.subr.bf16.mxu0 0
    %5148 = vmatpush1.bf16.msra.mxu0 %v4285
    %5149 = vmatprep.subr.bf16.mxu0 0
    %5150 = vmatpush2.bf16.msra.mxu0 %v4300
    %5151 = vmatprep.subr.bf16.mxu0 0
    %5152 = vmatpush2.bf16.msra.mxu0 %v4299
    %5153 = vmatprep.subr.bf16.mxu0 0
    %5154 = vmatpush2.bf16.msra.mxu0 %v4298
    %5155 = vmatprep.subr.bf16.mxu0 0
    %5156 = vmatpush2.bf16.msra.mxu0 %v4297
    %5157 = vmatprep.subr.bf16.mxu0 0
    %5158 = vmatpush2.bf16.msra.mxu0 %v4296
    %5159 = vmatprep.subr.bf16.mxu0 0
    %5160 = vmatpush2.bf16.msra.mxu0 %v4295
    %5161 = vmatprep.subr.bf16.mxu0 0
    %5162 = vmatpush2.bf16.msra.mxu0 %v4294
    %5163 = vmatprep.subr.bf16.mxu0 0
    %5164 = vmatpush2.bf16.msra.mxu0 %v4293
    %5165 = vmatprep.mubr.bf16.mxu0 %v3000
    %5166 = vmatmul.mubr.bf16.gmra.mxu0 %v2986
    %v5167 = vpop.f32.mrf.mxu0
    %v5168 = vadd.f32 %v5128, %v5167
    %v5169 = vpop.f32.mrf.mxu0
    %v5170 = vpop.f32.mrf.mxu0
    %v5171 = vpop.f32.mrf.mxu0
    %5172 = vdwg.mxu0
    %5173 = vmatprep.subr.bf16.mxu0 0
    %5174 = vmatpush1.bf16.msra.mxu0 %v4308
    %5175 = vmatprep.subr.bf16.mxu0 0
    %5176 = vmatpush1.bf16.msra.mxu0 %v4307
    %5177 = vmatprep.subr.bf16.mxu0 0
    %5178 = vmatpush1.bf16.msra.mxu0 %v4306
    %5179 = vmatprep.subr.bf16.mxu0 0
    %5180 = vmatpush1.bf16.msra.mxu0 %v4305
    %5181 = vmatprep.subr.bf16.mxu0 0
    %5182 = vmatpush1.bf16.msra.mxu0 %v4304
    %5183 = vmatprep.subr.bf16.mxu0 0
    %5184 = vmatpush1.bf16.msra.mxu0 %v4303
    %5185 = vmatprep.subr.bf16.mxu0 0
    %5186 = vmatpush1.bf16.msra.mxu0 %v4302
    %5187 = vmatprep.subr.bf16.mxu0 0
    %5188 = vmatpush1.bf16.msra.mxu0 %v4301
    %5189 = vmatprep.subr.bf16.mxu0 0
    %5190 = vmatpush2.bf16.msra.mxu0 %v4316
    %5191 = vmatprep.subr.bf16.mxu0 0
    %5192 = vmatpush2.bf16.msra.mxu0 %v4315
    %5193 = vmatprep.subr.bf16.mxu0 0
    %5194 = vmatpush2.bf16.msra.mxu0 %v4314
    %5195 = vmatprep.subr.bf16.mxu0 0
    %5196 = vmatpush2.bf16.msra.mxu0 %v4313
    %5197 = vmatprep.subr.bf16.mxu0 0
    %5198 = vmatpush2.bf16.msra.mxu0 %v4312
    %5199 = vmatprep.subr.bf16.mxu0 0
    %5200 = vmatpush2.bf16.msra.mxu0 %v4311
    %5201 = vmatprep.subr.bf16.mxu0 0
    %5202 = vmatpush2.bf16.msra.mxu0 %v4310
    %5203 = vmatprep.subr.bf16.mxu0 0
    %5204 = vmatpush2.bf16.msra.mxu0 %v4309
    %5205 = vmatprep.mubr.bf16.mxu0 %v3004
    %5206 = vmatmul.mubr.bf16.gmra.mxu0 %v3002
    %v5207 = vpop.f32.mrf.mxu0
    %v5208 = vadd.f32 %v5168, %v5207
    %v5209 = vpop.f32.mrf.mxu0
    %v5210 = vpop.f32.mrf.mxu0
    %v5211 = vpop.f32.mrf.mxu0
    %5212 = vdwg.mxu0
    %v5214 = vlaneseq
    %v5215 = vshrl.u32 %v5214, 7
    %v5216 = vsub.s32 0, %v5215
    %v5217 = vrot.slane %v2288, %v5216
    %v5219 = vadd.f32 %v5217, %v5208
    %5220 = vst [vmem:[#allocation10] sm:$0x3] %v5219
    // Predicated region
    $region38: #{noise_efficientnet_forward.1} parent=1 // pred_check
      _
    $region39: #{noise_efficientnet_forward.1} parent=1 // pred_check_branch
      %5222 = sbr.rel (0) target = $region41
    $region40: #{noise_efficientnet_forward.1} parent=1 // pred_region
      %s5224 = ssub.s32 32, 32
      %5225 = vsyncadd [#allocation9], %s5224
      %s5227 = sshll.u32 [#allocation10], 4
      %s5228 = int_to_ptr.vmem [resolvable:$true] %s5227
      %5230 = dma.vmem_to_hbm [thread:$0]  %s5228, 32, %s8, [#allocation9]
    $region41: #{noise_efficientnet_forward.1} parent=1 // pred_fallthru
      _
    // Predicated region
    $region42: #{noise_efficientnet_forward.1} parent=1 // pred_check
      _
    $region43: #{noise_efficientnet_forward.1} parent=1 // pred_check_branch
      %5232 = sbr.rel (0) target = $region45
    $region44: #{noise_efficientnet_forward.1} parent=1 // pred_region
      %5233 = dma.done [#allocation9], 32
    $region45: #{noise_efficientnet_forward.1} parent=1 // pred_fallthru
      _
    %5234 = vsyncpa [#allocation8], 1
    %5235 = vsyncpa [#allocation9], 1

</llo_original>
